<compile_context>
chip_gen: v7x
topology: tpu7x:2x2x1
jax: 0.10.0
libtpu: 0.0.40
codegen_flags: <defaults>
</compile_context>

<pallas_src>
import math

import numpy as np
import jax
import jax.numpy as jnp
from jax.experimental import pallas as pl
from jax.experimental.pallas import tpu as pltpu

# ----------------------------- config ---------------------------------------
EMBED = 32                     # embed_size == dim_in == enc_out_dim
HEAD = 4
HEAD_DIM = EMBED // HEAD
VOCAB = 64
NUM_LAYERS = 2
BATCH = 2
SEQ = 8
BS = BATCH * SEQ               # rows of the flattened activation slab
HB = HEAD * BS                 # head-folded rows for the fused score matrix
FF = EMBED * 4
VPAD = ((VOCAB + 127) // 128) * 128   # lane-dense classifier output width
assert VPAD == FF              # classifier block reuses the 128-lane slab
BOS_ID = 1                     # TODO(synk): reference uses tokenizer.token_to_id('<BOS>'); fixed id here
NEG = float(jnp.finfo(jnp.float32).min)   # torch.finfo(float32).min
LN_EPS = 1e-5
SCALE = float(EMBED) ** -0.5   # NOTE: reference scales by embed_size**-0.5 (not head_dim)

# bf16 MXU inputs (f32 accumulation).  Use jnp.float32 for closest fp32 parity.
MM_DTYPE = jnp.bfloat16

BS_SHIFT = BS.bit_length() - 1
SEQ_SHIFT = SEQ.bit_length() - 1
assert BS == 1 << BS_SHIFT and SEQ == 1 << SEQ_SHIFT

# ----------------------------- packed slab layout ----------------------------
N_ATTN = 3 * NUM_LAYERS        # enc self x2, dec self+cross x2 = 6
N_FFN = 2 * NUM_LAYERS         # 4
N_LN = 4 * NUM_LAYERS          # 8

ATT_STRIDE = EMBED + 8         # 40 rows per attention block (32 W rows + 1 bias, 8-aligned)
QKV_ROWS = N_ATTN * ATT_STRIDE                 # 96-lane slab rows

FF1_STRIDE = EMBED + 8
FC_OFF = N_FFN * FF1_STRIDE                    # classifier block offset in 128-lane slab
FF1_ROWS = FC_OFF + FF1_STRIDE

OUT_OFF = 0                                    # attention out-proj blocks (32-lane slab)
LN_OFF = N_ATTN * ATT_STRIDE                   # 240
LN_STRIDE = 8                                  # row 0 = gamma, row 1 = beta, rest pad
FF2_OFF = LN_OFF + N_LN * LN_STRIDE            # 304
FF2_STRIDE = FF + 8                            # 136
EMB_ENC_OFF = FF2_OFF + N_FFN * FF2_STRIDE     # 848
EMB_DEC_OFF = EMB_ENC_OFF + VOCAB              # 912
PE_OFF = EMB_DEC_OFF + VOCAB                   # 976
M32_ROWS = PE_OFF + BS                         # 992


# ----------------------------- fused Pallas kernel ---------------------------
def _fused_transformer_kernel(enc_ids_ref, dec_ids_ref, enc_keep_ref, dec_keep_ref,
                              qkv_ref, ff1_ref, m32_ref, out_ref):
    f32 = jnp.float32

    def mm(a, b):
        return jnp.dot(a.astype(MM_DTYPE), b.astype(MM_DTYPE),
                       preferred_element_type=f32)

    # ---- token embedding (one-hot gather on MXU) + positional encoding ------
    lane_v = jax.lax.broadcasted_iota(jnp.int32, (BS, VOCAB), 1)
    pe = m32_ref[PE_OFF:PE_OFF + BS, :]                       # (BS, EMBED)

    def embed(ids_ref, off):
        onehot = (ids_ref[...] == lane_v).astype(f32)         # (BS, VOCAB)
        table = m32_ref[off:off + VOCAB, :]                   # pre-scaled by EMBED**-0.5
        return jnp.dot(onehot, table, preferred_element_type=f32) + pe

    enc_x = embed(enc_ids_ref, EMB_ENC_OFF)
    dec_x = embed(dec_ids_ref, EMB_DEC_OFF)

    # ---- additive attention biases for the head/batch-folded (64,64) scores -
    row = jax.lax.broadcasted_iota(jnp.int32, (HB, HB), 0)
    col = jax.lax.broadcasted_iota(jnp.int32, (HB, HB), 1)
    same_head = (row >> BS_SHIFT) == (col >> BS_SHIFT)
    row_r = row & (BS - 1)
    col_r = col & (BS - 1)
    same_batch = (row_r >> SEQ_SHIFT) == (col_r >> SEQ_SHIFT)
    block = jnp.logical_and(same_head, same_batch)            # structural validity
    causal = (col_r & (SEQ - 1)) <= (row_r & (SEQ - 1))       # decoder tril mask

    enc_keep = jnp.concatenate([enc_keep_ref[...]] * HEAD, axis=1) > 0.0   # (1, HB)
    dec_keep = jnp.concatenate([dec_keep_ref[...]] * HEAD, axis=1) > 0.0

    def make_bias(keep_cols, use_causal):
        keep = jnp.broadcast_to(keep_cols, (HB, HB))
        if use_causal:
            keep = jnp.logical_and(keep, causal)
        # inside the (head,batch) block: 0 if kept, finfo.min if masked (matches
        # masked_fill_); outside: -inf so softmax normalizes only over own block.
        return jnp.where(block, jnp.where(keep, 0.0, NEG), -jnp.inf).astype(f32)

    enc_self_bias = make_bias(enc_keep, False)
    dec_self_bias = make_bias(dec_keep, True)
    dec_cross_bias = make_bias(dec_keep, False)   # reference quirk: dec mask on enc keys

    # ---- head fold / unfold (lane-slice + concat: pure XLU relayout) --------
    def fold(t):       # (BS, EMBED) -> (HB, HEAD_DIM), head-major rows
        return jnp.concatenate(
            [t[:, h * HEAD_DIM:(h + 1) * HEAD_DIM] for h in range(HEAD)], axis=0)

    def unfold(t):     # (HB, HEAD_DIM) -> (BS, EMBED)
        return jnp.concatenate(
            [t[h * BS:(h + 1) * BS, :] for h in range(HEAD)], axis=1)

    def mha(x_q, x_kv, a_idx, bias, is_self):
        r0 = a_idx * ATT_STRIDE
        if is_self:
            w = qkv_ref[r0:r0 + EMBED, :]                                    # (32, 96)
            b = qkv_ref[r0 + EMBED:r0 + EMBED + 1, :]                        # (1, 96)
            qkv = mm(x_q, w) + b
            q, k, v = qkv[:, :EMBED], qkv[:, EMBED:2 * EMBED], qkv[:, 2 * EMBED:]
        else:
            wq = qkv_ref[r0:r0 + EMBED, :EMBED]
            bq = qkv_ref[r0 + EMBED:r0 + EMBED + 1, :EMBED]
            wkv = qkv_ref[r0:r0 + EMBED, EMBED:]
            bkv = qkv_ref[r0 + EMBED:r0 + EMBED + 1, EMBED:]
            q = mm(x_q, wq) + bq
            kv = mm(x_kv, wkv) + bkv
            k, v = kv[:, :EMBED], kv[:, EMBED:]

        qf, kf, vf = fold(q), fold(k), fold(v)
        # single (64,8)x(8,64) score matmul; SCALE already folded into Wq/bq
        s = jax.lax.dot_general(qf.astype(MM_DTYPE), kf.astype(MM_DTYPE),
                                (((1,), (1,)), ((), ())),
                                preferred_element_type=f32)                  # (HB, HB)
        s = s + bias
        m = jnp.max(s, axis=-1, keepdims=True)
        p = jnp.exp(s - m)
        p = p * pl.reciprocal(jnp.sum(p, axis=-1, keepdims=True), approx=True)
        o = unfold(mm(p, vf))                                                # (BS, EMBED)

        wo = m32_ref[OUT_OFF + r0:OUT_OFF + r0 + EMBED, :]                   # (32, 32)
        bo = m32_ref[OUT_OFF + r0 + EMBED:OUT_OFF + r0 + EMBED + 1, :]       # (1, 32)
        return mm(o, wo) + bo

    def layernorm(x, i):
        gb = m32_ref[LN_OFF + LN_STRIDE * i:LN_OFF + LN_STRIDE * i + 8, :]   # aligned block
        g = gb[0:1, :]
        b = gb[1:2, :]
        mu = jnp.mean(x, axis=-1, keepdims=True)
        var = jnp.mean((x - mu) ** 2, axis=-1, keepdims=True)
        return (x - mu) * jax.lax.rsqrt(var + LN_EPS) * g + b

    def ffn(x, i):
        w1 = ff1_ref[i * FF1_STRIDE:i * FF1_STRIDE + EMBED, :]               # (32, 128)
        b1 = ff1_ref[i * FF1_STRIDE + EMBED:i * FF1_STRIDE + EMBED + 1, :]   # (1, 128)
        w2 = m32_ref[FF2_OFF + i * FF2_STRIDE:FF2_OFF + i * FF2_STRIDE + FF, :]      # (128, 32)
        w2b = m32_ref[FF2_OFF + i * FF2_STRIDE + FF:FF2_OFF + i * FF2_STRIDE + FF + 1, :]
        h = jnp.maximum(mm(x, w1) + b1, 0.0)                                 # ReLU
        return mm(h, w2) + w2b

    # ---------------- encoder ----------------
    x = enc_x
    for l in range(NUM_LAYERS):
        a = mha(x, x, l, enc_self_bias, True) + x
        a = layernorm(a, 2 * l)
        f = ffn(a, l) + a
        x = layernorm(f, 2 * l + 1)
    enc_out = x

    # ---------------- decoder ----------------
    y = dec_x
    for l in range(NUM_LAYERS):
        a1 = layernorm(mha(y, y, NUM_LAYERS + 2 * l, dec_self_bias, True) + y,
                       2 * NUM_LAYERS + 2 * l)
        a2 = layernorm(mha(a1, enc_out, NUM_LAYERS + 2 * l + 1, dec_cross_bias, False) + a1,
                       2 * NUM_LAYERS + 2 * l + 1)
        y = ffn(a2, NUM_LAYERS + l) + a2

    # ---------------- classifier + softmax (lane-dense, padded cols -> 0) ----
    fcw = ff1_ref[FC_OFF:FC_OFF + EMBED, :]                                  # (32, 128)
    fcb = ff1_ref[FC_OFF + EMBED:FC_OFF + EMBED + 1, :]                      # (1, 128), pad = NEG
    logits = mm(y, fcw) + fcb
    m = jnp.max(logits, axis=-1, keepdims=True)
    p = jnp.exp(logits - m)                    # padded columns: exp(NEG - m) == 0
    inv = pl.reciprocal(jnp.sum(p, axis=-1, keepdims=True))                  # exact (EUP/VPU)
    out_ref[...] = (p * inv).astype(out_ref.dtype)


_VMEM = pl.BlockSpec(memory_space=pltpu.MemorySpace.VMEM)


def _fused_forward(enc_ids, dec_ids, enc_keep, dec_keep, qkv_slab, ff1_slab, m32_slab):
    out = pl.pallas_call(
        _fused_transformer_kernel,
        out_shape=jax.ShapeDtypeStruct((BS, VPAD), jnp.float32),
        in_specs=[_VMEM] * 7,
        out_specs=_VMEM,
    )(enc_ids, dec_ids, enc_keep, dec_keep, qkv_slab, ff1_slab, m32_slab)
    return out[:, :VOCAB]


# ----------------------------- model glue (plain JAX) ------------------------
def _positional_encoding(seq, dim):
    pos = np.arange(seq, dtype=np.float32)[:, None]
    div = np.exp(np.arange(0, dim, 2, dtype=np.float32) * (-math.log(10000.0) / dim))
    pe = np.zeros((seq, dim), np.float32)
    pe[:, 0::2] = np.sin(pos * div)
    pe[:, 1::2] = np.cos(pos * div)
    return jnp.asarray(pe)


_PE = _positional_encoding(SEQ, EMBED)          # constant, shared across batch


def transformer_forward(params, input_ids, input_mask, out_ids, out_mask):
    # shift_right (reference mutates out_seq before building the decoder mask)
    out_ids = out_ids.at[:, -1].set(BOS_ID)
    out_mask = out_mask.at[:, -1].set(1)
    out_ids = jnp.roll(out_ids, 1, axis=-1)
    out_mask = jnp.roll(out_mask, 1, axis=-1)

    enc_ids = input_ids.reshape(BS, 1).astype(jnp.int32)
    dec_ids = out_ids.reshape(BS, 1).astype(jnp.int32)
    enc_keep = input_mask.astype(jnp.float32).reshape(1, BS)
    dec_keep = out_mask.astype(jnp.float32).reshape(1, BS)

    out = _fused_forward(enc_ids, dec_ids, enc_keep, dec_keep,
                         params['qkv_slab'], params['ff1_slab'], params['m32_slab'])
    return out.reshape(BATCH, SEQ, VOCAB)


# ----------------------------- parameter init + packing ----------------------
def init_linear(key, fi, fo):
    k1, k2 = jax.random.split(key)
    bound = 1.0 / math.sqrt(fi)
    w = jax.random.uniform(k1, (fi, fo), jnp.float32, -bound, bound)
    b = jax.random.uniform(k2, (fo,), jnp.float32, -bound, bound)
    return w, b


def init_attn(key, dim):
    ks = jax.random.split(key, 4)
    wq, bq = init_linear(ks[0], dim, EMBED)
    wk, bk = init_linear(ks[1], dim, EMBED)
    wv, bv = init_linear(ks[2], dim, EMBED)
    wo, bo = init_linear(ks[3], EMBED, EMBED)
    return dict(wq=wq, bq=bq, wk=wk, bk=bk, wv=wv, bv=bv, wo=wo, bo=bo)


def init_embed(key, vocab, dim):
    t = jax.random.normal(key, (vocab, dim), jnp.float32)
    return t.at[0].set(0.0)          # padding_idx = 0


def init_params(key):
    ks = jax.random.split(key, 5)
    enc_keys = jax.random.split(ks[0], NUM_LAYERS)
    dec_keys = jax.random.split(ks[1], NUM_LAYERS)

    # order: enc L0, enc L1, dec L0 self, dec L0 cross, dec L1 self, dec L1 cross
    attns, ffns = [], []
    dec_attns, dec_ffns = [], []
    for k in enc_keys:
        sk = jax.random.split(k, 3)
        attns.append(init_attn(sk[0], EMBED))
        ffns.append((init_linear(sk[1], EMBED, FF), init_linear(sk[2], FF, EMBED)))
    for k in dec_keys:
        sk = jax.random.split(k, 4)
        dec_attns.append(init_attn(sk[0], EMBED))    # masked self
        dec_attns.append(init_attn(sk[1], EMBED))    # cross
        dec_ffns.append((init_linear(sk[2], EMBED, FF), init_linear(sk[3], FF, EMBED)))
    attns += dec_attns
    ffns += dec_ffns

    qkv_slab = jnp.zeros((QKV_ROWS, 3 * EMBED), jnp.float32)   # 96-lane slab
    ff1_slab = jnp.zeros((FF1_ROWS, FF), jnp.float32)          # 128-lane slab
    m32_slab = jnp.zeros((M32_ROWS, EMBED), jnp.float32)       # 32-lane slab

    for a, att in enumerate(attns):
        r0 = a * ATT_STRIDE
        # fold the attention scale into Wq / bq at pack time
        wqkv = jnp.concatenate([att['wq'] * SCALE, att['wk'], att['wv']], axis=1)  # (32,96)
        bqkv = jnp.concatenate([att['bq'] * SCALE, att['bk'], att['bv']], axis=0)  # (96,)
        qkv_slab = qkv_slab.at[r0:r0 + EMBED].set(wqkv)
        qkv_slab = qkv_slab.at[r0 + EMBED].set(bqkv)
        m32_slab = m32_slab.at[OUT_OFF + r0:OUT_OFF + r0 + EMBED].set(att['wo'])
        m32_slab = m32_slab.at[OUT_OFF + r0 + EMBED].set(att['bo'])

    # LayerNorm affine (nn.LayerNorm default: gamma=1, beta=0); beta rows stay zero
    for i in range(N_LN):
        m32_slab = m32_slab.at[LN_OFF + LN_STRIDE * i].set(1.0)

    for i, ((w1, b1), (w2, b2)) in enumerate(ffns):
        ff1_slab = ff1_slab.at[i * FF1_STRIDE:i * FF1_STRIDE + EMBED].set(w1)
        ff1_slab = ff1_slab.at[i * FF1_STRIDE + EMBED].set(b1)
        m32_slab = m32_slab.at[FF2_OFF + i * FF2_STRIDE:FF2_OFF + i * FF2_STRIDE + FF].set(w2)
        m32_slab = m32_slab.at[FF2_OFF + i * FF2_STRIDE + FF].set(b2)

    fc_w, fc_b = init_linear(ks[2], EMBED, VOCAB)
    ff1_slab = ff1_slab.at[FC_OFF:FC_OFF + EMBED, :VOCAB].set(fc_w)
    ff1_slab = ff1_slab.at[FC_OFF + EMBED, :VOCAB].set(fc_b)
    ff1_slab = ff1_slab.at[FC_OFF + EMBED, VOCAB:].set(NEG)    # padded logits -> prob 0

    emb_scale = float(EMBED) ** -0.5
    m32_slab = m32_slab.at[EMB_ENC_OFF:EMB_ENC_OFF + VOCAB].set(
        init_embed(ks[3], VOCAB, EMBED) * emb_scale)
    m32_slab = m32_slab.at[EMB_DEC_OFF:EMB_DEC_OFF + VOCAB].set(
        init_embed(ks[4], VOCAB, EMBED) * emb_scale)
    m32_slab = m32_slab.at[PE_OFF:PE_OFF + BS].set(jnp.tile(_PE, (BATCH, 1)))

    return dict(qkv_slab=qkv_slab, ff1_slab=ff1_slab, m32_slab=m32_slab)


# ----------------------------- main ------------------------------------------
if __name__ == "__main__":
    key = jax.random.PRNGKey(0)
    pkey, ikey, okey = jax.random.split(key, 3)
    params = init_params(pkey)

    input_ids = jax.random.randint(ikey, (BATCH, SEQ), 1, VOCAB, dtype=jnp.int32)
    out_ids = jax.random.randint(okey, (BATCH, SEQ), 1, VOCAB, dtype=jnp.int32)
    input_mask = jnp.array([[1, 1, 1, 1, 1, 1, 0, 0],
                            [1, 1, 1, 1, 1, 1, 1, 1]], dtype=jnp.int32)
    out_mask = jnp.array([[1, 1, 1, 1, 1, 0, 0, 0],
                          [1, 1, 1, 1, 1, 1, 1, 0]], dtype=jnp.int32)

    fwd = jax.jit(transformer_forward)
    out = fwd(params, input_ids, input_mask, out_ids, out_mask)
    jax.block_until_ready(out)

    assert out.shape == (BATCH, SEQ, VOCAB)
    assert bool(jnp.all(jnp.isfinite(out)))
    # rows of the final softmax sum to 1
    assert bool(jnp.allclose(jnp.sum(out, axis=-1), 1.0, atol=1e-4))
    print("KERNEL_OK")
</pallas_src>

<mosaic_0001>
module attributes {stable_mosaic.version = 11 : i64} {
  func.func @_fused_transformer_kernel(%arg0: memref<16x1xi32, #tpu.memory_space<vmem>>, %arg1: memref<16x1xi32, #tpu.memory_space<vmem>>, %arg2: memref<1x16xf32, #tpu.memory_space<vmem>>, %arg3: memref<1x16xf32, #tpu.memory_space<vmem>>, %arg4: memref<240x96xf32, #tpu.memory_space<vmem>>, %arg5: memref<200x128xf32, #tpu.memory_space<vmem>>, %arg6: memref<992x32xf32, #tpu.memory_space<vmem>>, %arg7: memref<16x128xf32, #tpu.memory_space<vmem>>) attributes {dimension_semantics = [], scalar_prefetch = 0 : i64, scratch_operands = 0 : i64, tpu.core_type = #tpu.core_type<tc>} {
    %0 = tpu.iota {dimensions = array<i32: 1>} : vector<16x64xi32>
    %c976 = arith.constant 976 : index
    %c0 = arith.constant 0 : index
    %1 = vector.load %arg6[%c976, %c0] : memref<992x32xf32, #tpu.memory_space<vmem>>, vector<16x32xf32>
    %c0_0 = arith.constant 0 : index
    %c0_1 = arith.constant 0 : index
    %2 = vector.load %arg0[%c0_0, %c0_1] : memref<16x1xi32, #tpu.memory_space<vmem>>, vector<16x1xi32>
    %3 = vector.broadcast %2 : vector<16x1xi32> to vector<16x64xi32>
    %4 = arith.cmpi eq, %3, %0 : vector<16x64xi32>
    %5 = arith.extui %4 : vector<16x64xi1> to vector<16x64xi32>
    %6 = arith.sitofp %5 : vector<16x64xi32> to vector<16x64xf32>
    %c848 = arith.constant 848 : index
    %c0_2 = arith.constant 0 : index
    %7 = vector.load %arg6[%c848, %c0_2] : memref<992x32xf32, #tpu.memory_space<vmem>>, vector<64x32xf32>
    %cst = arith.constant dense<0.000000e+00> : vector<16x32xf32>
    %8 = tpu.matmul %6, %7, %cst {dimension_numbers = #tpu.dot_dimension_numbers<[1], [0], [0], [1], [0, 0, 1, 1], [], []>} : vector<16x64xf32>, vector<64x32xf32>, vector<16x32xf32> -> vector<16x32xf32>
    %9 = arith.addf %8, %1 : vector<16x32xf32>
    %c0_3 = arith.constant 0 : index
    %c0_4 = arith.constant 0 : index
    %10 = vector.load %arg1[%c0_3, %c0_4] : memref<16x1xi32, #tpu.memory_space<vmem>>, vector<16x1xi32>
    %11 = vector.broadcast %10 : vector<16x1xi32> to vector<16x64xi32>
    %12 = arith.cmpi eq, %11, %0 : vector<16x64xi32>
    %13 = arith.extui %12 : vector<16x64xi1> to vector<16x64xi32>
    %14 = arith.sitofp %13 : vector<16x64xi32> to vector<16x64xf32>
    %c912 = arith.constant 912 : index
    %c0_5 = arith.constant 0 : index
    %15 = vector.load %arg6[%c912, %c0_5] : memref<992x32xf32, #tpu.memory_space<vmem>>, vector<64x32xf32>
    %cst_6 = arith.constant dense<0.000000e+00> : vector<16x32xf32>
    %16 = tpu.matmul %14, %15, %cst_6 {dimension_numbers = #tpu.dot_dimension_numbers<[1], [0], [0], [1], [0, 0, 1, 1], [], []>} : vector<16x64xf32>, vector<64x32xf32>, vector<16x32xf32> -> vector<16x32xf32>
    %17 = arith.addf %16, %1 : vector<16x32xf32>
    %18 = tpu.iota {dimensions = array<i32: 0>} : vector<64x64xi32>
    %19 = tpu.iota {dimensions = array<i32: 1>} : vector<64x64xi32>
    %c4_i32 = arith.constant 4 : i32
    %20 = vector.broadcast %c4_i32 : i32 to vector<64x64xi32>
    %21 = arith.shrsi %18, %20 : vector<64x64xi32>
    %c4_i32_7 = arith.constant 4 : i32
    %22 = vector.broadcast %c4_i32_7 : i32 to vector<64x64xi32>
    %23 = arith.shrsi %19, %22 : vector<64x64xi32>
    %24 = arith.cmpi eq, %21, %23 : vector<64x64xi32>
    %c15_i32 = arith.constant 15 : i32
    %25 = vector.broadcast %c15_i32 : i32 to vector<64x64xi32>
    %26 = arith.andi %18, %25 : vector<64x64xi32>
    %c15_i32_8 = arith.constant 15 : i32
    %27 = vector.broadcast %c15_i32_8 : i32 to vector<64x64xi32>
    %28 = arith.andi %19, %27 : vector<64x64xi32>
    %c3_i32 = arith.constant 3 : i32
    %29 = vector.broadcast %c3_i32 : i32 to vector<64x64xi32>
    %30 = arith.shrsi %26, %29 : vector<64x64xi32>
    %c3_i32_9 = arith.constant 3 : i32
    %31 = vector.broadcast %c3_i32_9 : i32 to vector<64x64xi32>
    %32 = arith.shrsi %28, %31 : vector<64x64xi32>
    %33 = arith.cmpi eq, %30, %32 : vector<64x64xi32>
    %34 = arith.andi %24, %33 : vector<64x64xi1>
    %c7_i32 = arith.constant 7 : i32
    %35 = vector.broadcast %c7_i32 : i32 to vector<64x64xi32>
    %36 = arith.andi %28, %35 : vector<64x64xi32>
    %c7_i32_10 = arith.constant 7 : i32
    %37 = vector.broadcast %c7_i32_10 : i32 to vector<64x64xi32>
    %38 = arith.andi %26, %37 : vector<64x64xi32>
    %39 = arith.cmpi sle, %36, %38 : vector<64x64xi32>
    %c0_11 = arith.constant 0 : index
    %c0_12 = arith.constant 0 : index
    %40 = vector.load %arg2[%c0_11, %c0_12] : memref<1x16xf32, #tpu.memory_space<vmem>>, vector<1x16xf32>
    %41 = tpu.concatenate %40, %40, %40, %40 in 1 : vector<1x16xf32>, vector<1x16xf32>, vector<1x16xf32>, vector<1x16xf32> -> vector<1x64xf32>
    %cst_13 = arith.constant 0.000000e+00 : f32
    %42 = vector.broadcast %cst_13 : f32 to vector<1x64xf32>
    %43 = arith.cmpf ogt, %41, %42 : vector<1x64xf32>
    %c0_14 = arith.constant 0 : index
    %c0_15 = arith.constant 0 : index
    %44 = vector.load %arg3[%c0_14, %c0_15] : memref<1x16xf32, #tpu.memory_space<vmem>>, vector<1x16xf32>
    %45 = tpu.concatenate %44, %44, %44, %44 in 1 : vector<1x16xf32>, vector<1x16xf32>, vector<1x16xf32>, vector<1x16xf32> -> vector<1x64xf32>
    %cst_16 = arith.constant 0.000000e+00 : f32
    %46 = vector.broadcast %cst_16 : f32 to vector<1x64xf32>
    %47 = arith.cmpf ogt, %45, %46 : vector<1x64xf32>
    %48 = vector.shape_cast %43 : vector<1x64xi1> to vector<1x64xi1>
    %49 = vector.broadcast %48 : vector<1x64xi1> to vector<64x64xi1>
    %cst_17 = arith.constant 0.000000e+00 : f32
    %cst_18 = arith.constant -3.40282347E+38 : f32
    %50 = vector.broadcast %cst_17 : f32 to vector<64x64xf32>
    %51 = vector.broadcast %cst_18 : f32 to vector<64x64xf32>
    %52 = arith.select %49, %50, %51 : vector<64x64xi1>, vector<64x64xf32>
    %cst_19 = arith.constant 0xFF800000 : f32
    %53 = vector.broadcast %cst_19 : f32 to vector<64x64xf32>
    %54 = arith.select %34, %52, %53 : vector<64x64xi1>, vector<64x64xf32>
    %55 = vector.shape_cast %47 : vector<1x64xi1> to vector<1x64xi1>
    %56 = vector.broadcast %55 : vector<1x64xi1> to vector<64x64xi1>
    %57 = arith.andi %56, %39 : vector<64x64xi1>
    %cst_20 = arith.constant 0.000000e+00 : f32
    %cst_21 = arith.constant -3.40282347E+38 : f32
    %58 = vector.broadcast %cst_20 : f32 to vector<64x64xf32>
    %59 = vector.broadcast %cst_21 : f32 to vector<64x64xf32>
    %60 = arith.select %57, %58, %59 : vector<64x64xi1>, vector<64x64xf32>
    %cst_22 = arith.constant 0xFF800000 : f32
    %61 = vector.broadcast %cst_22 : f32 to vector<64x64xf32>
    %62 = arith.select %34, %60, %61 : vector<64x64xi1>, vector<64x64xf32>
    %63 = vector.shape_cast %47 : vector<1x64xi1> to vector<1x64xi1>
    %64 = vector.broadcast %63 : vector<1x64xi1> to vector<64x64xi1>
    %cst_23 = arith.constant 0.000000e+00 : f32
    %cst_24 = arith.constant -3.40282347E+38 : f32
    %65 = vector.broadcast %cst_23 : f32 to vector<64x64xf32>
    %66 = vector.broadcast %cst_24 : f32 to vector<64x64xf32>
    %67 = arith.select %64, %65, %66 : vector<64x64xi1>, vector<64x64xf32>
    %cst_25 = arith.constant 0xFF800000 : f32
    %68 = vector.broadcast %cst_25 : f32 to vector<64x64xf32>
    %69 = arith.select %34, %67, %68 : vector<64x64xi1>, vector<64x64xf32>
    %c0_26 = arith.constant 0 : index
    %c0_27 = arith.constant 0 : index
    %70 = vector.load %arg4[%c0_26, %c0_27] : memref<240x96xf32, #tpu.memory_space<vmem>>, vector<32x96xf32>
    %c32 = arith.constant 32 : index
    %c0_28 = arith.constant 0 : index
    %71 = vector.load %arg4[%c32, %c0_28] : memref<240x96xf32, #tpu.memory_space<vmem>>, vector<1x96xf32>
    %72 = arith.truncf %9 : vector<16x32xf32> to vector<16x32xbf16>
    %73 = arith.truncf %70 : vector<32x96xf32> to vector<32x96xbf16>
    %cst_29 = arith.constant dense<0.000000e+00> : vector<16x96xf32>
    %74 = tpu.matmul %72, %73, %cst_29 {dimension_numbers = #tpu.dot_dimension_numbers<[1], [0], [0], [1], [0, 0, 1, 1], [], []>} : vector<16x32xbf16>, vector<32x96xbf16>, vector<16x96xf32> -> vector<16x96xf32>
    %75 = vector.broadcast %71 : vector<1x96xf32> to vector<16x96xf32>
    %76 = arith.addf %74, %75 : vector<16x96xf32>
    %77 = vector.extract_strided_slice %76 {offsets = [0, 0], sizes = [16, 32], strides = [1, 1]} : vector<16x96xf32> to vector<16x32xf32>
    %78 = vector.extract_strided_slice %76 {offsets = [0, 32], sizes = [16, 32], strides = [1, 1]} : vector<16x96xf32> to vector<16x32xf32>
    %79 = vector.extract_strided_slice %76 {offsets = [0, 64], sizes = [16, 32], strides = [1, 1]} : vector<16x96xf32> to vector<16x32xf32>
    %80 = vector.extract_strided_slice %77 {offsets = [0, 0], sizes = [16, 8], strides = [1, 1]} : vector<16x32xf32> to vector<16x8xf32>
    %81 = vector.extract_strided_slice %77 {offsets = [0, 8], sizes = [16, 8], strides = [1, 1]} : vector<16x32xf32> to vector<16x8xf32>
    %82 = vector.extract_strided_slice %77 {offsets = [0, 16], sizes = [16, 8], strides = [1, 1]} : vector<16x32xf32> to vector<16x8xf32>
    %83 = vector.extract_strided_slice %77 {offsets = [0, 24], sizes = [16, 8], strides = [1, 1]} : vector<16x32xf32> to vector<16x8xf32>
    %84 = tpu.concatenate %80, %81, %82, %83 in 0 : vector<16x8xf32>, vector<16x8xf32>, vector<16x8xf32>, vector<16x8xf32> -> vector<64x8xf32>
    %85 = vector.extract_strided_slice %78 {offsets = [0, 0], sizes = [16, 8], strides = [1, 1]} : vector<16x32xf32> to vector<16x8xf32>
    %86 = vector.extract_strided_slice %78 {offsets = [0, 8], sizes = [16, 8], strides = [1, 1]} : vector<16x32xf32> to vector<16x8xf32>
    %87 = vector.extract_strided_slice %78 {offsets = [0, 16], sizes = [16, 8], strides = [1, 1]} : vector<16x32xf32> to vector<16x8xf32>
    %88 = vector.extract_strided_slice %78 {offsets = [0, 24], sizes = [16, 8], strides = [1, 1]} : vector<16x32xf32> to vector<16x8xf32>
    %89 = tpu.concatenate %85, %86, %87, %88 in 0 : vector<16x8xf32>, vector<16x8xf32>, vector<16x8xf32>, vector<16x8xf32> -> vector<64x8xf32>
    %90 = vector.extract_strided_slice %79 {offsets = [0, 0], sizes = [16, 8], strides = [1, 1]} : vector<16x32xf32> to vector<16x8xf32>
    %91 = vector.extract_strided_slice %79 {offsets = [0, 8], sizes = [16, 8], strides = [1, 1]} : vector<16x32xf32> to vector<16x8xf32>
    %92 = vector.extract_strided_slice %79 {offsets = [0, 16], sizes = [16, 8], strides = [1, 1]} : vector<16x32xf32> to vector<16x8xf32>
    %93 = vector.extract_strided_slice %79 {offsets = [0, 24], sizes = [16, 8], strides = [1, 1]} : vector<16x32xf32> to vector<16x8xf32>
    %94 = tpu.concatenate %90, %91, %92, %93 in 0 : vector<16x8xf32>, vector<16x8xf32>, vector<16x8xf32>, vector<16x8xf32> -> vector<64x8xf32>
    %95 = arith.truncf %84 : vector<64x8xf32> to vector<64x8xbf16>
    %96 = arith.truncf %89 : vector<64x8xf32> to vector<64x8xbf16>
    %cst_30 = arith.constant dense<0.000000e+00> : vector<64x64xf32>
    %97 = tpu.matmul %95, %96, %cst_30 {dimension_numbers = #tpu.dot_dimension_numbers<[1], [1], [0], [0], [0, 0, 1, 0], [], []>} : vector<64x8xbf16>, vector<64x8xbf16>, vector<64x64xf32> -> vector<64x64xf32>
    %98 = arith.addf %97, %54 : vector<64x64xf32>
    %cst_31 = arith.constant dense<0xFF800000> : vector<64xf32>
    %99 = vector.multi_reduction <maximumf>, %98, %cst_31 [1] : vector<64x64xf32> to vector<64xf32>
    %100 = vector.shape_cast %99 : vector<64xf32> to vector<64x1xf32>
    %101 = vector.broadcast %100 : vector<64x1xf32> to vector<64x64xf32>
    %102 = arith.subf %98, %101 : vector<64x64xf32>
    %103 = math.exp %102 : vector<64x64xf32>
    %cst_32 = arith.constant dense<0.000000e+00> : vector<64xf32>
    %104 = vector.multi_reduction <add>, %103, %cst_32 [1] : vector<64x64xf32> to vector<64xf32>
    %105 = vector.shape_cast %104 : vector<64xf32> to vector<64x1xf32>
    %106 = tpu.reciprocal %105 {approx = true} : vector<64x1xf32> -> vector<64x1xf32>
    %107 = vector.broadcast %106 : vector<64x1xf32> to vector<64x64xf32>
    %108 = arith.mulf %103, %107 : vector<64x64xf32>
    %109 = arith.truncf %108 : vector<64x64xf32> to vector<64x64xbf16>
    %110 = arith.truncf %94 : vector<64x8xf32> to vector<64x8xbf16>
    %cst_33 = arith.constant dense<0.000000e+00> : vector<64x8xf32>
    %111 = tpu.matmul %109, %110, %cst_33 {dimension_numbers = #tpu.dot_dimension_numbers<[1], [0], [0], [1], [0, 0, 1, 1], [], []>} : vector<64x64xbf16>, vector<64x8xbf16>, vector<64x8xf32> -> vector<64x8xf32>
    %112 = vector.extract_strided_slice %111 {offsets = [0, 0], sizes = [16, 8], strides = [1, 1]} : vector<64x8xf32> to vector<16x8xf32>
    %113 = vector.extract_strided_slice %111 {offsets = [16, 0], sizes = [16, 8], strides = [1, 1]} : vector<64x8xf32> to vector<16x8xf32>
    %114 = vector.extract_strided_slice %111 {offsets = [32, 0], sizes = [16, 8], strides = [1, 1]} : vector<64x8xf32> to vector<16x8xf32>
    %115 = vector.extract_strided_slice %111 {offsets = [48, 0], sizes = [16, 8], strides = [1, 1]} : vector<64x8xf32> to vector<16x8xf32>
    %116 = tpu.concatenate %112, %113, %114, %115 in 1 : vector<16x8xf32>, vector<16x8xf32>, vector<16x8xf32>, vector<16x8xf32> -> vector<16x32xf32>
    %c0_34 = arith.constant 0 : index
    %c0_35 = arith.constant 0 : index
    %117 = vector.load %arg6[%c0_34, %c0_35] : memref<992x32xf32, #tpu.memory_space<vmem>>, vector<32x32xf32>
    %c32_36 = arith.constant 32 : index
    %c0_37 = arith.constant 0 : index
    %118 = vector.load %arg6[%c32_36, %c0_37] : memref<992x32xf32, #tpu.memory_space<vmem>>, vector<1x32xf32>
    %119 = arith.truncf %116 : vector<16x32xf32> to vector<16x32xbf16>
    %120 = arith.truncf %117 : vector<32x32xf32> to vector<32x32xbf16>
    %cst_38 = arith.constant dense<0.000000e+00> : vector<16x32xf32>
    %121 = tpu.matmul %119, %120, %cst_38 {dimension_numbers = #tpu.dot_dimension_numbers<[1], [0], [0], [1], [0, 0, 1, 1], [], []>} : vector<16x32xbf16>, vector<32x32xbf16>, vector<16x32xf32> -> vector<16x32xf32>
    %122 = vector.broadcast %118 : vector<1x32xf32> to vector<16x32xf32>
    %123 = arith.addf %121, %122 : vector<16x32xf32>
    %124 = arith.addf %123, %9 : vector<16x32xf32>
    %c240 = arith.constant 240 : index
    %c0_39 = arith.constant 0 : index
    %125 = vector.load %arg6[%c240, %c0_39] : memref<992x32xf32, #tpu.memory_space<vmem>>, vector<8x32xf32>
    %126 = vector.extract_strided_slice %125 {offsets = [0, 0], sizes = [1, 32], strides = [1, 1]} : vector<8x32xf32> to vector<1x32xf32>
    %127 = vector.extract_strided_slice %125 {offsets = [1, 0], sizes = [1, 32], strides = [1, 1]} : vector<8x32xf32> to vector<1x32xf32>
    %cst_40 = arith.constant dense<0.000000e+00> : vector<16xf32>
    %128 = vector.multi_reduction <add>, %124, %cst_40 [1] : vector<16x32xf32> to vector<16xf32>
    %129 = vector.shape_cast %128 : vector<16xf32> to vector<16x1xf32>
    %cst_41 = arith.constant 3.200000e+01 : f32
    %130 = vector.broadcast %cst_41 : f32 to vector<16x1xf32>
    %131 = arith.divf %129, %130 : vector<16x1xf32>
    %132 = vector.broadcast %131 : vector<16x1xf32> to vector<16x32xf32>
    %133 = arith.subf %124, %132 : vector<16x32xf32>
    %134 = arith.mulf %133, %133 : vector<16x32xf32>
    %cst_42 = arith.constant dense<0.000000e+00> : vector<16xf32>
    %135 = vector.multi_reduction <add>, %134, %cst_42 [1] : vector<16x32xf32> to vector<16xf32>
    %136 = vector.shape_cast %135 : vector<16xf32> to vector<16x1xf32>
    %cst_43 = arith.constant 3.200000e+01 : f32
    %137 = vector.broadcast %cst_43 : f32 to vector<16x1xf32>
    %138 = arith.divf %136, %137 : vector<16x1xf32>
    %139 = vector.broadcast %131 : vector<16x1xf32> to vector<16x32xf32>
    %140 = arith.subf %124, %139 : vector<16x32xf32>
    %cst_44 = arith.constant 9.99999974E-6 : f32
    %141 = vector.broadcast %cst_44 : f32 to vector<16x1xf32>
    %142 = arith.addf %138, %141 : vector<16x1xf32>
    %143 = math.rsqrt %142 : vector<16x1xf32>
    %144 = vector.broadcast %143 : vector<16x1xf32> to vector<16x32xf32>
    %145 = arith.mulf %140, %144 : vector<16x32xf32>
    %146 = vector.broadcast %126 : vector<1x32xf32> to vector<16x32xf32>
    %147 = arith.mulf %145, %146 : vector<16x32xf32>
    %148 = vector.broadcast %127 : vector<1x32xf32> to vector<16x32xf32>
    %149 = arith.addf %147, %148 : vector<16x32xf32>
    %c0_45 = arith.constant 0 : index
    %c0_46 = arith.constant 0 : index
    %150 = vector.load %arg5[%c0_45, %c0_46] : memref<200x128xf32, #tpu.memory_space<vmem>>, vector<32x128xf32>
    %c32_47 = arith.constant 32 : index
    %c0_48 = arith.constant 0 : index
    %151 = vector.load %arg5[%c32_47, %c0_48] : memref<200x128xf32, #tpu.memory_space<vmem>>, vector<1x128xf32>
    %c304 = arith.constant 304 : index
    %c0_49 = arith.constant 0 : index
    %152 = vector.load %arg6[%c304, %c0_49] : memref<992x32xf32, #tpu.memory_space<vmem>>, vector<128x32xf32>
    %c432 = arith.constant 432 : index
    %c0_50 = arith.constant 0 : index
    %153 = vector.load %arg6[%c432, %c0_50] : memref<992x32xf32, #tpu.memory_space<vmem>>, vector<1x32xf32>
    %154 = arith.truncf %149 : vector<16x32xf32> to vector<16x32xbf16>
    %155 = arith.truncf %150 : vector<32x128xf32> to vector<32x128xbf16>
    %cst_51 = arith.constant dense<0.000000e+00> : vector<16x128xf32>
    %156 = tpu.matmul %154, %155, %cst_51 {dimension_numbers = #tpu.dot_dimension_numbers<[1], [0], [0], [1], [0, 0, 1, 1], [], []>} : vector<16x32xbf16>, vector<32x128xbf16>, vector<16x128xf32> -> vector<16x128xf32>
    %157 = vector.broadcast %151 : vector<1x128xf32> to vector<16x128xf32>
    %158 = arith.addf %156, %157 : vector<16x128xf32>
    %cst_52 = arith.constant 0.000000e+00 : f32
    %159 = vector.broadcast %cst_52 : f32 to vector<16x128xf32>
    %160 = arith.maximumf %158, %159 : vector<16x128xf32>
    %161 = arith.truncf %160 : vector<16x128xf32> to vector<16x128xbf16>
    %162 = arith.truncf %152 : vector<128x32xf32> to vector<128x32xbf16>
    %cst_53 = arith.constant dense<0.000000e+00> : vector<16x32xf32>
    %163 = tpu.matmul %161, %162, %cst_53 {dimension_numbers = #tpu.dot_dimension_numbers<[1], [0], [0], [1], [0, 0, 1, 1], [], []>} : vector<16x128xbf16>, vector<128x32xbf16>, vector<16x32xf32> -> vector<16x32xf32>
    %164 = vector.broadcast %153 : vector<1x32xf32> to vector<16x32xf32>
    %165 = arith.addf %163, %164 : vector<16x32xf32>
    %166 = arith.addf %165, %149 : vector<16x32xf32>
    %c248 = arith.constant 248 : index
    %c0_54 = arith.constant 0 : index
    %167 = vector.load %arg6[%c248, %c0_54] : memref<992x32xf32, #tpu.memory_space<vmem>>, vector<8x32xf32>
    %168 = vector.extract_strided_slice %167 {offsets = [0, 0], sizes = [1, 32], strides = [1, 1]} : vector<8x32xf32> to vector<1x32xf32>
    %169 = vector.extract_strided_slice %167 {offsets = [1, 0], sizes = [1, 32], strides = [1, 1]} : vector<8x32xf32> to vector<1x32xf32>
    %cst_55 = arith.constant dense<0.000000e+00> : vector<16xf32>
    %170 = vector.multi_reduction <add>, %166, %cst_55 [1] : vector<16x32xf32> to vector<16xf32>
    %171 = vector.shape_cast %170 : vector<16xf32> to vector<16x1xf32>
    %cst_56 = arith.constant 3.200000e+01 : f32
    %172 = vector.broadcast %cst_56 : f32 to vector<16x1xf32>
    %173 = arith.divf %171, %172 : vector<16x1xf32>
    %174 = vector.broadcast %173 : vector<16x1xf32> to vector<16x32xf32>
    %175 = arith.subf %166, %174 : vector<16x32xf32>
    %176 = arith.mulf %175, %175 : vector<16x32xf32>
    %cst_57 = arith.constant dense<0.000000e+00> : vector<16xf32>
    %177 = vector.multi_reduction <add>, %176, %cst_57 [1] : vector<16x32xf32> to vector<16xf32>
    %178 = vector.shape_cast %177 : vector<16xf32> to vector<16x1xf32>
    %cst_58 = arith.constant 3.200000e+01 : f32
    %179 = vector.broadcast %cst_58 : f32 to vector<16x1xf32>
    %180 = arith.divf %178, %179 : vector<16x1xf32>
    %181 = vector.broadcast %173 : vector<16x1xf32> to vector<16x32xf32>
    %182 = arith.subf %166, %181 : vector<16x32xf32>
    %cst_59 = arith.constant 9.99999974E-6 : f32
    %183 = vector.broadcast %cst_59 : f32 to vector<16x1xf32>
    %184 = arith.addf %180, %183 : vector<16x1xf32>
    %185 = math.rsqrt %184 : vector<16x1xf32>
    %186 = vector.broadcast %185 : vector<16x1xf32> to vector<16x32xf32>
    %187 = arith.mulf %182, %186 : vector<16x32xf32>
    %188 = vector.broadcast %168 : vector<1x32xf32> to vector<16x32xf32>
    %189 = arith.mulf %187, %188 : vector<16x32xf32>
    %190 = vector.broadcast %169 : vector<1x32xf32> to vector<16x32xf32>
    %191 = arith.addf %189, %190 : vector<16x32xf32>
    %c40 = arith.constant 40 : index
    %c0_60 = arith.constant 0 : index
    %192 = vector.load %arg4[%c40, %c0_60] : memref<240x96xf32, #tpu.memory_space<vmem>>, vector<32x96xf32>
    %c72 = arith.constant 72 : index
    %c0_61 = arith.constant 0 : index
    %193 = vector.load %arg4[%c72, %c0_61] : memref<240x96xf32, #tpu.memory_space<vmem>>, vector<1x96xf32>
    %194 = arith.truncf %191 : vector<16x32xf32> to vector<16x32xbf16>
    %195 = arith.truncf %192 : vector<32x96xf32> to vector<32x96xbf16>
    %cst_62 = arith.constant dense<0.000000e+00> : vector<16x96xf32>
    %196 = tpu.matmul %194, %195, %cst_62 {dimension_numbers = #tpu.dot_dimension_numbers<[1], [0], [0], [1], [0, 0, 1, 1], [], []>} : vector<16x32xbf16>, vector<32x96xbf16>, vector<16x96xf32> -> vector<16x96xf32>
    %197 = vector.broadcast %193 : vector<1x96xf32> to vector<16x96xf32>
    %198 = arith.addf %196, %197 : vector<16x96xf32>
    %199 = vector.extract_strided_slice %198 {offsets = [0, 0], sizes = [16, 32], strides = [1, 1]} : vector<16x96xf32> to vector<16x32xf32>
    %200 = vector.extract_strided_slice %198 {offsets = [0, 32], sizes = [16, 32], strides = [1, 1]} : vector<16x96xf32> to vector<16x32xf32>
    %201 = vector.extract_strided_slice %198 {offsets = [0, 64], sizes = [16, 32], strides = [1, 1]} : vector<16x96xf32> to vector<16x32xf32>
    %202 = vector.extract_strided_slice %199 {offsets = [0, 0], sizes = [16, 8], strides = [1, 1]} : vector<16x32xf32> to vector<16x8xf32>
    %203 = vector.extract_strided_slice %199 {offsets = [0, 8], sizes = [16, 8], strides = [1, 1]} : vector<16x32xf32> to vector<16x8xf32>
    %204 = vector.extract_strided_slice %199 {offsets = [0, 16], sizes = [16, 8], strides = [1, 1]} : vector<16x32xf32> to vector<16x8xf32>
    %205 = vector.extract_strided_slice %199 {offsets = [0, 24], sizes = [16, 8], strides = [1, 1]} : vector<16x32xf32> to vector<16x8xf32>
    %206 = tpu.concatenate %202, %203, %204, %205 in 0 : vector<16x8xf32>, vector<16x8xf32>, vector<16x8xf32>, vector<16x8xf32> -> vector<64x8xf32>
    %207 = vector.extract_strided_slice %200 {offsets = [0, 0], sizes = [16, 8], strides = [1, 1]} : vector<16x32xf32> to vector<16x8xf32>
    %208 = vector.extract_strided_slice %200 {offsets = [0, 8], sizes = [16, 8], strides = [1, 1]} : vector<16x32xf32> to vector<16x8xf32>
    %209 = vector.extract_strided_slice %200 {offsets = [0, 16], sizes = [16, 8], strides = [1, 1]} : vector<16x32xf32> to vector<16x8xf32>
    %210 = vector.extract_strided_slice %200 {offsets = [0, 24], sizes = [16, 8], strides = [1, 1]} : vector<16x32xf32> to vector<16x8xf32>
    %211 = tpu.concatenate %207, %208, %209, %210 in 0 : vector<16x8xf32>, vector<16x8xf32>, vector<16x8xf32>, vector<16x8xf32> -> vector<64x8xf32>
    %212 = vector.extract_strided_slice %201 {offsets = [0, 0], sizes = [16, 8], strides = [1, 1]} : vector<16x32xf32> to vector<16x8xf32>
    %213 = vector.extract_strided_slice %201 {offsets = [0, 8], sizes = [16, 8], strides = [1, 1]} : vector<16x32xf32> to vector<16x8xf32>
    %214 = vector.extract_strided_slice %201 {offsets = [0, 16], sizes = [16, 8], strides = [1, 1]} : vector<16x32xf32> to vector<16x8xf32>
    %215 = vector.extract_strided_slice %201 {offsets = [0, 24], sizes = [16, 8], strides = [1, 1]} : vector<16x32xf32> to vector<16x8xf32>
    %216 = tpu.concatenate %212, %213, %214, %215 in 0 : vector<16x8xf32>, vector<16x8xf32>, vector<16x8xf32>, vector<16x8xf32> -> vector<64x8xf32>
    %217 = arith.truncf %206 : vector<64x8xf32> to vector<64x8xbf16>
    %218 = arith.truncf %211 : vector<64x8xf32> to vector<64x8xbf16>
    %cst_63 = arith.constant dense<0.000000e+00> : vector<64x64xf32>
    %219 = tpu.matmul %217, %218, %cst_63 {dimension_numbers = #tpu.dot_dimension_numbers<[1], [1], [0], [0], [0, 0, 1, 0], [], []>} : vector<64x8xbf16>, vector<64x8xbf16>, vector<64x64xf32> -> vector<64x64xf32>
    %220 = arith.addf %219, %54 : vector<64x64xf32>
    %cst_64 = arith.constant dense<0xFF800000> : vector<64xf32>
    %221 = vector.multi_reduction <maximumf>, %220, %cst_64 [1] : vector<64x64xf32> to vector<64xf32>
    %222 = vector.shape_cast %221 : vector<64xf32> to vector<64x1xf32>
    %223 = vector.broadcast %222 : vector<64x1xf32> to vector<64x64xf32>
    %224 = arith.subf %220, %223 : vector<64x64xf32>
    %225 = math.exp %224 : vector<64x64xf32>
    %cst_65 = arith.constant dense<0.000000e+00> : vector<64xf32>
    %226 = vector.multi_reduction <add>, %225, %cst_65 [1] : vector<64x64xf32> to vector<64xf32>
    %227 = vector.shape_cast %226 : vector<64xf32> to vector<64x1xf32>
    %228 = tpu.reciprocal %227 {approx = true} : vector<64x1xf32> -> vector<64x1xf32>
    %229 = vector.broadcast %228 : vector<64x1xf32> to vector<64x64xf32>
    %230 = arith.mulf %225, %229 : vector<64x64xf32>
    %231 = arith.truncf %230 : vector<64x64xf32> to vector<64x64xbf16>
    %232 = arith.truncf %216 : vector<64x8xf32> to vector<64x8xbf16>
    %cst_66 = arith.constant dense<0.000000e+00> : vector<64x8xf32>
    %233 = tpu.matmul %231, %232, %cst_66 {dimension_numbers = #tpu.dot_dimension_numbers<[1], [0], [0], [1], [0, 0, 1, 1], [], []>} : vector<64x64xbf16>, vector<64x8xbf16>, vector<64x8xf32> -> vector<64x8xf32>
    %234 = vector.extract_strided_slice %233 {offsets = [0, 0], sizes = [16, 8], strides = [1, 1]} : vector<64x8xf32> to vector<16x8xf32>
    %235 = vector.extract_strided_slice %233 {offsets = [16, 0], sizes = [16, 8], strides = [1, 1]} : vector<64x8xf32> to vector<16x8xf32>
    %236 = vector.extract_strided_slice %233 {offsets = [32, 0], sizes = [16, 8], strides = [1, 1]} : vector<64x8xf32> to vector<16x8xf32>
    %237 = vector.extract_strided_slice %233 {offsets = [48, 0], sizes = [16, 8], strides = [1, 1]} : vector<64x8xf32> to vector<16x8xf32>
    %238 = tpu.concatenate %234, %235, %236, %237 in 1 : vector<16x8xf32>, vector<16x8xf32>, vector<16x8xf32>, vector<16x8xf32> -> vector<16x32xf32>
    %c40_67 = arith.constant 40 : index
    %c0_68 = arith.constant 0 : index
    %239 = vector.load %arg6[%c40_67, %c0_68] : memref<992x32xf32, #tpu.memory_space<vmem>>, vector<32x32xf32>
    %c72_69 = arith.constant 72 : index
    %c0_70 = arith.constant 0 : index
    %240 = vector.load %arg6[%c72_69, %c0_70] : memref<992x32xf32, #tpu.memory_space<vmem>>, vector<1x32xf32>
    %241 = arith.truncf %238 : vector<16x32xf32> to vector<16x32xbf16>
    %242 = arith.truncf %239 : vector<32x32xf32> to vector<32x32xbf16>
    %cst_71 = arith.constant dense<0.000000e+00> : vector<16x32xf32>
    %243 = tpu.matmul %241, %242, %cst_71 {dimension_numbers = #tpu.dot_dimension_numbers<[1], [0], [0], [1], [0, 0, 1, 1], [], []>} : vector<16x32xbf16>, vector<32x32xbf16>, vector<16x32xf32> -> vector<16x32xf32>
    %244 = vector.broadcast %240 : vector<1x32xf32> to vector<16x32xf32>
    %245 = arith.addf %243, %244 : vector<16x32xf32>
    %246 = arith.addf %245, %191 : vector<16x32xf32>
    %c256 = arith.constant 256 : index
    %c0_72 = arith.constant 0 : index
    %247 = vector.load %arg6[%c256, %c0_72] : memref<992x32xf32, #tpu.memory_space<vmem>>, vector<8x32xf32>
    %248 = vector.extract_strided_slice %247 {offsets = [0, 0], sizes = [1, 32], strides = [1, 1]} : vector<8x32xf32> to vector<1x32xf32>
    %249 = vector.extract_strided_slice %247 {offsets = [1, 0], sizes = [1, 32], strides = [1, 1]} : vector<8x32xf32> to vector<1x32xf32>
    %cst_73 = arith.constant dense<0.000000e+00> : vector<16xf32>
    %250 = vector.multi_reduction <add>, %246, %cst_73 [1] : vector<16x32xf32> to vector<16xf32>
    %251 = vector.shape_cast %250 : vector<16xf32> to vector<16x1xf32>
    %cst_74 = arith.constant 3.200000e+01 : f32
    %252 = vector.broadcast %cst_74 : f32 to vector<16x1xf32>
    %253 = arith.divf %251, %252 : vector<16x1xf32>
    %254 = vector.broadcast %253 : vector<16x1xf32> to vector<16x32xf32>
    %255 = arith.subf %246, %254 : vector<16x32xf32>
    %256 = arith.mulf %255, %255 : vector<16x32xf32>
    %cst_75 = arith.constant dense<0.000000e+00> : vector<16xf32>
    %257 = vector.multi_reduction <add>, %256, %cst_75 [1] : vector<16x32xf32> to vector<16xf32>
    %258 = vector.shape_cast %257 : vector<16xf32> to vector<16x1xf32>
    %cst_76 = arith.constant 3.200000e+01 : f32
    %259 = vector.broadcast %cst_76 : f32 to vector<16x1xf32>
    %260 = arith.divf %258, %259 : vector<16x1xf32>
    %261 = vector.broadcast %253 : vector<16x1xf32> to vector<16x32xf32>
    %262 = arith.subf %246, %261 : vector<16x32xf32>
    %cst_77 = arith.constant 9.99999974E-6 : f32
    %263 = vector.broadcast %cst_77 : f32 to vector<16x1xf32>
    %264 = arith.addf %260, %263 : vector<16x1xf32>
    %265 = math.rsqrt %264 : vector<16x1xf32>
    %266 = vector.broadcast %265 : vector<16x1xf32> to vector<16x32xf32>
    %267 = arith.mulf %262, %266 : vector<16x32xf32>
    %268 = vector.broadcast %248 : vector<1x32xf32> to vector<16x32xf32>
    %269 = arith.mulf %267, %268 : vector<16x32xf32>
    %270 = vector.broadcast %249 : vector<1x32xf32> to vector<16x32xf32>
    %271 = arith.addf %269, %270 : vector<16x32xf32>
    %c40_78 = arith.constant 40 : index
    %c0_79 = arith.constant 0 : index
    %272 = vector.load %arg5[%c40_78, %c0_79] : memref<200x128xf32, #tpu.memory_space<vmem>>, vector<32x128xf32>
    %c72_80 = arith.constant 72 : index
    %c0_81 = arith.constant 0 : index
    %273 = vector.load %arg5[%c72_80, %c0_81] : memref<200x128xf32, #tpu.memory_space<vmem>>, vector<1x128xf32>
    %c440 = arith.constant 440 : index
    %c0_82 = arith.constant 0 : index
    %274 = vector.load %arg6[%c440, %c0_82] : memref<992x32xf32, #tpu.memory_space<vmem>>, vector<128x32xf32>
    %c568 = arith.constant 568 : index
    %c0_83 = arith.constant 0 : index
    %275 = vector.load %arg6[%c568, %c0_83] : memref<992x32xf32, #tpu.memory_space<vmem>>, vector<1x32xf32>
    %276 = arith.truncf %271 : vector<16x32xf32> to vector<16x32xbf16>
    %277 = arith.truncf %272 : vector<32x128xf32> to vector<32x128xbf16>
    %cst_84 = arith.constant dense<0.000000e+00> : vector<16x128xf32>
    %278 = tpu.matmul %276, %277, %cst_84 {dimension_numbers = #tpu.dot_dimension_numbers<[1], [0], [0], [1], [0, 0, 1, 1], [], []>} : vector<16x32xbf16>, vector<32x128xbf16>, vector<16x128xf32> -> vector<16x128xf32>
    %279 = vector.broadcast %273 : vector<1x128xf32> to vector<16x128xf32>
    %280 = arith.addf %278, %279 : vector<16x128xf32>
    %cst_85 = arith.constant 0.000000e+00 : f32
    %281 = vector.broadcast %cst_85 : f32 to vector<16x128xf32>
    %282 = arith.maximumf %280, %281 : vector<16x128xf32>
    %283 = arith.truncf %282 : vector<16x128xf32> to vector<16x128xbf16>
    %284 = arith.truncf %274 : vector<128x32xf32> to vector<128x32xbf16>
    %cst_86 = arith.constant dense<0.000000e+00> : vector<16x32xf32>
    %285 = tpu.matmul %283, %284, %cst_86 {dimension_numbers = #tpu.dot_dimension_numbers<[1], [0], [0], [1], [0, 0, 1, 1], [], []>} : vector<16x128xbf16>, vector<128x32xbf16>, vector<16x32xf32> -> vector<16x32xf32>
    %286 = vector.broadcast %275 : vector<1x32xf32> to vector<16x32xf32>
    %287 = arith.addf %285, %286 : vector<16x32xf32>
    %288 = arith.addf %287, %271 : vector<16x32xf32>
    %c264 = arith.constant 264 : index
    %c0_87 = arith.constant 0 : index
    %289 = vector.load %arg6[%c264, %c0_87] : memref<992x32xf32, #tpu.memory_space<vmem>>, vector<8x32xf32>
    %290 = vector.extract_strided_slice %289 {offsets = [0, 0], sizes = [1, 32], strides = [1, 1]} : vector<8x32xf32> to vector<1x32xf32>
    %291 = vector.extract_strided_slice %289 {offsets = [1, 0], sizes = [1, 32], strides = [1, 1]} : vector<8x32xf32> to vector<1x32xf32>
    %cst_88 = arith.constant dense<0.000000e+00> : vector<16xf32>
    %292 = vector.multi_reduction <add>, %288, %cst_88 [1] : vector<16x32xf32> to vector<16xf32>
    %293 = vector.shape_cast %292 : vector<16xf32> to vector<16x1xf32>
    %cst_89 = arith.constant 3.200000e+01 : f32
    %294 = vector.broadcast %cst_89 : f32 to vector<16x1xf32>
    %295 = arith.divf %293, %294 : vector<16x1xf32>
    %296 = vector.broadcast %295 : vector<16x1xf32> to vector<16x32xf32>
    %297 = arith.subf %288, %296 : vector<16x32xf32>
    %298 = arith.mulf %297, %297 : vector<16x32xf32>
    %cst_90 = arith.constant dense<0.000000e+00> : vector<16xf32>
    %299 = vector.multi_reduction <add>, %298, %cst_90 [1] : vector<16x32xf32> to vector<16xf32>
    %300 = vector.shape_cast %299 : vector<16xf32> to vector<16x1xf32>
    %cst_91 = arith.constant 3.200000e+01 : f32
    %301 = vector.broadcast %cst_91 : f32 to vector<16x1xf32>
    %302 = arith.divf %300, %301 : vector<16x1xf32>
    %303 = vector.broadcast %295 : vector<16x1xf32> to vector<16x32xf32>
    %304 = arith.subf %288, %303 : vector<16x32xf32>
    %cst_92 = arith.constant 9.99999974E-6 : f32
    %305 = vector.broadcast %cst_92 : f32 to vector<16x1xf32>
    %306 = arith.addf %302, %305 : vector<16x1xf32>
    %307 = math.rsqrt %306 : vector<16x1xf32>
    %308 = vector.broadcast %307 : vector<16x1xf32> to vector<16x32xf32>
    %309 = arith.mulf %304, %308 : vector<16x32xf32>
    %310 = vector.broadcast %290 : vector<1x32xf32> to vector<16x32xf32>
    %311 = arith.mulf %309, %310 : vector<16x32xf32>
    %312 = vector.broadcast %291 : vector<1x32xf32> to vector<16x32xf32>
    %313 = arith.addf %311, %312 : vector<16x32xf32>
    %c80 = arith.constant 80 : index
    %c0_93 = arith.constant 0 : index
    %314 = vector.load %arg4[%c80, %c0_93] : memref<240x96xf32, #tpu.memory_space<vmem>>, vector<32x96xf32>
    %c112 = arith.constant 112 : index
    %c0_94 = arith.constant 0 : index
    %315 = vector.load %arg4[%c112, %c0_94] : memref<240x96xf32, #tpu.memory_space<vmem>>, vector<1x96xf32>
    %316 = arith.truncf %17 : vector<16x32xf32> to vector<16x32xbf16>
    %317 = arith.truncf %314 : vector<32x96xf32> to vector<32x96xbf16>
    %cst_95 = arith.constant dense<0.000000e+00> : vector<16x96xf32>
    %318 = tpu.matmul %316, %317, %cst_95 {dimension_numbers = #tpu.dot_dimension_numbers<[1], [0], [0], [1], [0, 0, 1, 1], [], []>} : vector<16x32xbf16>, vector<32x96xbf16>, vector<16x96xf32> -> vector<16x96xf32>
    %319 = vector.broadcast %315 : vector<1x96xf32> to vector<16x96xf32>
    %320 = arith.addf %318, %319 : vector<16x96xf32>
    %321 = vector.extract_strided_slice %320 {offsets = [0, 0], sizes = [16, 32], strides = [1, 1]} : vector<16x96xf32> to vector<16x32xf32>
    %322 = vector.extract_strided_slice %320 {offsets = [0, 32], sizes = [16, 32], strides = [1, 1]} : vector<16x96xf32> to vector<16x32xf32>
    %323 = vector.extract_strided_slice %320 {offsets = [0, 64], sizes = [16, 32], strides = [1, 1]} : vector<16x96xf32> to vector<16x32xf32>
    %324 = vector.extract_strided_slice %321 {offsets = [0, 0], sizes = [16, 8], strides = [1, 1]} : vector<16x32xf32> to vector<16x8xf32>
    %325 = vector.extract_strided_slice %321 {offsets = [0, 8], sizes = [16, 8], strides = [1, 1]} : vector<16x32xf32> to vector<16x8xf32>
    %326 = vector.extract_strided_slice %321 {offsets = [0, 16], sizes = [16, 8], strides = [1, 1]} : vector<16x32xf32> to vector<16x8xf32>
    %327 = vector.extract_strided_slice %321 {offsets = [0, 24], sizes = [16, 8], strides = [1, 1]} : vector<16x32xf32> to vector<16x8xf32>
    %328 = tpu.concatenate %324, %325, %326, %327 in 0 : vector<16x8xf32>, vector<16x8xf32>, vector<16x8xf32>, vector<16x8xf32> -> vector<64x8xf32>
    %329 = vector.extract_strided_slice %322 {offsets = [0, 0], sizes = [16, 8], strides = [1, 1]} : vector<16x32xf32> to vector<16x8xf32>
    %330 = vector.extract_strided_slice %322 {offsets = [0, 8], sizes = [16, 8], strides = [1, 1]} : vector<16x32xf32> to vector<16x8xf32>
    %331 = vector.extract_strided_slice %322 {offsets = [0, 16], sizes = [16, 8], strides = [1, 1]} : vector<16x32xf32> to vector<16x8xf32>
    %332 = vector.extract_strided_slice %322 {offsets = [0, 24], sizes = [16, 8], strides = [1, 1]} : vector<16x32xf32> to vector<16x8xf32>
    %333 = tpu.concatenate %329, %330, %331, %332 in 0 : vector<16x8xf32>, vector<16x8xf32>, vector<16x8xf32>, vector<16x8xf32> -> vector<64x8xf32>
    %334 = vector.extract_strided_slice %323 {offsets = [0, 0], sizes = [16, 8], strides = [1, 1]} : vector<16x32xf32> to vector<16x8xf32>
    %335 = vector.extract_strided_slice %323 {offsets = [0, 8], sizes = [16, 8], strides = [1, 1]} : vector<16x32xf32> to vector<16x8xf32>
    %336 = vector.extract_strided_slice %323 {offsets = [0, 16], sizes = [16, 8], strides = [1, 1]} : vector<16x32xf32> to vector<16x8xf32>
    %337 = vector.extract_strided_slice %323 {offsets = [0, 24], sizes = [16, 8], strides = [1, 1]} : vector<16x32xf32> to vector<16x8xf32>
    %338 = tpu.concatenate %334, %335, %336, %337 in 0 : vector<16x8xf32>, vector<16x8xf32>, vector<16x8xf32>, vector<16x8xf32> -> vector<64x8xf32>
    %339 = arith.truncf %328 : vector<64x8xf32> to vector<64x8xbf16>
    %340 = arith.truncf %333 : vector<64x8xf32> to vector<64x8xbf16>
    %cst_96 = arith.constant dense<0.000000e+00> : vector<64x64xf32>
    %341 = tpu.matmul %339, %340, %cst_96 {dimension_numbers = #tpu.dot_dimension_numbers<[1], [1], [0], [0], [0, 0, 1, 0], [], []>} : vector<64x8xbf16>, vector<64x8xbf16>, vector<64x64xf32> -> vector<64x64xf32>
    %342 = arith.addf %341, %62 : vector<64x64xf32>
    %cst_97 = arith.constant dense<0xFF800000> : vector<64xf32>
    %343 = vector.multi_reduction <maximumf>, %342, %cst_97 [1] : vector<64x64xf32> to vector<64xf32>
    %344 = vector.shape_cast %343 : vector<64xf32> to vector<64x1xf32>
    %345 = vector.broadcast %344 : vector<64x1xf32> to vector<64x64xf32>
    %346 = arith.subf %342, %345 : vector<64x64xf32>
    %347 = math.exp %346 : vector<64x64xf32>
    %cst_98 = arith.constant dense<0.000000e+00> : vector<64xf32>
    %348 = vector.multi_reduction <add>, %347, %cst_98 [1] : vector<64x64xf32> to vector<64xf32>
    %349 = vector.shape_cast %348 : vector<64xf32> to vector<64x1xf32>
    %350 = tpu.reciprocal %349 {approx = true} : vector<64x1xf32> -> vector<64x1xf32>
    %351 = vector.broadcast %350 : vector<64x1xf32> to vector<64x64xf32>
    %352 = arith.mulf %347, %351 : vector<64x64xf32>
    %353 = arith.truncf %352 : vector<64x64xf32> to vector<64x64xbf16>
    %354 = arith.truncf %338 : vector<64x8xf32> to vector<64x8xbf16>
    %cst_99 = arith.constant dense<0.000000e+00> : vector<64x8xf32>
    %355 = tpu.matmul %353, %354, %cst_99 {dimension_numbers = #tpu.dot_dimension_numbers<[1], [0], [0], [1], [0, 0, 1, 1], [], []>} : vector<64x64xbf16>, vector<64x8xbf16>, vector<64x8xf32> -> vector<64x8xf32>
    %356 = vector.extract_strided_slice %355 {offsets = [0, 0], sizes = [16, 8], strides = [1, 1]} : vector<64x8xf32> to vector<16x8xf32>
    %357 = vector.extract_strided_slice %355 {offsets = [16, 0], sizes = [16, 8], strides = [1, 1]} : vector<64x8xf32> to vector<16x8xf32>
    %358 = vector.extract_strided_slice %355 {offsets = [32, 0], sizes = [16, 8], strides = [1, 1]} : vector<64x8xf32> to vector<16x8xf32>
    %359 = vector.extract_strided_slice %355 {offsets = [48, 0], sizes = [16, 8], strides = [1, 1]} : vector<64x8xf32> to vector<16x8xf32>
    %360 = tpu.concatenate %356, %357, %358, %359 in 1 : vector<16x8xf32>, vector<16x8xf32>, vector<16x8xf32>, vector<16x8xf32> -> vector<16x32xf32>
    %c80_100 = arith.constant 80 : index
    %c0_101 = arith.constant 0 : index
    %361 = vector.load %arg6[%c80_100, %c0_101] : memref<992x32xf32, #tpu.memory_space<vmem>>, vector<32x32xf32>
    %c112_102 = arith.constant 112 : index
    %c0_103 = arith.constant 0 : index
    %362 = vector.load %arg6[%c112_102, %c0_103] : memref<992x32xf32, #tpu.memory_space<vmem>>, vector<1x32xf32>
    %363 = arith.truncf %360 : vector<16x32xf32> to vector<16x32xbf16>
    %364 = arith.truncf %361 : vector<32x32xf32> to vector<32x32xbf16>
    %cst_104 = arith.constant dense<0.000000e+00> : vector<16x32xf32>
    %365 = tpu.matmul %363, %364, %cst_104 {dimension_numbers = #tpu.dot_dimension_numbers<[1], [0], [0], [1], [0, 0, 1, 1], [], []>} : vector<16x32xbf16>, vector<32x32xbf16>, vector<16x32xf32> -> vector<16x32xf32>
    %366 = vector.broadcast %362 : vector<1x32xf32> to vector<16x32xf32>
    %367 = arith.addf %365, %366 : vector<16x32xf32>
    %368 = arith.addf %367, %17 : vector<16x32xf32>
    %c272 = arith.constant 272 : index
    %c0_105 = arith.constant 0 : index
    %369 = vector.load %arg6[%c272, %c0_105] : memref<992x32xf32, #tpu.memory_space<vmem>>, vector<8x32xf32>
    %370 = vector.extract_strided_slice %369 {offsets = [0, 0], sizes = [1, 32], strides = [1, 1]} : vector<8x32xf32> to vector<1x32xf32>
    %371 = vector.extract_strided_slice %369 {offsets = [1, 0], sizes = [1, 32], strides = [1, 1]} : vector<8x32xf32> to vector<1x32xf32>
    %cst_106 = arith.constant dense<0.000000e+00> : vector<16xf32>
    %372 = vector.multi_reduction <add>, %368, %cst_106 [1] : vector<16x32xf32> to vector<16xf32>
    %373 = vector.shape_cast %372 : vector<16xf32> to vector<16x1xf32>
    %cst_107 = arith.constant 3.200000e+01 : f32
    %374 = vector.broadcast %cst_107 : f32 to vector<16x1xf32>
    %375 = arith.divf %373, %374 : vector<16x1xf32>
    %376 = vector.broadcast %375 : vector<16x1xf32> to vector<16x32xf32>
    %377 = arith.subf %368, %376 : vector<16x32xf32>
    %378 = arith.mulf %377, %377 : vector<16x32xf32>
    %cst_108 = arith.constant dense<0.000000e+00> : vector<16xf32>
    %379 = vector.multi_reduction <add>, %378, %cst_108 [1] : vector<16x32xf32> to vector<16xf32>
    %380 = vector.shape_cast %379 : vector<16xf32> to vector<16x1xf32>
    %cst_109 = arith.constant 3.200000e+01 : f32
    %381 = vector.broadcast %cst_109 : f32 to vector<16x1xf32>
    %382 = arith.divf %380, %381 : vector<16x1xf32>
    %383 = vector.broadcast %375 : vector<16x1xf32> to vector<16x32xf32>
    %384 = arith.subf %368, %383 : vector<16x32xf32>
    %cst_110 = arith.constant 9.99999974E-6 : f32
    %385 = vector.broadcast %cst_110 : f32 to vector<16x1xf32>
    %386 = arith.addf %382, %385 : vector<16x1xf32>
    %387 = math.rsqrt %386 : vector<16x1xf32>
    %388 = vector.broadcast %387 : vector<16x1xf32> to vector<16x32xf32>
    %389 = arith.mulf %384, %388 : vector<16x32xf32>
    %390 = vector.broadcast %370 : vector<1x32xf32> to vector<16x32xf32>
    %391 = arith.mulf %389, %390 : vector<16x32xf32>
    %392 = vector.broadcast %371 : vector<1x32xf32> to vector<16x32xf32>
    %393 = arith.addf %391, %392 : vector<16x32xf32>
    %c120 = arith.constant 120 : index
    %c0_111 = arith.constant 0 : index
    %394 = vector.load %arg4[%c120, %c0_111] : memref<240x96xf32, #tpu.memory_space<vmem>>, vector<32x32xf32>
    %c152 = arith.constant 152 : index
    %c0_112 = arith.constant 0 : index
    %395 = vector.load %arg4[%c152, %c0_112] : memref<240x96xf32, #tpu.memory_space<vmem>>, vector<1x32xf32>
    %c120_113 = arith.constant 120 : index
    %c32_114 = arith.constant 32 : index
    %396 = vector.load %arg4[%c120_113, %c32_114] : memref<240x96xf32, #tpu.memory_space<vmem>>, vector<32x64xf32>
    %c152_115 = arith.constant 152 : index
    %c32_116 = arith.constant 32 : index
    %397 = vector.load %arg4[%c152_115, %c32_116] : memref<240x96xf32, #tpu.memory_space<vmem>>, vector<1x64xf32>
    %398 = arith.truncf %393 : vector<16x32xf32> to vector<16x32xbf16>
    %399 = arith.truncf %394 : vector<32x32xf32> to vector<32x32xbf16>
    %cst_117 = arith.constant dense<0.000000e+00> : vector<16x32xf32>
    %400 = tpu.matmul %398, %399, %cst_117 {dimension_numbers = #tpu.dot_dimension_numbers<[1], [0], [0], [1], [0, 0, 1, 1], [], []>} : vector<16x32xbf16>, vector<32x32xbf16>, vector<16x32xf32> -> vector<16x32xf32>
    %401 = vector.broadcast %395 : vector<1x32xf32> to vector<16x32xf32>
    %402 = arith.addf %400, %401 : vector<16x32xf32>
    %403 = arith.truncf %313 : vector<16x32xf32> to vector<16x32xbf16>
    %404 = arith.truncf %396 : vector<32x64xf32> to vector<32x64xbf16>
    %cst_118 = arith.constant dense<0.000000e+00> : vector<16x64xf32>
    %405 = tpu.matmul %403, %404, %cst_118 {dimension_numbers = #tpu.dot_dimension_numbers<[1], [0], [0], [1], [0, 0, 1, 1], [], []>} : vector<16x32xbf16>, vector<32x64xbf16>, vector<16x64xf32> -> vector<16x64xf32>
    %406 = vector.broadcast %397 : vector<1x64xf32> to vector<16x64xf32>
    %407 = arith.addf %405, %406 : vector<16x64xf32>
    %408 = vector.extract_strided_slice %407 {offsets = [0, 0], sizes = [16, 32], strides = [1, 1]} : vector<16x64xf32> to vector<16x32xf32>
    %409 = vector.extract_strided_slice %407 {offsets = [0, 32], sizes = [16, 32], strides = [1, 1]} : vector<16x64xf32> to vector<16x32xf32>
    %410 = vector.extract_strided_slice %402 {offsets = [0, 0], sizes = [16, 8], strides = [1, 1]} : vector<16x32xf32> to vector<16x8xf32>
    %411 = vector.extract_strided_slice %402 {offsets = [0, 8], sizes = [16, 8], strides = [1, 1]} : vector<16x32xf32> to vector<16x8xf32>
    %412 = vector.extract_strided_slice %402 {offsets = [0, 16], sizes = [16, 8], strides = [1, 1]} : vector<16x32xf32> to vector<16x8xf32>
    %413 = vector.extract_strided_slice %402 {offsets = [0, 24], sizes = [16, 8], strides = [1, 1]} : vector<16x32xf32> to vector<16x8xf32>
    %414 = tpu.concatenate %410, %411, %412, %413 in 0 : vector<16x8xf32>, vector<16x8xf32>, vector<16x8xf32>, vector<16x8xf32> -> vector<64x8xf32>
    %415 = vector.extract_strided_slice %408 {offsets = [0, 0], sizes = [16, 8], strides = [1, 1]} : vector<16x32xf32> to vector<16x8xf32>
    %416 = vector.extract_strided_slice %408 {offsets = [0, 8], sizes = [16, 8], strides = [1, 1]} : vector<16x32xf32> to vector<16x8xf32>
    %417 = vector.extract_strided_slice %408 {offsets = [0, 16], sizes = [16, 8], strides = [1, 1]} : vector<16x32xf32> to vector<16x8xf32>
    %418 = vector.extract_strided_slice %408 {offsets = [0, 24], sizes = [16, 8], strides = [1, 1]} : vector<16x32xf32> to vector<16x8xf32>
    %419 = tpu.concatenate %415, %416, %417, %418 in 0 : vector<16x8xf32>, vector<16x8xf32>, vector<16x8xf32>, vector<16x8xf32> -> vector<64x8xf32>
    %420 = vector.extract_strided_slice %409 {offsets = [0, 0], sizes = [16, 8], strides = [1, 1]} : vector<16x32xf32> to vector<16x8xf32>
    %421 = vector.extract_strided_slice %409 {offsets = [0, 8], sizes = [16, 8], strides = [1, 1]} : vector<16x32xf32> to vector<16x8xf32>
    %422 = vector.extract_strided_slice %409 {offsets = [0, 16], sizes = [16, 8], strides = [1, 1]} : vector<16x32xf32> to vector<16x8xf32>
    %423 = vector.extract_strided_slice %409 {offsets = [0, 24], sizes = [16, 8], strides = [1, 1]} : vector<16x32xf32> to vector<16x8xf32>
    %424 = tpu.concatenate %420, %421, %422, %423 in 0 : vector<16x8xf32>, vector<16x8xf32>, vector<16x8xf32>, vector<16x8xf32> -> vector<64x8xf32>
    %425 = arith.truncf %414 : vector<64x8xf32> to vector<64x8xbf16>
    %426 = arith.truncf %419 : vector<64x8xf32> to vector<64x8xbf16>
    %cst_119 = arith.constant dense<0.000000e+00> : vector<64x64xf32>
    %427 = tpu.matmul %425, %426, %cst_119 {dimension_numbers = #tpu.dot_dimension_numbers<[1], [1], [0], [0], [0, 0, 1, 0], [], []>} : vector<64x8xbf16>, vector<64x8xbf16>, vector<64x64xf32> -> vector<64x64xf32>
    %428 = arith.addf %427, %69 : vector<64x64xf32>
    %cst_120 = arith.constant dense<0xFF800000> : vector<64xf32>
    %429 = vector.multi_reduction <maximumf>, %428, %cst_120 [1] : vector<64x64xf32> to vector<64xf32>
    %430 = vector.shape_cast %429 : vector<64xf32> to vector<64x1xf32>
    %431 = vector.broadcast %430 : vector<64x1xf32> to vector<64x64xf32>
    %432 = arith.subf %428, %431 : vector<64x64xf32>
    %433 = math.exp %432 : vector<64x64xf32>
    %cst_121 = arith.constant dense<0.000000e+00> : vector<64xf32>
    %434 = vector.multi_reduction <add>, %433, %cst_121 [1] : vector<64x64xf32> to vector<64xf32>
    %435 = vector.shape_cast %434 : vector<64xf32> to vector<64x1xf32>
    %436 = tpu.reciprocal %435 {approx = true} : vector<64x1xf32> -> vector<64x1xf32>
    %437 = vector.broadcast %436 : vector<64x1xf32> to vector<64x64xf32>
    %438 = arith.mulf %433, %437 : vector<64x64xf32>
    %439 = arith.truncf %438 : vector<64x64xf32> to vector<64x64xbf16>
    %440 = arith.truncf %424 : vector<64x8xf32> to vector<64x8xbf16>
    %cst_122 = arith.constant dense<0.000000e+00> : vector<64x8xf32>
    %441 = tpu.matmul %439, %440, %cst_122 {dimension_numbers = #tpu.dot_dimension_numbers<[1], [0], [0], [1], [0, 0, 1, 1], [], []>} : vector<64x64xbf16>, vector<64x8xbf16>, vector<64x8xf32> -> vector<64x8xf32>
    %442 = vector.extract_strided_slice %441 {offsets = [0, 0], sizes = [16, 8], strides = [1, 1]} : vector<64x8xf32> to vector<16x8xf32>
    %443 = vector.extract_strided_slice %441 {offsets = [16, 0], sizes = [16, 8], strides = [1, 1]} : vector<64x8xf32> to vector<16x8xf32>
    %444 = vector.extract_strided_slice %441 {offsets = [32, 0], sizes = [16, 8], strides = [1, 1]} : vector<64x8xf32> to vector<16x8xf32>
    %445 = vector.extract_strided_slice %441 {offsets = [48, 0], sizes = [16, 8], strides = [1, 1]} : vector<64x8xf32> to vector<16x8xf32>
    %446 = tpu.concatenate %442, %443, %444, %445 in 1 : vector<16x8xf32>, vector<16x8xf32>, vector<16x8xf32>, vector<16x8xf32> -> vector<16x32xf32>
    %c120_123 = arith.constant 120 : index
    %c0_124 = arith.constant 0 : index
    %447 = vector.load %arg6[%c120_123, %c0_124] : memref<992x32xf32, #tpu.memory_space<vmem>>, vector<32x32xf32>
    %c152_125 = arith.constant 152 : index
    %c0_126 = arith.constant 0 : index
    %448 = vector.load %arg6[%c152_125, %c0_126] : memref<992x32xf32, #tpu.memory_space<vmem>>, vector<1x32xf32>
    %449 = arith.truncf %446 : vector<16x32xf32> to vector<16x32xbf16>
    %450 = arith.truncf %447 : vector<32x32xf32> to vector<32x32xbf16>
    %cst_127 = arith.constant dense<0.000000e+00> : vector<16x32xf32>
    %451 = tpu.matmul %449, %450, %cst_127 {dimension_numbers = #tpu.dot_dimension_numbers<[1], [0], [0], [1], [0, 0, 1, 1], [], []>} : vector<16x32xbf16>, vector<32x32xbf16>, vector<16x32xf32> -> vector<16x32xf32>
    %452 = vector.broadcast %448 : vector<1x32xf32> to vector<16x32xf32>
    %453 = arith.addf %451, %452 : vector<16x32xf32>
    %454 = arith.addf %453, %393 : vector<16x32xf32>
    %c280 = arith.constant 280 : index
    %c0_128 = arith.constant 0 : index
    %455 = vector.load %arg6[%c280, %c0_128] : memref<992x32xf32, #tpu.memory_space<vmem>>, vector<8x32xf32>
    %456 = vector.extract_strided_slice %455 {offsets = [0, 0], sizes = [1, 32], strides = [1, 1]} : vector<8x32xf32> to vector<1x32xf32>
    %457 = vector.extract_strided_slice %455 {offsets = [1, 0], sizes = [1, 32], strides = [1, 1]} : vector<8x32xf32> to vector<1x32xf32>
    %cst_129 = arith.constant dense<0.000000e+00> : vector<16xf32>
    %458 = vector.multi_reduction <add>, %454, %cst_129 [1] : vector<16x32xf32> to vector<16xf32>
    %459 = vector.shape_cast %458 : vector<16xf32> to vector<16x1xf32>
    %cst_130 = arith.constant 3.200000e+01 : f32
    %460 = vector.broadcast %cst_130 : f32 to vector<16x1xf32>
    %461 = arith.divf %459, %460 : vector<16x1xf32>
    %462 = vector.broadcast %461 : vector<16x1xf32> to vector<16x32xf32>
    %463 = arith.subf %454, %462 : vector<16x32xf32>
    %464 = arith.mulf %463, %463 : vector<16x32xf32>
    %cst_131 = arith.constant dense<0.000000e+00> : vector<16xf32>
    %465 = vector.multi_reduction <add>, %464, %cst_131 [1] : vector<16x32xf32> to vector<16xf32>
    %466 = vector.shape_cast %465 : vector<16xf32> to vector<16x1xf32>
    %cst_132 = arith.constant 3.200000e+01 : f32
    %467 = vector.broadcast %cst_132 : f32 to vector<16x1xf32>
    %468 = arith.divf %466, %467 : vector<16x1xf32>
    %469 = vector.broadcast %461 : vector<16x1xf32> to vector<16x32xf32>
    %470 = arith.subf %454, %469 : vector<16x32xf32>
    %cst_133 = arith.constant 9.99999974E-6 : f32
    %471 = vector.broadcast %cst_133 : f32 to vector<16x1xf32>
    %472 = arith.addf %468, %471 : vector<16x1xf32>
    %473 = math.rsqrt %472 : vector<16x1xf32>
    %474 = vector.broadcast %473 : vector<16x1xf32> to vector<16x32xf32>
    %475 = arith.mulf %470, %474 : vector<16x32xf32>
    %476 = vector.broadcast %456 : vector<1x32xf32> to vector<16x32xf32>
    %477 = arith.mulf %475, %476 : vector<16x32xf32>
    %478 = vector.broadcast %457 : vector<1x32xf32> to vector<16x32xf32>
    %479 = arith.addf %477, %478 : vector<16x32xf32>
    %c80_134 = arith.constant 80 : index
    %c0_135 = arith.constant 0 : index
    %480 = vector.load %arg5[%c80_134, %c0_135] : memref<200x128xf32, #tpu.memory_space<vmem>>, vector<32x128xf32>
    %c112_136 = arith.constant 112 : index
    %c0_137 = arith.constant 0 : index
    %481 = vector.load %arg5[%c112_136, %c0_137] : memref<200x128xf32, #tpu.memory_space<vmem>>, vector<1x128xf32>
    %c576 = arith.constant 576 : index
    %c0_138 = arith.constant 0 : index
    %482 = vector.load %arg6[%c576, %c0_138] : memref<992x32xf32, #tpu.memory_space<vmem>>, vector<128x32xf32>
    %c704 = arith.constant 704 : index
    %c0_139 = arith.constant 0 : index
    %483 = vector.load %arg6[%c704, %c0_139] : memref<992x32xf32, #tpu.memory_space<vmem>>, vector<1x32xf32>
    %484 = arith.truncf %479 : vector<16x32xf32> to vector<16x32xbf16>
    %485 = arith.truncf %480 : vector<32x128xf32> to vector<32x128xbf16>
    %cst_140 = arith.constant dense<0.000000e+00> : vector<16x128xf32>
    %486 = tpu.matmul %484, %485, %cst_140 {dimension_numbers = #tpu.dot_dimension_numbers<[1], [0], [0], [1], [0, 0, 1, 1], [], []>} : vector<16x32xbf16>, vector<32x128xbf16>, vector<16x128xf32> -> vector<16x128xf32>
    %487 = vector.broadcast %481 : vector<1x128xf32> to vector<16x128xf32>
    %488 = arith.addf %486, %487 : vector<16x128xf32>
    %cst_141 = arith.constant 0.000000e+00 : f32
    %489 = vector.broadcast %cst_141 : f32 to vector<16x128xf32>
    %490 = arith.maximumf %488, %489 : vector<16x128xf32>
    %491 = arith.truncf %490 : vector<16x128xf32> to vector<16x128xbf16>
    %492 = arith.truncf %482 : vector<128x32xf32> to vector<128x32xbf16>
    %cst_142 = arith.constant dense<0.000000e+00> : vector<16x32xf32>
    %493 = tpu.matmul %491, %492, %cst_142 {dimension_numbers = #tpu.dot_dimension_numbers<[1], [0], [0], [1], [0, 0, 1, 1], [], []>} : vector<16x128xbf16>, vector<128x32xbf16>, vector<16x32xf32> -> vector<16x32xf32>
    %494 = vector.broadcast %483 : vector<1x32xf32> to vector<16x32xf32>
    %495 = arith.addf %493, %494 : vector<16x32xf32>
    %496 = arith.addf %495, %479 : vector<16x32xf32>
    %c160 = arith.constant 160 : index
    %c0_143 = arith.constant 0 : index
    %497 = vector.load %arg4[%c160, %c0_143] : memref<240x96xf32, #tpu.memory_space<vmem>>, vector<32x96xf32>
    %c192 = arith.constant 192 : index
    %c0_144 = arith.constant 0 : index
    %498 = vector.load %arg4[%c192, %c0_144] : memref<240x96xf32, #tpu.memory_space<vmem>>, vector<1x96xf32>
    %499 = arith.truncf %496 : vector<16x32xf32> to vector<16x32xbf16>
    %500 = arith.truncf %497 : vector<32x96xf32> to vector<32x96xbf16>
    %cst_145 = arith.constant dense<0.000000e+00> : vector<16x96xf32>
    %501 = tpu.matmul %499, %500, %cst_145 {dimension_numbers = #tpu.dot_dimension_numbers<[1], [0], [0], [1], [0, 0, 1, 1], [], []>} : vector<16x32xbf16>, vector<32x96xbf16>, vector<16x96xf32> -> vector<16x96xf32>
    %502 = vector.broadcast %498 : vector<1x96xf32> to vector<16x96xf32>
    %503 = arith.addf %501, %502 : vector<16x96xf32>
    %504 = vector.extract_strided_slice %503 {offsets = [0, 0], sizes = [16, 32], strides = [1, 1]} : vector<16x96xf32> to vector<16x32xf32>
    %505 = vector.extract_strided_slice %503 {offsets = [0, 32], sizes = [16, 32], strides = [1, 1]} : vector<16x96xf32> to vector<16x32xf32>
    %506 = vector.extract_strided_slice %503 {offsets = [0, 64], sizes = [16, 32], strides = [1, 1]} : vector<16x96xf32> to vector<16x32xf32>
    %507 = vector.extract_strided_slice %504 {offsets = [0, 0], sizes = [16, 8], strides = [1, 1]} : vector<16x32xf32> to vector<16x8xf32>
    %508 = vector.extract_strided_slice %504 {offsets = [0, 8], sizes = [16, 8], strides = [1, 1]} : vector<16x32xf32> to vector<16x8xf32>
    %509 = vector.extract_strided_slice %504 {offsets = [0, 16], sizes = [16, 8], strides = [1, 1]} : vector<16x32xf32> to vector<16x8xf32>
    %510 = vector.extract_strided_slice %504 {offsets = [0, 24], sizes = [16, 8], strides = [1, 1]} : vector<16x32xf32> to vector<16x8xf32>
    %511 = tpu.concatenate %507, %508, %509, %510 in 0 : vector<16x8xf32>, vector<16x8xf32>, vector<16x8xf32>, vector<16x8xf32> -> vector<64x8xf32>
    %512 = vector.extract_strided_slice %505 {offsets = [0, 0], sizes = [16, 8], strides = [1, 1]} : vector<16x32xf32> to vector<16x8xf32>
    %513 = vector.extract_strided_slice %505 {offsets = [0, 8], sizes = [16, 8], strides = [1, 1]} : vector<16x32xf32> to vector<16x8xf32>
    %514 = vector.extract_strided_slice %505 {offsets = [0, 16], sizes = [16, 8], strides = [1, 1]} : vector<16x32xf32> to vector<16x8xf32>
    %515 = vector.extract_strided_slice %505 {offsets = [0, 24], sizes = [16, 8], strides = [1, 1]} : vector<16x32xf32> to vector<16x8xf32>
    %516 = tpu.concatenate %512, %513, %514, %515 in 0 : vector<16x8xf32>, vector<16x8xf32>, vector<16x8xf32>, vector<16x8xf32> -> vector<64x8xf32>
    %517 = vector.extract_strided_slice %506 {offsets = [0, 0], sizes = [16, 8], strides = [1, 1]} : vector<16x32xf32> to vector<16x8xf32>
    %518 = vector.extract_strided_slice %506 {offsets = [0, 8], sizes = [16, 8], strides = [1, 1]} : vector<16x32xf32> to vector<16x8xf32>
    %519 = vector.extract_strided_slice %506 {offsets = [0, 16], sizes = [16, 8], strides = [1, 1]} : vector<16x32xf32> to vector<16x8xf32>
    %520 = vector.extract_strided_slice %506 {offsets = [0, 24], sizes = [16, 8], strides = [1, 1]} : vector<16x32xf32> to vector<16x8xf32>
    %521 = tpu.concatenate %517, %518, %519, %520 in 0 : vector<16x8xf32>, vector<16x8xf32>, vector<16x8xf32>, vector<16x8xf32> -> vector<64x8xf32>
    %522 = arith.truncf %511 : vector<64x8xf32> to vector<64x8xbf16>
    %523 = arith.truncf %516 : vector<64x8xf32> to vector<64x8xbf16>
    %cst_146 = arith.constant dense<0.000000e+00> : vector<64x64xf32>
    %524 = tpu.matmul %522, %523, %cst_146 {dimension_numbers = #tpu.dot_dimension_numbers<[1], [1], [0], [0], [0, 0, 1, 0], [], []>} : vector<64x8xbf16>, vector<64x8xbf16>, vector<64x64xf32> -> vector<64x64xf32>
    %525 = arith.addf %524, %62 : vector<64x64xf32>
    %cst_147 = arith.constant dense<0xFF800000> : vector<64xf32>
    %526 = vector.multi_reduction <maximumf>, %525, %cst_147 [1] : vector<64x64xf32> to vector<64xf32>
    %527 = vector.shape_cast %526 : vector<64xf32> to vector<64x1xf32>
    %528 = vector.broadcast %527 : vector<64x1xf32> to vector<64x64xf32>
    %529 = arith.subf %525, %528 : vector<64x64xf32>
    %530 = math.exp %529 : vector<64x64xf32>
    %cst_148 = arith.constant dense<0.000000e+00> : vector<64xf32>
    %531 = vector.multi_reduction <add>, %530, %cst_148 [1] : vector<64x64xf32> to vector<64xf32>
    %532 = vector.shape_cast %531 : vector<64xf32> to vector<64x1xf32>
    %533 = tpu.reciprocal %532 {approx = true} : vector<64x1xf32> -> vector<64x1xf32>
    %534 = vector.broadcast %533 : vector<64x1xf32> to vector<64x64xf32>
    %535 = arith.mulf %530, %534 : vector<64x64xf32>
    %536 = arith.truncf %535 : vector<64x64xf32> to vector<64x64xbf16>
    %537 = arith.truncf %521 : vector<64x8xf32> to vector<64x8xbf16>
    %cst_149 = arith.constant dense<0.000000e+00> : vector<64x8xf32>
    %538 = tpu.matmul %536, %537, %cst_149 {dimension_numbers = #tpu.dot_dimension_numbers<[1], [0], [0], [1], [0, 0, 1, 1], [], []>} : vector<64x64xbf16>, vector<64x8xbf16>, vector<64x8xf32> -> vector<64x8xf32>
    %539 = vector.extract_strided_slice %538 {offsets = [0, 0], sizes = [16, 8], strides = [1, 1]} : vector<64x8xf32> to vector<16x8xf32>
    %540 = vector.extract_strided_slice %538 {offsets = [16, 0], sizes = [16, 8], strides = [1, 1]} : vector<64x8xf32> to vector<16x8xf32>
    %541 = vector.extract_strided_slice %538 {offsets = [32, 0], sizes = [16, 8], strides = [1, 1]} : vector<64x8xf32> to vector<16x8xf32>
    %542 = vector.extract_strided_slice %538 {offsets = [48, 0], sizes = [16, 8], strides = [1, 1]} : vector<64x8xf32> to vector<16x8xf32>
    %543 = tpu.concatenate %539, %540, %541, %542 in 1 : vector<16x8xf32>, vector<16x8xf32>, vector<16x8xf32>, vector<16x8xf32> -> vector<16x32xf32>
    %c160_150 = arith.constant 160 : index
    %c0_151 = arith.constant 0 : index
    %544 = vector.load %arg6[%c160_150, %c0_151] : memref<992x32xf32, #tpu.memory_space<vmem>>, vector<32x32xf32>
    %c192_152 = arith.constant 192 : index
    %c0_153 = arith.constant 0 : index
    %545 = vector.load %arg6[%c192_152, %c0_153] : memref<992x32xf32, #tpu.memory_space<vmem>>, vector<1x32xf32>
    %546 = arith.truncf %543 : vector<16x32xf32> to vector<16x32xbf16>
    %547 = arith.truncf %544 : vector<32x32xf32> to vector<32x32xbf16>
    %cst_154 = arith.constant dense<0.000000e+00> : vector<16x32xf32>
    %548 = tpu.matmul %546, %547, %cst_154 {dimension_numbers = #tpu.dot_dimension_numbers<[1], [0], [0], [1], [0, 0, 1, 1], [], []>} : vector<16x32xbf16>, vector<32x32xbf16>, vector<16x32xf32> -> vector<16x32xf32>
    %549 = vector.broadcast %545 : vector<1x32xf32> to vector<16x32xf32>
    %550 = arith.addf %548, %549 : vector<16x32xf32>
    %551 = arith.addf %550, %496 : vector<16x32xf32>
    %c288 = arith.constant 288 : index
    %c0_155 = arith.constant 0 : index
    %552 = vector.load %arg6[%c288, %c0_155] : memref<992x32xf32, #tpu.memory_space<vmem>>, vector<8x32xf32>
    %553 = vector.extract_strided_slice %552 {offsets = [0, 0], sizes = [1, 32], strides = [1, 1]} : vector<8x32xf32> to vector<1x32xf32>
    %554 = vector.extract_strided_slice %552 {offsets = [1, 0], sizes = [1, 32], strides = [1, 1]} : vector<8x32xf32> to vector<1x32xf32>
    %cst_156 = arith.constant dense<0.000000e+00> : vector<16xf32>
    %555 = vector.multi_reduction <add>, %551, %cst_156 [1] : vector<16x32xf32> to vector<16xf32>
    %556 = vector.shape_cast %555 : vector<16xf32> to vector<16x1xf32>
    %cst_157 = arith.constant 3.200000e+01 : f32
    %557 = vector.broadcast %cst_157 : f32 to vector<16x1xf32>
    %558 = arith.divf %556, %557 : vector<16x1xf32>
    %559 = vector.broadcast %558 : vector<16x1xf32> to vector<16x32xf32>
    %560 = arith.subf %551, %559 : vector<16x32xf32>
    %561 = arith.mulf %560, %560 : vector<16x32xf32>
    %cst_158 = arith.constant dense<0.000000e+00> : vector<16xf32>
    %562 = vector.multi_reduction <add>, %561, %cst_158 [1] : vector<16x32xf32> to vector<16xf32>
    %563 = vector.shape_cast %562 : vector<16xf32> to vector<16x1xf32>
    %cst_159 = arith.constant 3.200000e+01 : f32
    %564 = vector.broadcast %cst_159 : f32 to vector<16x1xf32>
    %565 = arith.divf %563, %564 : vector<16x1xf32>
    %566 = vector.broadcast %558 : vector<16x1xf32> to vector<16x32xf32>
    %567 = arith.subf %551, %566 : vector<16x32xf32>
    %cst_160 = arith.constant 9.99999974E-6 : f32
    %568 = vector.broadcast %cst_160 : f32 to vector<16x1xf32>
    %569 = arith.addf %565, %568 : vector<16x1xf32>
    %570 = math.rsqrt %569 : vector<16x1xf32>
    %571 = vector.broadcast %570 : vector<16x1xf32> to vector<16x32xf32>
    %572 = arith.mulf %567, %571 : vector<16x32xf32>
    %573 = vector.broadcast %553 : vector<1x32xf32> to vector<16x32xf32>
    %574 = arith.mulf %572, %573 : vector<16x32xf32>
    %575 = vector.broadcast %554 : vector<1x32xf32> to vector<16x32xf32>
    %576 = arith.addf %574, %575 : vector<16x32xf32>
    %c200 = arith.constant 200 : index
    %c0_161 = arith.constant 0 : index
    %577 = vector.load %arg4[%c200, %c0_161] : memref<240x96xf32, #tpu.memory_space<vmem>>, vector<32x32xf32>
    %c232 = arith.constant 232 : index
    %c0_162 = arith.constant 0 : index
    %578 = vector.load %arg4[%c232, %c0_162] : memref<240x96xf32, #tpu.memory_space<vmem>>, vector<1x32xf32>
    %c200_163 = arith.constant 200 : index
    %c32_164 = arith.constant 32 : index
    %579 = vector.load %arg4[%c200_163, %c32_164] : memref<240x96xf32, #tpu.memory_space<vmem>>, vector<32x64xf32>
    %c232_165 = arith.constant 232 : index
    %c32_166 = arith.constant 32 : index
    %580 = vector.load %arg4[%c232_165, %c32_166] : memref<240x96xf32, #tpu.memory_space<vmem>>, vector<1x64xf32>
    %581 = arith.truncf %576 : vector<16x32xf32> to vector<16x32xbf16>
    %582 = arith.truncf %577 : vector<32x32xf32> to vector<32x32xbf16>
    %cst_167 = arith.constant dense<0.000000e+00> : vector<16x32xf32>
    %583 = tpu.matmul %581, %582, %cst_167 {dimension_numbers = #tpu.dot_dimension_numbers<[1], [0], [0], [1], [0, 0, 1, 1], [], []>} : vector<16x32xbf16>, vector<32x32xbf16>, vector<16x32xf32> -> vector<16x32xf32>
    %584 = vector.broadcast %578 : vector<1x32xf32> to vector<16x32xf32>
    %585 = arith.addf %583, %584 : vector<16x32xf32>
    %586 = arith.truncf %313 : vector<16x32xf32> to vector<16x32xbf16>
    %587 = arith.truncf %579 : vector<32x64xf32> to vector<32x64xbf16>
    %cst_168 = arith.constant dense<0.000000e+00> : vector<16x64xf32>
    %588 = tpu.matmul %586, %587, %cst_168 {dimension_numbers = #tpu.dot_dimension_numbers<[1], [0], [0], [1], [0, 0, 1, 1], [], []>} : vector<16x32xbf16>, vector<32x64xbf16>, vector<16x64xf32> -> vector<16x64xf32>
    %589 = vector.broadcast %580 : vector<1x64xf32> to vector<16x64xf32>
    %590 = arith.addf %588, %589 : vector<16x64xf32>
    %591 = vector.extract_strided_slice %590 {offsets = [0, 0], sizes = [16, 32], strides = [1, 1]} : vector<16x64xf32> to vector<16x32xf32>
    %592 = vector.extract_strided_slice %590 {offsets = [0, 32], sizes = [16, 32], strides = [1, 1]} : vector<16x64xf32> to vector<16x32xf32>
    %593 = vector.extract_strided_slice %585 {offsets = [0, 0], sizes = [16, 8], strides = [1, 1]} : vector<16x32xf32> to vector<16x8xf32>
    %594 = vector.extract_strided_slice %585 {offsets = [0, 8], sizes = [16, 8], strides = [1, 1]} : vector<16x32xf32> to vector<16x8xf32>
    %595 = vector.extract_strided_slice %585 {offsets = [0, 16], sizes = [16, 8], strides = [1, 1]} : vector<16x32xf32> to vector<16x8xf32>
    %596 = vector.extract_strided_slice %585 {offsets = [0, 24], sizes = [16, 8], strides = [1, 1]} : vector<16x32xf32> to vector<16x8xf32>
    %597 = tpu.concatenate %593, %594, %595, %596 in 0 : vector<16x8xf32>, vector<16x8xf32>, vector<16x8xf32>, vector<16x8xf32> -> vector<64x8xf32>
    %598 = vector.extract_strided_slice %591 {offsets = [0, 0], sizes = [16, 8], strides = [1, 1]} : vector<16x32xf32> to vector<16x8xf32>
    %599 = vector.extract_strided_slice %591 {offsets = [0, 8], sizes = [16, 8], strides = [1, 1]} : vector<16x32xf32> to vector<16x8xf32>
    %600 = vector.extract_strided_slice %591 {offsets = [0, 16], sizes = [16, 8], strides = [1, 1]} : vector<16x32xf32> to vector<16x8xf32>
    %601 = vector.extract_strided_slice %591 {offsets = [0, 24], sizes = [16, 8], strides = [1, 1]} : vector<16x32xf32> to vector<16x8xf32>
    %602 = tpu.concatenate %598, %599, %600, %601 in 0 : vector<16x8xf32>, vector<16x8xf32>, vector<16x8xf32>, vector<16x8xf32> -> vector<64x8xf32>
    %603 = vector.extract_strided_slice %592 {offsets = [0, 0], sizes = [16, 8], strides = [1, 1]} : vector<16x32xf32> to vector<16x8xf32>
    %604 = vector.extract_strided_slice %592 {offsets = [0, 8], sizes = [16, 8], strides = [1, 1]} : vector<16x32xf32> to vector<16x8xf32>
    %605 = vector.extract_strided_slice %592 {offsets = [0, 16], sizes = [16, 8], strides = [1, 1]} : vector<16x32xf32> to vector<16x8xf32>
    %606 = vector.extract_strided_slice %592 {offsets = [0, 24], sizes = [16, 8], strides = [1, 1]} : vector<16x32xf32> to vector<16x8xf32>
    %607 = tpu.concatenate %603, %604, %605, %606 in 0 : vector<16x8xf32>, vector<16x8xf32>, vector<16x8xf32>, vector<16x8xf32> -> vector<64x8xf32>
    %608 = arith.truncf %597 : vector<64x8xf32> to vector<64x8xbf16>
    %609 = arith.truncf %602 : vector<64x8xf32> to vector<64x8xbf16>
    %cst_169 = arith.constant dense<0.000000e+00> : vector<64x64xf32>
    %610 = tpu.matmul %608, %609, %cst_169 {dimension_numbers = #tpu.dot_dimension_numbers<[1], [1], [0], [0], [0, 0, 1, 0], [], []>} : vector<64x8xbf16>, vector<64x8xbf16>, vector<64x64xf32> -> vector<64x64xf32>
    %611 = arith.addf %610, %69 : vector<64x64xf32>
    %cst_170 = arith.constant dense<0xFF800000> : vector<64xf32>
    %612 = vector.multi_reduction <maximumf>, %611, %cst_170 [1] : vector<64x64xf32> to vector<64xf32>
    %613 = vector.shape_cast %612 : vector<64xf32> to vector<64x1xf32>
    %614 = vector.broadcast %613 : vector<64x1xf32> to vector<64x64xf32>
    %615 = arith.subf %611, %614 : vector<64x64xf32>
    %616 = math.exp %615 : vector<64x64xf32>
    %cst_171 = arith.constant dense<0.000000e+00> : vector<64xf32>
    %617 = vector.multi_reduction <add>, %616, %cst_171 [1] : vector<64x64xf32> to vector<64xf32>
    %618 = vector.shape_cast %617 : vector<64xf32> to vector<64x1xf32>
    %619 = tpu.reciprocal %618 {approx = true} : vector<64x1xf32> -> vector<64x1xf32>
    %620 = vector.broadcast %619 : vector<64x1xf32> to vector<64x64xf32>
    %621 = arith.mulf %616, %620 : vector<64x64xf32>
    %622 = arith.truncf %621 : vector<64x64xf32> to vector<64x64xbf16>
    %623 = arith.truncf %607 : vector<64x8xf32> to vector<64x8xbf16>
    %cst_172 = arith.constant dense<0.000000e+00> : vector<64x8xf32>
    %624 = tpu.matmul %622, %623, %cst_172 {dimension_numbers = #tpu.dot_dimension_numbers<[1], [0], [0], [1], [0, 0, 1, 1], [], []>} : vector<64x64xbf16>, vector<64x8xbf16>, vector<64x8xf32> -> vector<64x8xf32>
    %625 = vector.extract_strided_slice %624 {offsets = [0, 0], sizes = [16, 8], strides = [1, 1]} : vector<64x8xf32> to vector<16x8xf32>
    %626 = vector.extract_strided_slice %624 {offsets = [16, 0], sizes = [16, 8], strides = [1, 1]} : vector<64x8xf32> to vector<16x8xf32>
    %627 = vector.extract_strided_slice %624 {offsets = [32, 0], sizes = [16, 8], strides = [1, 1]} : vector<64x8xf32> to vector<16x8xf32>
    %628 = vector.extract_strided_slice %624 {offsets = [48, 0], sizes = [16, 8], strides = [1, 1]} : vector<64x8xf32> to vector<16x8xf32>
    %629 = tpu.concatenate %625, %626, %627, %628 in 1 : vector<16x8xf32>, vector<16x8xf32>, vector<16x8xf32>, vector<16x8xf32> -> vector<16x32xf32>
    %c200_173 = arith.constant 200 : index
    %c0_174 = arith.constant 0 : index
    %630 = vector.load %arg6[%c200_173, %c0_174] : memref<992x32xf32, #tpu.memory_space<vmem>>, vector<32x32xf32>
    %c232_175 = arith.constant 232 : index
    %c0_176 = arith.constant 0 : index
    %631 = vector.load %arg6[%c232_175, %c0_176] : memref<992x32xf32, #tpu.memory_space<vmem>>, vector<1x32xf32>
    %632 = arith.truncf %629 : vector<16x32xf32> to vector<16x32xbf16>
    %633 = arith.truncf %630 : vector<32x32xf32> to vector<32x32xbf16>
    %cst_177 = arith.constant dense<0.000000e+00> : vector<16x32xf32>
    %634 = tpu.matmul %632, %633, %cst_177 {dimension_numbers = #tpu.dot_dimension_numbers<[1], [0], [0], [1], [0, 0, 1, 1], [], []>} : vector<16x32xbf16>, vector<32x32xbf16>, vector<16x32xf32> -> vector<16x32xf32>
    %635 = vector.broadcast %631 : vector<1x32xf32> to vector<16x32xf32>
    %636 = arith.addf %634, %635 : vector<16x32xf32>
    %637 = arith.addf %636, %576 : vector<16x32xf32>
    %c296 = arith.constant 296 : index
    %c0_178 = arith.constant 0 : index
    %638 = vector.load %arg6[%c296, %c0_178] : memref<992x32xf32, #tpu.memory_space<vmem>>, vector<8x32xf32>
    %639 = vector.extract_strided_slice %638 {offsets = [0, 0], sizes = [1, 32], strides = [1, 1]} : vector<8x32xf32> to vector<1x32xf32>
    %640 = vector.extract_strided_slice %638 {offsets = [1, 0], sizes = [1, 32], strides = [1, 1]} : vector<8x32xf32> to vector<1x32xf32>
    %cst_179 = arith.constant dense<0.000000e+00> : vector<16xf32>
    %641 = vector.multi_reduction <add>, %637, %cst_179 [1] : vector<16x32xf32> to vector<16xf32>
    %642 = vector.shape_cast %641 : vector<16xf32> to vector<16x1xf32>
    %cst_180 = arith.constant 3.200000e+01 : f32
    %643 = vector.broadcast %cst_180 : f32 to vector<16x1xf32>
    %644 = arith.divf %642, %643 : vector<16x1xf32>
    %645 = vector.broadcast %644 : vector<16x1xf32> to vector<16x32xf32>
    %646 = arith.subf %637, %645 : vector<16x32xf32>
    %647 = arith.mulf %646, %646 : vector<16x32xf32>
    %cst_181 = arith.constant dense<0.000000e+00> : vector<16xf32>
    %648 = vector.multi_reduction <add>, %647, %cst_181 [1] : vector<16x32xf32> to vector<16xf32>
    %649 = vector.shape_cast %648 : vector<16xf32> to vector<16x1xf32>
    %cst_182 = arith.constant 3.200000e+01 : f32
    %650 = vector.broadcast %cst_182 : f32 to vector<16x1xf32>
    %651 = arith.divf %649, %650 : vector<16x1xf32>
    %652 = vector.broadcast %644 : vector<16x1xf32> to vector<16x32xf32>
    %653 = arith.subf %637, %652 : vector<16x32xf32>
    %cst_183 = arith.constant 9.99999974E-6 : f32
    %654 = vector.broadcast %cst_183 : f32 to vector<16x1xf32>
    %655 = arith.addf %651, %654 : vector<16x1xf32>
    %656 = math.rsqrt %655 : vector<16x1xf32>
    %657 = vector.broadcast %656 : vector<16x1xf32> to vector<16x32xf32>
    %658 = arith.mulf %653, %657 : vector<16x32xf32>
    %659 = vector.broadcast %639 : vector<1x32xf32> to vector<16x32xf32>
    %660 = arith.mulf %658, %659 : vector<16x32xf32>
    %661 = vector.broadcast %640 : vector<1x32xf32> to vector<16x32xf32>
    %662 = arith.addf %660, %661 : vector<16x32xf32>
    %c120_184 = arith.constant 120 : index
    %c0_185 = arith.constant 0 : index
    %663 = vector.load %arg5[%c120_184, %c0_185] : memref<200x128xf32, #tpu.memory_space<vmem>>, vector<32x128xf32>
    %c152_186 = arith.constant 152 : index
    %c0_187 = arith.constant 0 : index
    %664 = vector.load %arg5[%c152_186, %c0_187] : memref<200x128xf32, #tpu.memory_space<vmem>>, vector<1x128xf32>
    %c712 = arith.constant 712 : index
    %c0_188 = arith.constant 0 : index
    %665 = vector.load %arg6[%c712, %c0_188] : memref<992x32xf32, #tpu.memory_space<vmem>>, vector<128x32xf32>
    %c840 = arith.constant 840 : index
    %c0_189 = arith.constant 0 : index
    %666 = vector.load %arg6[%c840, %c0_189] : memref<992x32xf32, #tpu.memory_space<vmem>>, vector<1x32xf32>
    %667 = arith.truncf %662 : vector<16x32xf32> to vector<16x32xbf16>
    %668 = arith.truncf %663 : vector<32x128xf32> to vector<32x128xbf16>
    %cst_190 = arith.constant dense<0.000000e+00> : vector<16x128xf32>
    %669 = tpu.matmul %667, %668, %cst_190 {dimension_numbers = #tpu.dot_dimension_numbers<[1], [0], [0], [1], [0, 0, 1, 1], [], []>} : vector<16x32xbf16>, vector<32x128xbf16>, vector<16x128xf32> -> vector<16x128xf32>
    %670 = vector.broadcast %664 : vector<1x128xf32> to vector<16x128xf32>
    %671 = arith.addf %669, %670 : vector<16x128xf32>
    %cst_191 = arith.constant 0.000000e+00 : f32
    %672 = vector.broadcast %cst_191 : f32 to vector<16x128xf32>
    %673 = arith.maximumf %671, %672 : vector<16x128xf32>
    %674 = arith.truncf %673 : vector<16x128xf32> to vector<16x128xbf16>
    %675 = arith.truncf %665 : vector<128x32xf32> to vector<128x32xbf16>
    %cst_192 = arith.constant dense<0.000000e+00> : vector<16x32xf32>
    %676 = tpu.matmul %674, %675, %cst_192 {dimension_numbers = #tpu.dot_dimension_numbers<[1], [0], [0], [1], [0, 0, 1, 1], [], []>} : vector<16x128xbf16>, vector<128x32xbf16>, vector<16x32xf32> -> vector<16x32xf32>
    %677 = vector.broadcast %666 : vector<1x32xf32> to vector<16x32xf32>
    %678 = arith.addf %676, %677 : vector<16x32xf32>
    %679 = arith.addf %678, %662 : vector<16x32xf32>
    %c160_193 = arith.constant 160 : index
    %c0_194 = arith.constant 0 : index
    %680 = vector.load %arg5[%c160_193, %c0_194] : memref<200x128xf32, #tpu.memory_space<vmem>>, vector<32x128xf32>
    %c192_195 = arith.constant 192 : index
    %c0_196 = arith.constant 0 : index
    %681 = vector.load %arg5[%c192_195, %c0_196] : memref<200x128xf32, #tpu.memory_space<vmem>>, vector<1x128xf32>
    %682 = arith.truncf %679 : vector<16x32xf32> to vector<16x32xbf16>
    %683 = arith.truncf %680 : vector<32x128xf32> to vector<32x128xbf16>
    %cst_197 = arith.constant dense<0.000000e+00> : vector<16x128xf32>
    %684 = tpu.matmul %682, %683, %cst_197 {dimension_numbers = #tpu.dot_dimension_numbers<[1], [0], [0], [1], [0, 0, 1, 1], [], []>} : vector<16x32xbf16>, vector<32x128xbf16>, vector<16x128xf32> -> vector<16x128xf32>
    %685 = vector.broadcast %681 : vector<1x128xf32> to vector<16x128xf32>
    %686 = arith.addf %684, %685 : vector<16x128xf32>
    %cst_198 = arith.constant dense<0xFF800000> : vector<16xf32>
    %687 = vector.multi_reduction <maximumf>, %686, %cst_198 [1] : vector<16x128xf32> to vector<16xf32>
    %688 = vector.shape_cast %687 : vector<16xf32> to vector<16x1xf32>
    %689 = vector.broadcast %688 : vector<16x1xf32> to vector<16x128xf32>
    %690 = arith.subf %686, %689 : vector<16x128xf32>
    %691 = math.exp %690 : vector<16x128xf32>
    %cst_199 = arith.constant dense<0.000000e+00> : vector<16xf32>
    %692 = vector.multi_reduction <add>, %691, %cst_199 [1] : vector<16x128xf32> to vector<16xf32>
    %693 = vector.shape_cast %692 : vector<16xf32> to vector<16x1xf32>
    %694 = tpu.reciprocal %693 : vector<16x1xf32> -> vector<16x1xf32>
    %695 = vector.broadcast %694 : vector<16x1xf32> to vector<16x128xf32>
    %696 = arith.mulf %691, %695 : vector<16x128xf32>
    %c0_200 = arith.constant 0 : index
    %c0_201 = arith.constant 0 : index
    %697 = vector.load %arg7[%c0_200, %c0_201] : memref<16x128xf32, #tpu.memory_space<vmem>>, vector<16x128xf32>
    tpu.vector_store %arg7[%c0_200, %c0_201], %696 {strides = array<i32>} : memref<16x128xf32, #tpu.memory_space<vmem>>, vector<16x128xf32>,
    return
  }
}

</mosaic_0001>

<llo_original>
// kernel: transformer_forward.1
$region0: #{transformer_forward.1}
  #allocation0 [shape = 'u32[]', space=smem, size = 0x4, offset = 0x4, fixed_abs, tag = 'smem constant byte address 0x4 - core index']
  #allocation1 [shape = 'u32[144,128]{1,0:T(1,128)}', space=vmem, size = 0x12000, scoped, tag = 'internal scratch']
  %s0 = inlined_call_operand.vmem [shape: s32[16,1], index: 0, kind: input, shape index: {}]
  %s1 = inlined_call_operand.vmem [shape: s32[16,1], index: 1, kind: input, shape index: {}]
  %s2 = inlined_call_operand.vmem [shape: f32[1,16], index: 2, kind: input, shape index: {}]
  %s3 = inlined_call_operand.vmem [shape: f32[1,16], index: 3, kind: input, shape index: {}]
  %s4 = inlined_call_operand.vmem [shape: f32[240,96], index: 4, kind: input, shape index: {}]
  %s5 = inlined_call_operand.vmem [shape: f32[200,128], index: 5, kind: input, shape index: {}]
  %s6 = inlined_call_operand.vmem [shape: f32[992,32], index: 6, kind: input, shape index: {}]
  %s7 = inlined_call_operand.vmem [shape: f32[16,128], index: 7, kind: output, shape index: {}]
  %s8 = sld [smem:[#allocation0]]
  $region38: #{transformer_forward.1} parent=0
    _
  %s10 = ssub.s32 1, %s8
  %s11 = scalar_select 0, %s10, %s8
  // Predicated region
  $region2: #{transformer_forward.1} parent=0 // pred_check
    _
  $region3: #{transformer_forward.1} parent=0 // pred_check_branch
    %13 = sbr.rel (0) target = $region5
  $region4: #{transformer_forward.1} parent=0 // pred_region
    _
  $region5: #{transformer_forward.1} parent=0 // pred_fallthru
    _
  // Predicated region
  $region6: #{transformer_forward.1} parent=0 // pred_check
    _
  $region7: #{transformer_forward.1} parent=0 // pred_check_branch
    %15 = sbr.rel (0) target = $region9
  $region8: #{transformer_forward.1} parent=0 // pred_region
    _
  $region9: #{transformer_forward.1} parent=0 // pred_fallthru
    _
  // Predicated region
  $region10: #{transformer_forward.1} parent=0 // pred_check
    _
  $region11: #{transformer_forward.1} parent=0 // pred_check_branch
    %17 = sbr.rel (0) target = $region13
  $region12: #{transformer_forward.1} parent=0 // pred_region
    _
  $region13: #{transformer_forward.1} parent=0 // pred_fallthru
    _
  // Predicated region
  $region14: #{transformer_forward.1} parent=0 // pred_check
    _
  $region15: #{transformer_forward.1} parent=0 // pred_check_branch
    %19 = sbr.rel (0) target = $region17
  $region16: #{transformer_forward.1} parent=0 // pred_region
    _
  $region17: #{transformer_forward.1} parent=0 // pred_fallthru
    _
  // Predicated region
  $region18: #{transformer_forward.1} parent=0 // pred_check
    _
  $region19: #{transformer_forward.1} parent=0 // pred_check_branch
    %21 = sbr.rel (0) target = $region21
  $region20: #{transformer_forward.1} parent=0 // pred_region
    _
  $region21: #{transformer_forward.1} parent=0 // pred_fallthru
    _
  // Predicated region
  $region22: #{transformer_forward.1} parent=0 // pred_check
    _
  $region23: #{transformer_forward.1} parent=0 // pred_check_branch
    %23 = sbr.rel (0) target = $region25
  $region24: #{transformer_forward.1} parent=0 // pred_region
    _
  $region25: #{transformer_forward.1} parent=0 // pred_fallthru
    _
  // Predicated region
  $region26: #{transformer_forward.1} parent=0 // pred_check
    _
  $region27: #{transformer_forward.1} parent=0 // pred_check_branch
    %25 = sbr.rel (0) target = $region29
  $region28: #{transformer_forward.1} parent=0 // pred_region
    _
  $region29: #{transformer_forward.1} parent=0 // pred_fallthru
    _
  %v27 = vlaneseq
  %v28 = vand.u32 %v27, 127
  %v29 = vld [vmem:[%s6 + $0x3d0] sm:$0xff]
  %v30 = vld [vmem:[%s6 + $0x3d8] sm:$0xff]
  %v31 = vld [vmem:[%s0] sm:$0xff]
  %v32 = vld [vmem:[%s0 + $0x8] sm:$0xff]
  %33 = vset.pattern.permute.xlu0 0
  %34 = vperm.xlu0 %33, %v31
  %v35 = vpop.permute.xlu0 %34
  %36 = vset.pattern.permute.xlu0 0
  %37 = vperm.xlu0 %36, %v32
  %v38 = vpop.permute.xlu0 %37
  %vm39 = vcmp.eq.s32.totalorder %v35, %v28
  %vm40 = vcmp.eq.s32.totalorder %v38, %v28
  %v41 = vsel %vm39, 1, 0
  %v42 = vsel %vm40, 1, 0
  %v43 = vcvt.s32.f32 %v41
  %v44 = vcvt.s32.f32 %v42
  %v45 = vld [vmem:[%s6 + $0x350] sm:$0xff]
  %v46 = vld [vmem:[%s6 + $0x358] sm:$0xff]
  %v47 = vld [vmem:[%s6 + $0x360] sm:$0xff]
  %v48 = vld [vmem:[%s6 + $0x368] sm:$0xff]
  %v49 = vld [vmem:[%s6 + $0x370] sm:$0xff]
  %v50 = vld [vmem:[%s6 + $0x378] sm:$0xff]
  %v51 = vld [vmem:[%s6 + $0x380] sm:$0xff]
  %v52 = vld [vmem:[%s6 + $0x388] sm:$0xff]
  %vm53 = vcmask 523264
  %v55 = vsel %vm53, %v43, 0
  %v58 = vsel %vm53, %v44, 0
  %60 = vmatprep.subr.mxu0 0.0
  %61 = vmatpush1.msra.mxu0 %v45
  %62 = vmatprep.subr.mxu0 0.0
  %63 = vmatpush1.msra.mxu0 %v46
  %64 = vmatprep.subr.mxu0 0.0
  %65 = vmatpush1.msra.mxu0 %v47
  %66 = vmatprep.subr.mxu0 0.0
  %67 = vmatpush1.msra.mxu0 %v48
  %68 = vmatprep.subr.mxu0 0.0
  %69 = vmatpush1.msra.mxu0 %v49
  %70 = vmatprep.subr.mxu0 0.0
  %71 = vmatpush1.msra.mxu0 %v50
  %72 = vmatprep.subr.mxu0 0.0
  %73 = vmatpush1.msra.mxu0 %v51
  %74 = vmatprep.subr.mxu0 0.0
  %75 = vmatpush1.msra.mxu0 %v52
  %76 = vmatprep.subr.mxu0 0.0
  %77 = vmatpush1.msra.mxu0 0.0
  %78 = vmatprep.subr.mxu0 0.0
  %79 = vmatpush1.msra.mxu0 0.0
  %80 = vmatprep.subr.mxu0 0.0
  %81 = vmatpush1.msra.mxu0 0.0
  %82 = vmatprep.subr.mxu0 0.0
  %83 = vmatpush1.msra.mxu0 0.0
  %84 = vmatprep.subr.mxu0 0.0
  %85 = vmatpush1.msra.mxu0 0.0
  %86 = vmatprep.subr.mxu0 0.0
  %87 = vmatpush1.msra.mxu0 0.0
  %88 = vmatprep.subr.mxu0 0.0
  %89 = vmatpush1.msra.mxu0 0.0
  %90 = vmatprep.subr.mxu0 0.0
  %91 = vmatpush1.msra.mxu0 0.0
  %92 = vmatprep.subr.mxu0 0.0
  %93 = vmatpush1.msra.mxu0 0.0
  %94 = vmatprep.subr.mxu0 0.0
  %95 = vmatpush1.msra.mxu0 0.0
  %96 = vmatprep.subr.mxu0 0.0
  %97 = vmatpush1.msra.mxu0 0.0
  %98 = vmatprep.subr.mxu0 0.0
  %99 = vmatpush1.msra.mxu0 0.0
  %100 = vmatprep.subr.mxu0 0.0
  %101 = vmatpush1.msra.mxu0 0.0
  %102 = vmatprep.subr.mxu0 0.0
  %103 = vmatpush1.msra.mxu0 0.0
  %104 = vmatprep.subr.mxu0 0.0
  %105 = vmatpush1.msra.mxu0 0.0
  %106 = vmatprep.subr.mxu0 0.0
  %107 = vmatpush1.msra.mxu0 0.0
  %108 = vmatprep.subr.mxu0 0.0
  %109 = vmatpush1.msra.mxu0 0.0
  %110 = vmatprep.subr.mxu0 0.0
  %111 = vmatpush1.msra.mxu0 0.0
  %112 = vmatprep.subr.mxu0 0.0
  %113 = vmatpush1.msra.mxu0 0.0
  %114 = vmatprep.subr.mxu0 0.0
  %115 = vmatpush1.msra.mxu0 0.0
  %116 = vmatprep.subr.mxu0 0.0
  %117 = vmatpush1.msra.mxu0 0.0
  %118 = vmatprep.subr.mxu0 0.0
  %119 = vmatpush1.msra.mxu0 0.0
  %120 = vmatprep.subr.mxu0 0.0
  %121 = vmatpush1.msra.mxu0 0.0
  %122 = vmatprep.subr.mxu0 0.0
  %123 = vmatpush1.msra.mxu0 0.0
  %124 = vmatprep.mubr.f32.mxu0 0.0
  %125 = vmatmul.mubr.f32.gmra.mrb[0].mxu0 %v55
  %v126 = vpop.f32.mrb[0].mxu0
  %v127 = vadd.f32 %v29, %v126
  %v128 = vpop.f32.mrb[0].mxu0
  %129 = vmatprep.mubr.f32.mxu0 0.0
  %130 = vmatmul.mubr.f32.gmra.mrb[0].mxu0 %v58
  %v131 = vpop.f32.mrb[0].mxu0
  %v132 = vadd.f32 %v30, %v131
  %v133 = vpop.f32.mrb[0].mxu0
  %134 = vdwg.mxu0
  %v135 = vld [vmem:[%s1] sm:$0xff]
  %v136 = vld [vmem:[%s1 + $0x8] sm:$0xff]
  %137 = vset.pattern.permute.xlu0 0
  %138 = vperm.xlu0 %137, %v135
  %v139 = vpop.permute.xlu0 %138
  %140 = vset.pattern.permute.xlu0 0
  %141 = vperm.xlu0 %140, %v136
  %v142 = vpop.permute.xlu0 %141
  %vm143 = vcmp.eq.s32.totalorder %v139, %v28
  %vm144 = vcmp.eq.s32.totalorder %v142, %v28
  %v145 = vsel %vm143, 1, 0
  %v146 = vsel %vm144, 1, 0
  %v147 = vcvt.s32.f32 %v145
  %v148 = vcvt.s32.f32 %v146
  %v149 = vld [vmem:[%s6 + $0x390] sm:$0xff]
  %v150 = vld [vmem:[%s6 + $0x398] sm:$0xff]
  %v151 = vld [vmem:[%s6 + $0x3a0] sm:$0xff]
  %v152 = vld [vmem:[%s6 + $0x3a8] sm:$0xff]
  %v153 = vld [vmem:[%s6 + $0x3b0] sm:$0xff]
  %v154 = vld [vmem:[%s6 + $0x3b8] sm:$0xff]
  %v155 = vld [vmem:[%s6 + $0x3c0] sm:$0xff]
  %v156 = vld [vmem:[%s6 + $0x3c8] sm:$0xff]
  %v158 = vsel %vm53, %v147, 0
  %v161 = vsel %vm53, %v148, 0
  %163 = vmatprep.subr.mxu0 0.0
  %164 = vmatpush1.msra.mxu0 %v149
  %165 = vmatprep.subr.mxu0 0.0
  %166 = vmatpush1.msra.mxu0 %v150
  %167 = vmatprep.subr.mxu0 0.0
  %168 = vmatpush1.msra.mxu0 %v151
  %169 = vmatprep.subr.mxu0 0.0
  %170 = vmatpush1.msra.mxu0 %v152
  %171 = vmatprep.subr.mxu0 0.0
  %172 = vmatpush1.msra.mxu0 %v153
  %173 = vmatprep.subr.mxu0 0.0
  %174 = vmatpush1.msra.mxu0 %v154
  %175 = vmatprep.subr.mxu0 0.0
  %176 = vmatpush1.msra.mxu0 %v155
  %177 = vmatprep.subr.mxu0 0.0
  %178 = vmatpush1.msra.mxu0 %v156
  %179 = vmatprep.subr.mxu0 0.0
  %180 = vmatpush1.msra.mxu0 0.0
  %181 = vmatprep.subr.mxu0 0.0
  %182 = vmatpush1.msra.mxu0 0.0
  %183 = vmatprep.subr.mxu0 0.0
  %184 = vmatpush1.msra.mxu0 0.0
  %185 = vmatprep.subr.mxu0 0.0
  %186 = vmatpush1.msra.mxu0 0.0
  %187 = vmatprep.subr.mxu0 0.0
  %188 = vmatpush1.msra.mxu0 0.0
  %189 = vmatprep.subr.mxu0 0.0
  %190 = vmatpush1.msra.mxu0 0.0
  %191 = vmatprep.subr.mxu0 0.0
  %192 = vmatpush1.msra.mxu0 0.0
  %193 = vmatprep.subr.mxu0 0.0
  %194 = vmatpush1.msra.mxu0 0.0
  %195 = vmatprep.subr.mxu0 0.0
  %196 = vmatpush1.msra.mxu0 0.0
  %197 = vmatprep.subr.mxu0 0.0
  %198 = vmatpush1.msra.mxu0 0.0
  %199 = vmatprep.subr.mxu0 0.0
  %200 = vmatpush1.msra.mxu0 0.0
  %201 = vmatprep.subr.mxu0 0.0
  %202 = vmatpush1.msra.mxu0 0.0
  %203 = vmatprep.subr.mxu0 0.0
  %204 = vmatpush1.msra.mxu0 0.0
  %205 = vmatprep.subr.mxu0 0.0
  %206 = vmatpush1.msra.mxu0 0.0
  %207 = vmatprep.subr.mxu0 0.0
  %208 = vmatpush1.msra.mxu0 0.0
  %209 = vmatprep.subr.mxu0 0.0
  %210 = vmatpush1.msra.mxu0 0.0
  %211 = vmatprep.subr.mxu0 0.0
  %212 = vmatpush1.msra.mxu0 0.0
  %213 = vmatprep.subr.mxu0 0.0
  %214 = vmatpush1.msra.mxu0 0.0
  %215 = vmatprep.subr.mxu0 0.0
  %216 = vmatpush1.msra.mxu0 0.0
  %217 = vmatprep.subr.mxu0 0.0
  %218 = vmatpush1.msra.mxu0 0.0
  %219 = vmatprep.subr.mxu0 0.0
  %220 = vmatpush1.msra.mxu0 0.0
  %221 = vmatprep.subr.mxu0 0.0
  %222 = vmatpush1.msra.mxu0 0.0
  %223 = vmatprep.subr.mxu0 0.0
  %224 = vmatpush1.msra.mxu0 0.0
  %225 = vmatprep.subr.mxu0 0.0
  %226 = vmatpush1.msra.mxu0 0.0
  %227 = vmatprep.mubr.f32.mxu0 0.0
  %228 = vmatmul.mubr.f32.gmra.mrb[0].mxu0 %v158
  %v229 = vpop.f32.mrb[0].mxu0
  %v230 = vadd.f32 %v29, %v229
  %v231 = vpop.f32.mrb[0].mxu0
  %232 = vmatprep.mubr.f32.mxu0 0.0
  %233 = vmatmul.mubr.f32.gmra.mrb[0].mxu0 %v161
  %v234 = vpop.f32.mrb[0].mxu0
  %v235 = vadd.f32 %v30, %v234
  %v236 = vpop.f32.mrb[0].mxu0
  %237 = vdwg.mxu0
  %v238 = vlaneseq
  %v239 = vshrl.u32 %v238, 7
  %v240 = vadd.s32 %v239, 8
  %v241 = vadd.s32 %v239, 16
  %v242 = vadd.s32 %v239, 24
  %v243 = vadd.s32 %v239, 32
  %v244 = vadd.s32 %v239, 40
  %v245 = vadd.s32 %v239, 48
  %v246 = vadd.s32 %v239, 56
  %v247 = vshra.s32 %v239, 4
  %v248 = vshra.s32 %v240, 4
  %v249 = vshra.s32 %v241, 4
  %v250 = vshra.s32 %v242, 4
  %v251 = vshra.s32 %v243, 4
  %v252 = vshra.s32 %v244, 4
  %v253 = vshra.s32 %v245, 4
  %v254 = vshra.s32 %v246, 4
  %v255 = vshra.s32 %v28, 4
  %vm256 = vcmp.eq.s32.totalorder %v247, %v255
  %vm257 = vcmp.eq.s32.totalorder %v248, %v255
  %vm258 = vcmp.eq.s32.totalorder %v249, %v255
  %vm259 = vcmp.eq.s32.totalorder %v250, %v255
  %vm260 = vcmp.eq.s32.totalorder %v251, %v255
  %vm261 = vcmp.eq.s32.totalorder %v252, %v255
  %vm262 = vcmp.eq.s32.totalorder %v253, %v255
  %vm263 = vcmp.eq.s32.totalorder %v254, %v255
  %v264 = vand.u32 %v239, 15
  %v265 = vand.u32 %v240, 15
  %v266 = vand.u32 %v241, 15
  %v267 = vand.u32 %v242, 15
  %v268 = vand.u32 %v243, 15
  %v269 = vand.u32 %v244, 15
  %v270 = vand.u32 %v245, 15
  %v271 = vand.u32 %v246, 15
  %v272 = vand.u32 %v28, 15
  %v273 = vshra.s32 %v264, 3
  %v274 = vshra.s32 %v265, 3
  %v275 = vshra.s32 %v266, 3
  %v276 = vshra.s32 %v267, 3
  %v277 = vshra.s32 %v268, 3
  %v278 = vshra.s32 %v269, 3
  %v279 = vshra.s32 %v270, 3
  %v280 = vshra.s32 %v271, 3
  %v281 = vshra.s32 %v272, 3
  %vm282 = vcmp.eq.s32.totalorder %v273, %v281
  %vm283 = vcmp.eq.s32.totalorder %v274, %v281
  %vm284 = vcmp.eq.s32.totalorder %v275, %v281
  %vm285 = vcmp.eq.s32.totalorder %v276, %v281
  %vm286 = vcmp.eq.s32.totalorder %v277, %v281
  %vm287 = vcmp.eq.s32.totalorder %v278, %v281
  %vm288 = vcmp.eq.s32.totalorder %v279, %v281
  %vm289 = vcmp.eq.s32.totalorder %v280, %v281
  %vm290 = vmand %vm256, %vm282
  %vm291 = vmand %vm257, %vm283
  %vm292 = vmand %vm258, %vm284
  %vm293 = vmand %vm259, %vm285
  %vm294 = vmand %vm260, %vm286
  %vm295 = vmand %vm261, %vm287
  %vm296 = vmand %vm262, %vm288
  %vm297 = vmand %vm263, %vm289
  %v298 = vand.u32 %v272, 7
  %v299 = vand.u32 %v264, 7
  %v300 = vand.u32 %v265, 7
  %v301 = vand.u32 %v266, 7
  %v302 = vand.u32 %v267, 7
  %v303 = vand.u32 %v268, 7
  %v304 = vand.u32 %v269, 7
  %v305 = vand.u32 %v270, 7
  %v306 = vand.u32 %v271, 7
  %vm307 = vcmp.le.s32.totalorder %v298, %v299
  %vm308 = vcmp.le.s32.totalorder %v298, %v300
  %vm309 = vcmp.le.s32.totalorder %v298, %v301
  %vm310 = vcmp.le.s32.totalorder %v298, %v302
  %vm311 = vcmp.le.s32.totalorder %v298, %v303
  %vm312 = vcmp.le.s32.totalorder %v298, %v304
  %vm313 = vcmp.le.s32.totalorder %v298, %v305
  %vm314 = vcmp.le.s32.totalorder %v298, %v306
  %v315 = vld [vmem:[%s2] sm:$0x1]
  %v317 = vlaneseq
  %v318 = vshrl.u32 %v317, 7
  %v319 = vsub.s32 0, %v318
  %v320 = vrot.slane %v315, %v319
  %321 = vrot.lane.b32.xlu0 %v320, 16
  %v322 = vpop.permute.xlu0 %321
  %324 = vrot.lane.b32.xlu0 %v320, 32
  %v325 = vpop.permute.xlu0 %324
  %327 = vrot.lane.b32.xlu0 %v320, 48
  %v328 = vpop.permute.xlu0 %327
  %vm330 = vcmask 130048
  %v331 = vsel %vm330, %v315, %v322
  %vm332 = vcmask 261120
  %v333 = vsel %vm332, %v331, %v325
  %vm334 = vcmask 392192
  %v335 = vsel %vm334, %v333, %v328
  %vm336 = vcmp.gt.f32.partialorder %v335, 0.0
  %v337 = vld [vmem:[%s3] sm:$0x1]
  %v339 = vlaneseq
  %v340 = vshrl.u32 %v339, 7
  %v341 = vsub.s32 0, %v340
  %v342 = vrot.slane %v337, %v341
  %343 = vrot.lane.b32.xlu0 %v342, 16
  %v344 = vpop.permute.xlu0 %343
  %346 = vrot.lane.b32.xlu0 %v342, 32
  %v347 = vpop.permute.xlu0 %346
  %349 = vrot.lane.b32.xlu0 %v342, 48
  %v350 = vpop.permute.xlu0 %349
  %v352 = vsel %vm330, %v337, %v344
  %v353 = vsel %vm332, %v352, %v347
  %v354 = vsel %vm334, %v353, %v350
  %vm355 = vcmp.gt.f32.partialorder %v354, 0.0
  %v356 = vsel %vm336, 1, 0
  %v357 = vlaneseq
  %v358 = vshrl.u32 %v357, 7
  %v359 = vsub.s32 0, %v358
  %v360 = vrot.slane %v356, %v359
  %vm361 = vcmp.eq.s32.totalorder %v360, 1
  %v362 = vsel %vm361, 0.0, -3.4028235e+38
  %v363 = vsel %vm290, %v362, -inf
  %v364 = vsel %vm291, %v362, -inf
  %v365 = vsel %vm292, %v362, -inf
  %v366 = vsel %vm293, %v362, -inf
  %v367 = vsel %vm294, %v362, -inf
  %v368 = vsel %vm295, %v362, -inf
  %v369 = vsel %vm296, %v362, -inf
  %v370 = vsel %vm297, %v362, -inf
  %v371 = vsel %vm355, 1, 0
  %v372 = vlaneseq
  %v373 = vshrl.u32 %v372, 7
  %v374 = vsub.s32 0, %v373
  %v375 = vrot.slane %v371, %v374
  %vm376 = vcmp.eq.s32.totalorder %v375, 1
  %vm377 = vmand %vm376, %vm307
  %vm378 = vmand %vm376, %vm308
  %vm379 = vmand %vm376, %vm309
  %vm380 = vmand %vm376, %vm310
  %vm381 = vmand %vm376, %vm311
  %vm382 = vmand %vm376, %vm312
  %vm383 = vmand %vm376, %vm313
  %vm384 = vmand %vm376, %vm314
  %v385 = vsel %vm377, 0.0, -3.4028235e+38
  %v386 = vsel %vm378, 0.0, -3.4028235e+38
  %v387 = vsel %vm379, 0.0, -3.4028235e+38
  %v388 = vsel %vm380, 0.0, -3.4028235e+38
  %v389 = vsel %vm381, 0.0, -3.4028235e+38
  %v390 = vsel %vm382, 0.0, -3.4028235e+38
  %v391 = vsel %vm383, 0.0, -3.4028235e+38
  %v392 = vsel %vm384, 0.0, -3.4028235e+38
  %v393 = vsel %vm290, %v385, -inf
  %v394 = vsel %vm291, %v386, -inf
  %v395 = vsel %vm292, %v387, -inf
  %v396 = vsel %vm293, %v388, -inf
  %v397 = vsel %vm294, %v389, -inf
  %v398 = vsel %vm295, %v390, -inf
  %v399 = vsel %vm296, %v391, -inf
  %v400 = vsel %vm297, %v392, -inf
  %v401 = vsel %vm376, 0.0, -3.4028235e+38
  %v402 = vsel %vm290, %v401, -inf
  %v403 = vsel %vm291, %v401, -inf
  %v404 = vsel %vm292, %v401, -inf
  %v405 = vsel %vm293, %v401, -inf
  %v406 = vsel %vm294, %v401, -inf
  %v407 = vsel %vm295, %v401, -inf
  %v408 = vsel %vm296, %v401, -inf
  %v409 = vsel %vm297, %v401, -inf
  %v410 = vld [vmem:[%s4] sm:$0xff]
  %v411 = vld [vmem:[%s4 + $0x8] sm:$0xff]
  %v412 = vld [vmem:[%s4 + $0x10] sm:$0xff]
  %v413 = vld [vmem:[%s4 + $0x18] sm:$0xff]
  %v414 = vld [vmem:[%s4 + $0x20] sm:$0x1]
  %v415 = vpack.c.bf16 %v132, %v127
  %v416 = vpack.c.bf16 %v411, %v410
  %v417 = vpack.c.bf16 %v413, %v412
  %v418 = vlaneseq
  %v419 = vshrl.u32 %v418, 7
  %v420 = vsub.s32 0, %v419
  %v421 = vrot.slane %v414, %v420
  %v423 = vsel %vm332, %v415, 0
  %425 = vmatprep.subr.bf16.mxu0 0
  %426 = vmatpush1.bf16.msra.mxu0 %v416
  %427 = vmatprep.subr.bf16.mxu0 0
  %428 = vmatpush1.bf16.msra.mxu0 %v417
  %429 = vmatprep.subr.bf16.mxu0 0
  %430 = vmatpush1.bf16.msra.mxu0 0
  %431 = vmatprep.subr.bf16.mxu0 0
  %432 = vmatpush1.bf16.msra.mxu0 0
  %433 = vmatprep.subr.bf16.mxu0 0
  %434 = vmatpush1.bf16.msra.mxu0 0
  %435 = vmatprep.subr.bf16.mxu0 0
  %436 = vmatpush1.bf16.msra.mxu0 0
  %437 = vmatprep.subr.bf16.mxu0 0
  %438 = vmatpush1.bf16.msra.mxu0 0
  %439 = vmatprep.subr.bf16.mxu0 0
  %440 = vmatpush1.bf16.msra.mxu0 0
  %441 = vmatprep.subr.bf16.mxu0 0
  %442 = vmatpush1.bf16.msra.mxu0 0
  %443 = vmatprep.subr.bf16.mxu0 0
  %444 = vmatpush1.bf16.msra.mxu0 0
  %445 = vmatprep.subr.bf16.mxu0 0
  %446 = vmatpush1.bf16.msra.mxu0 0
  %447 = vmatprep.subr.bf16.mxu0 0
  %448 = vmatpush1.bf16.msra.mxu0 0
  %449 = vmatprep.subr.bf16.mxu0 0
  %450 = vmatpush1.bf16.msra.mxu0 0
  %451 = vmatprep.subr.bf16.mxu0 0
  %452 = vmatpush1.bf16.msra.mxu0 0
  %453 = vmatprep.subr.bf16.mxu0 0
  %454 = vmatpush1.bf16.msra.mxu0 0
  %455 = vmatprep.subr.bf16.mxu0 0
  %456 = vmatpush1.bf16.msra.mxu0 0
  %457 = vmatprep.mubr.bf16.mxu0 0
  %458 = vmatmul.mubr.bf16.gmra.mrb[0].mxu0 %v423
  %v459 = vpop.f32.mrb[0].mxu0
  %v460 = vadd.f32 %v421, %v459
  %v461 = vpop.f32.mrb[0].mxu0
  %v462 = vpop.f32.mrb[0].mxu0
  %v463 = vadd.f32 %v421, %v462
  %v464 = vpop.f32.mrb[0].mxu0
  %465 = vdwg.mxu0
  %468 = vrot.lane.b32.xlu0 %v460, 120
  %v469 = vpop.permute.xlu0 %468
  %470 = vrot.lane.b32.xlu0 %v463, 120
  %v471 = vpop.permute.xlu0 %470
  %474 = vrot.lane.b32.xlu0 %v460, 112
  %v475 = vpop.permute.xlu0 %474
  %476 = vrot.lane.b32.xlu0 %v463, 112
  %v477 = vpop.permute.xlu0 %476
  %480 = vrot.lane.b32.xlu0 %v460, 104
  %v481 = vpop.permute.xlu0 %480
  %482 = vrot.lane.b32.xlu0 %v463, 104
  %v483 = vpop.permute.xlu0 %482
  %v486 = vpack.c.bf16 %v463, %v460
  %v487 = vpack.c.bf16 %v471, %v469
  %v488 = vpack.c.bf16 %v477, %v475
  %v489 = vpack.c.bf16 %v483, %v481
  %494 = vrot.lane.b32.xlu0 %v486, 96
  %v495 = vpop.permute.xlu0 %494
  %496 = vrot.lane.b32.xlu0 %v487, 96
  %v497 = vpop.permute.xlu0 %496
  %498 = vrot.lane.b32.xlu0 %v488, 96
  %v499 = vpop.permute.xlu0 %498
  %500 = vrot.lane.b32.xlu0 %v489, 96
  %v501 = vpop.permute.xlu0 %500
  %vm502 = vcmask 64512
  %v504 = vsel %vm502, %v486, 0
  %v507 = vsel %vm502, %v487, 0
  %v510 = vsel %vm502, %v488, 0
  %v513 = vsel %vm502, %v489, 0
  %v516 = vsel %vm502, %v495, 0
  %v519 = vsel %vm502, %v497, 0
  %v522 = vsel %vm502, %v499, 0
  %v525 = vsel %vm502, %v501, 0
  %527 = vmatprep.subr.bf16.mxu0 0
  %528 = vmatpush1.bf16.xpose.msra.mxu0 %v516
  %529 = vmatprep.subr.bf16.mxu0 0
  %530 = vmatpush1.bf16.xpose.msra.mxu0 %v519
  %531 = vmatprep.subr.bf16.mxu0 0
  %532 = vmatpush1.bf16.xpose.msra.mxu0 %v522
  %533 = vmatprep.subr.bf16.mxu0 0
  %534 = vmatpush1.bf16.xpose.msra.mxu0 %v525
  %535 = vmatprep.subr.bf16.mxu0 0
  %536 = vmatpush1.bf16.xpose.msra.mxu0 0
  %537 = vmatprep.subr.bf16.mxu0 0
  %538 = vmatpush1.bf16.xpose.msra.mxu0 0
  %539 = vmatprep.subr.bf16.mxu0 0
  %540 = vmatpush1.bf16.xpose.msra.mxu0 0
  %541 = vmatprep.subr.bf16.mxu0 0
  %542 = vmatpush1.bf16.xpose.msra.mxu0 0
  %543 = vmatprep.subr.bf16.mxu0 0
  %544 = vmatpush1.bf16.xpose.msra.mxu0 0
  %545 = vmatprep.subr.bf16.mxu0 0
  %546 = vmatpush1.bf16.xpose.msra.mxu0 0
  %547 = vmatprep.subr.bf16.mxu0 0
  %548 = vmatpush1.bf16.xpose.msra.mxu0 0
  %549 = vmatprep.subr.bf16.mxu0 0
  %550 = vmatpush1.bf16.xpose.msra.mxu0 0
  %551 = vmatprep.subr.bf16.mxu0 0
  %552 = vmatpush1.bf16.xpose.msra.mxu0 0
  %553 = vmatprep.subr.bf16.mxu0 0
  %554 = vmatpush1.bf16.xpose.msra.mxu0 0
  %555 = vmatprep.subr.bf16.mxu0 0
  %556 = vmatpush1.bf16.xpose.msra.mxu0 0
  %557 = vmatprep.subr.bf16.mxu0 0
  %558 = vmatpush1.bf16.xpose.msra.mxu0 0
  %559 = vmatprep.mubr.bf16.mxu0 0
  %560 = vmatmul.mubr.bf16.gmra.mrb[0].mxu0 %v504
  %v561 = vpop.f32.mrb[0].mxu0
  %v562 = vadd.f32 %v363, %v561
  %v563 = vpop.f32.mrb[0].mxu0
  %v564 = vpop.f32.mrb[0].mxu0
  %v565 = vadd.f32 %v364, %v564
  %v566 = vpop.f32.mrb[0].mxu0
  %567 = vmatprep.mubr.bf16.mxu0 0
  %568 = vmatmul.mubr.bf16.gmra.mrb[0].mxu0 %v507
  %v569 = vpop.f32.mrb[0].mxu0
  %v570 = vadd.f32 %v365, %v569
  %v571 = vpop.f32.mrb[0].mxu0
  %v572 = vpop.f32.mrb[0].mxu0
  %v573 = vadd.f32 %v366, %v572
  %v574 = vpop.f32.mrb[0].mxu0
  %575 = vmatprep.mubr.bf16.mxu0 0
  %576 = vmatmul.mubr.bf16.gmra.mrb[0].mxu0 %v510
  %v577 = vpop.f32.mrb[0].mxu0
  %v578 = vadd.f32 %v367, %v577
  %v579 = vpop.f32.mrb[0].mxu0
  %v580 = vpop.f32.mrb[0].mxu0
  %v581 = vadd.f32 %v368, %v580
  %v582 = vpop.f32.mrb[0].mxu0
  %583 = vmatprep.mubr.bf16.mxu0 0
  %584 = vmatmul.mubr.bf16.gmra.mrb[0].mxu0 %v513
  %v585 = vpop.f32.mrb[0].mxu0
  %v586 = vadd.f32 %v369, %v585
  %v587 = vpop.f32.mrb[0].mxu0
  %v588 = vpop.f32.mrb[0].mxu0
  %v589 = vadd.f32 %v370, %v588
  %v590 = vpop.f32.mrb[0].mxu0
  %591 = vdwg.mxu0
  %v592 = vsel %vm53, %v562, -inf
  %593 = vmax.xlane.f32.xlu0 %v592
  %v594 = vpop.xlane.xlu0 %593
  %v595 = vsel %vm53, %v565, -inf
  %596 = vmax.xlane.f32.xlu0 %v595
  %v597 = vpop.xlane.xlu0 %596
  %v598 = vsel %vm53, %v570, -inf
  %599 = vmax.xlane.f32.xlu0 %v598
  %v600 = vpop.xlane.xlu0 %599
  %v601 = vsel %vm53, %v573, -inf
  %602 = vmax.xlane.f32.xlu0 %v601
  %v603 = vpop.xlane.xlu0 %602
  %v604 = vsel %vm53, %v578, -inf
  %605 = vmax.xlane.f32.xlu0 %v604
  %v606 = vpop.xlane.xlu0 %605
  %v607 = vsel %vm53, %v581, -inf
  %608 = vmax.xlane.f32.xlu0 %v607
  %v609 = vpop.xlane.xlu0 %608
  %v610 = vsel %vm53, %v586, -inf
  %611 = vmax.xlane.f32.xlu0 %v610
  %v612 = vpop.xlane.xlu0 %611
  %v613 = vsel %vm53, %v589, -inf
  %614 = vmax.xlane.f32.xlu0 %v613
  %v615 = vpop.xlane.xlu0 %614
  %v616 = vsub.f32 %v562, %v594
  %v617 = vsub.f32 %v565, %v597
  %v618 = vsub.f32 %v570, %v600
  %v619 = vsub.f32 %v573, %v603
  %v620 = vsub.f32 %v578, %v606
  %v621 = vsub.f32 %v581, %v609
  %v622 = vsub.f32 %v586, %v612
  %v623 = vsub.f32 %v589, %v615
  %v624 = vmul.f32 %v616, 1.442695
  %v625 = vpow.pop %v624
  %v626 = vmul.f32 %v617, 1.442695
  %v627 = vpow.pop %v626
  %v628 = vmul.f32 %v618, 1.442695
  %v629 = vpow.pop %v628
  %v630 = vmul.f32 %v619, 1.442695
  %v631 = vpow.pop %v630
  %v632 = vmul.f32 %v620, 1.442695
  %v633 = vpow.pop %v632
  %v634 = vmul.f32 %v621, 1.442695
  %v635 = vpow.pop %v634
  %v636 = vmul.f32 %v622, 1.442695
  %v637 = vpow.pop %v636
  %v638 = vmul.f32 %v623, 1.442695
  %v639 = vpow.pop %v638
  %v640 = vsel %vm53, %v625, 0.0
  %641 = vadd.xlane.f32.xlu0 %v640
  %v642 = vpop.xlane.xlu0 %641
  %v643 = vsel %vm53, %v627, 0.0
  %644 = vadd.xlane.f32.xlu0 %v643
  %v645 = vpop.xlane.xlu0 %644
  %v646 = vsel %vm53, %v629, 0.0
  %647 = vadd.xlane.f32.xlu0 %v646
  %v648 = vpop.xlane.xlu0 %647
  %v649 = vsel %vm53, %v631, 0.0
  %650 = vadd.xlane.f32.xlu0 %v649
  %v651 = vpop.xlane.xlu0 %650
  %v652 = vsel %vm53, %v633, 0.0
  %653 = vadd.xlane.f32.xlu0 %v652
  %v654 = vpop.xlane.xlu0 %653
  %v655 = vsel %vm53, %v635, 0.0
  %656 = vadd.xlane.f32.xlu0 %v655
  %v657 = vpop.xlane.xlu0 %656
  %v658 = vsel %vm53, %v637, 0.0
  %659 = vadd.xlane.f32.xlu0 %v658
  %v660 = vpop.xlane.xlu0 %659
  %v661 = vsel %vm53, %v639, 0.0
  %662 = vadd.xlane.f32.xlu0 %v661
  %v663 = vpop.xlane.xlu0 %662
  %v664 = vrcp.pop %v642
  %v665 = vrcp.pop %v645
  %v666 = vrcp.pop %v648
  %v667 = vrcp.pop %v651
  %v668 = vrcp.pop %v654
  %v669 = vrcp.pop %v657
  %v670 = vrcp.pop %v660
  %v671 = vrcp.pop %v663
  %v672 = vmul.f32 %v625, %v664
  %v673 = vmul.f32 %v627, %v665
  %v674 = vmul.f32 %v629, %v666
  %v675 = vmul.f32 %v631, %v667
  %v676 = vmul.f32 %v633, %v668
  %v677 = vmul.f32 %v635, %v669
  %v678 = vmul.f32 %v637, %v670
  %v679 = vmul.f32 %v639, %v671
  %v680 = vpack.c.bf16 %v673, %v672
  %v681 = vpack.c.bf16 %v675, %v674
  %v682 = vpack.c.bf16 %v677, %v676
  %v683 = vpack.c.bf16 %v679, %v678
  %684 = vrot.lane.b32.xlu0 %v486, 64
  %v685 = vpop.permute.xlu0 %684
  %686 = vrot.lane.b32.xlu0 %v487, 64
  %v687 = vpop.permute.xlu0 %686
  %688 = vrot.lane.b32.xlu0 %v488, 64
  %v689 = vpop.permute.xlu0 %688
  %690 = vrot.lane.b32.xlu0 %v489, 64
  %v691 = vpop.permute.xlu0 %690
  %v697 = vsel %vm53, %v680, 0
  %v700 = vsel %vm53, %v681, 0
  %v703 = vsel %vm53, %v682, 0
  %v706 = vsel %vm53, %v683, 0
  %708 = vmatprep.subr.bf16.mxu0 0
  %709 = vmatpush1.bf16.msra.mxu0 %v685
  %710 = vmatprep.subr.bf16.mxu0 0
  %711 = vmatpush1.bf16.msra.mxu0 %v687
  %712 = vmatprep.subr.bf16.mxu0 0
  %713 = vmatpush1.bf16.msra.mxu0 %v689
  %714 = vmatprep.subr.bf16.mxu0 0
  %715 = vmatpush1.bf16.msra.mxu0 %v691
  %716 = vmatprep.subr.bf16.mxu0 0
  %717 = vmatpush1.bf16.msra.mxu0 0
  %718 = vmatprep.subr.bf16.mxu0 0
  %719 = vmatpush1.bf16.msra.mxu0 0
  %720 = vmatprep.subr.bf16.mxu0 0
  %721 = vmatpush1.bf16.msra.mxu0 0
  %722 = vmatprep.subr.bf16.mxu0 0
  %723 = vmatpush1.bf16.msra.mxu0 0
  %724 = vmatprep.subr.bf16.mxu0 0
  %725 = vmatpush1.bf16.msra.mxu0 0
  %726 = vmatprep.subr.bf16.mxu0 0
  %727 = vmatpush1.bf16.msra.mxu0 0
  %728 = vmatprep.subr.bf16.mxu0 0
  %729 = vmatpush1.bf16.msra.mxu0 0
  %730 = vmatprep.subr.bf16.mxu0 0
  %731 = vmatpush1.bf16.msra.mxu0 0
  %732 = vmatprep.subr.bf16.mxu0 0
  %733 = vmatpush1.bf16.msra.mxu0 0
  %734 = vmatprep.subr.bf16.mxu0 0
  %735 = vmatpush1.bf16.msra.mxu0 0
  %736 = vmatprep.subr.bf16.mxu0 0
  %737 = vmatpush1.bf16.msra.mxu0 0
  %738 = vmatprep.subr.bf16.mxu0 0
  %739 = vmatpush1.bf16.msra.mxu0 0
  %740 = vmatprep.mubr.bf16.mxu0 0
  %741 = vmatmul.mubr.bf16.gmra.mrb[0].mxu0 %v697
  %v742 = vpop.f32.mrb[0].mxu0
  %v743 = vadd.f32 0.0, %v742
  %v744 = vpop.f32.mrb[0].mxu0
  %v745 = vpop.f32.mrb[0].mxu0
  %v746 = vadd.f32 0.0, %v745
  %v747 = vpop.f32.mrb[0].mxu0
  %748 = vmatprep.mubr.bf16.mxu0 0
  %749 = vmatmul.mubr.bf16.gmra.mrb[0].mxu0 %v700
  %v750 = vpop.f32.mrb[0].mxu0
  %v751 = vadd.f32 0.0, %v750
  %v752 = vpop.f32.mrb[0].mxu0
  %v753 = vpop.f32.mrb[0].mxu0
  %v754 = vadd.f32 0.0, %v753
  %v755 = vpop.f32.mrb[0].mxu0
  %756 = vmatprep.mubr.bf16.mxu0 0
  %757 = vmatmul.mubr.bf16.gmra.mrb[0].mxu0 %v703
  %v758 = vpop.f32.mrb[0].mxu0
  %v759 = vadd.f32 0.0, %v758
  %v760 = vpop.f32.mrb[0].mxu0
  %v761 = vpop.f32.mrb[0].mxu0
  %v762 = vadd.f32 0.0, %v761
  %v763 = vpop.f32.mrb[0].mxu0
  %764 = vmatprep.mubr.bf16.mxu0 0
  %765 = vmatmul.mubr.bf16.gmra.mrb[0].mxu0 %v706
  %v766 = vpop.f32.mrb[0].mxu0
  %v767 = vadd.f32 0.0, %v766
  %v768 = vpop.f32.mrb[0].mxu0
  %v769 = vpop.f32.mrb[0].mxu0
  %v770 = vadd.f32 0.0, %v769
  %v771 = vpop.f32.mrb[0].mxu0
  %772 = vdwg.mxu0
  %775 = vrot.lane.b32.xlu0 %v751, 8
  %v776 = vpop.permute.xlu0 %775
  %777 = vrot.lane.b32.xlu0 %v754, 8
  %v778 = vpop.permute.xlu0 %777
  %783 = vrot.lane.b32.xlu0 %v759, 16
  %v784 = vpop.permute.xlu0 %783
  %785 = vrot.lane.b32.xlu0 %v762, 16
  %v786 = vpop.permute.xlu0 %785
  %791 = vrot.lane.b32.xlu0 %v767, 24
  %v792 = vpop.permute.xlu0 %791
  %793 = vrot.lane.b32.xlu0 %v770, 24
  %v794 = vpop.permute.xlu0 %793
  %v797 = vsel %vm502, %v743, %v776
  %v798 = vsel %vm502, %v746, %v778
  %v799 = vsel %vm330, %v797, %v784
  %v800 = vsel %vm330, %v798, %v786
  %vm801 = vcmask 195584
  %v802 = vsel %vm801, %v799, %v792
  %v803 = vsel %vm801, %v800, %v794
  %v804 = vld [vmem:[%s6] sm:$0xff]
  %v805 = vld [vmem:[%s6 + $0x8] sm:$0xff]
  %v806 = vld [vmem:[%s6 + $0x10] sm:$0xff]
  %v807 = vld [vmem:[%s6 + $0x18] sm:$0xff]
  %v808 = vld [vmem:[%s6 + $0x20] sm:$0x1]
  %v809 = vpack.c.bf16 %v803, %v802
  %v810 = vpack.c.bf16 %v805, %v804
  %v811 = vpack.c.bf16 %v807, %v806
  %v812 = vlaneseq
  %v813 = vshrl.u32 %v812, 7
  %v814 = vsub.s32 0, %v813
  %v815 = vrot.slane %v808, %v814
  %v817 = vsel %vm332, %v809, 0
  %819 = vmatprep.subr.bf16.mxu0 0
  %820 = vmatpush1.bf16.msra.mxu0 %v810
  %821 = vmatprep.subr.bf16.mxu0 0
  %822 = vmatpush1.bf16.msra.mxu0 %v811
  %823 = vmatprep.subr.bf16.mxu0 0
  %824 = vmatpush1.bf16.msra.mxu0 0
  %825 = vmatprep.subr.bf16.mxu0 0
  %826 = vmatpush1.bf16.msra.mxu0 0
  %827 = vmatprep.subr.bf16.mxu0 0
  %828 = vmatpush1.bf16.msra.mxu0 0
  %829 = vmatprep.subr.bf16.mxu0 0
  %830 = vmatpush1.bf16.msra.mxu0 0
  %831 = vmatprep.subr.bf16.mxu0 0
  %832 = vmatpush1.bf16.msra.mxu0 0
  %833 = vmatprep.subr.bf16.mxu0 0
  %834 = vmatpush1.bf16.msra.mxu0 0
  %835 = vmatprep.subr.bf16.mxu0 0
  %836 = vmatpush1.bf16.msra.mxu0 0
  %837 = vmatprep.subr.bf16.mxu0 0
  %838 = vmatpush1.bf16.msra.mxu0 0
  %839 = vmatprep.subr.bf16.mxu0 0
  %840 = vmatpush1.bf16.msra.mxu0 0
  %841 = vmatprep.subr.bf16.mxu0 0
  %842 = vmatpush1.bf16.msra.mxu0 0
  %843 = vmatprep.subr.bf16.mxu0 0
  %844 = vmatpush1.bf16.msra.mxu0 0
  %845 = vmatprep.subr.bf16.mxu0 0
  %846 = vmatpush1.bf16.msra.mxu0 0
  %847 = vmatprep.subr.bf16.mxu0 0
  %848 = vmatpush1.bf16.msra.mxu0 0
  %849 = vmatprep.subr.bf16.mxu0 0
  %850 = vmatpush1.bf16.msra.mxu0 0
  %851 = vmatprep.mubr.bf16.mxu0 0
  %852 = vmatmul.mubr.bf16.gmra.mrb[0].mxu0 %v817
  %v853 = vpop.f32.mrb[0].mxu0
  %v854 = vadd.f32 %v815, %v853
  %v855 = vpop.f32.mrb[0].mxu0
  %v856 = vpop.f32.mrb[0].mxu0
  %v857 = vadd.f32 %v815, %v856
  %v858 = vpop.f32.mrb[0].mxu0
  %859 = vdwg.mxu0
  %v860 = vadd.f32 %v854, %v127
  %v861 = vadd.f32 %v857, %v132
  %v862 = vld [vmem:[%s6 + $0xf0] sm:$0xff]
  %v863 = vsel %vm332, %v860, 0.0
  %864 = vadd.xlane.f32.xlu0 %v863
  %v865 = vpop.xlane.xlu0 %864
  %v866 = vsel %vm332, %v861, 0.0
  %867 = vadd.xlane.f32.xlu0 %v866
  %v868 = vpop.xlane.xlu0 %867
  %v869 = vrcp.pop 32.0
  %v870 = vmul.f32 %v865, %v869
  %v871 = vmul.f32 %v868, %v869
  %v872 = vsub.f32 %v860, %v870
  %v873 = vsub.f32 %v861, %v871
  %v874 = vmul.f32 %v872, %v872
  %v875 = vmul.f32 %v873, %v873
  %v876 = vsel %vm332, %v874, 0.0
  %877 = vadd.xlane.f32.xlu0 %v876
  %v878 = vpop.xlane.xlu0 %877
  %v879 = vsel %vm332, %v875, 0.0
  %880 = vadd.xlane.f32.xlu0 %v879
  %v881 = vpop.xlane.xlu0 %880
  %v882 = vmul.f32 %v878, %v869
  %v883 = vmul.f32 %v881, %v869
  %v884 = vadd.f32 %v882, 1e-05
  %v885 = vadd.f32 %v883, 1e-05
  %v886 = vrsqrt.pop %v884
  %v887 = vrsqrt.pop %v885
  %v888 = vmul.f32 %v872, %v886
  %v889 = vmul.f32 %v873, %v887
  %v890 = vlaneseq
  %v891 = vshrl.u32 %v890, 7
  %v892 = vsub.s32 0, %v891
  %v893 = vrot.slane %v862, %v892
  %v894 = vmul.f32 %v888, %v893
  %v895 = vmul.f32 %v889, %v893
  %v896 = vlaneseq
  %v897 = vshrl.u32 %v896, 7
  %v898 = vsub.s32 1, %v897
  %v899 = vrot.slane %v862, %v898
  %v900 = vadd.f32 %v894, %v899
  %v901 = vadd.f32 %v895, %v899
  %v902 = vld [vmem:[%s5] sm:$0xff]
  %v903 = vld [vmem:[%s5 + $0x8] sm:$0xff]
  %v904 = vld [vmem:[%s5 + $0x10] sm:$0xff]
  %v905 = vld [vmem:[%s5 + $0x18] sm:$0xff]
  %v906 = vld [vmem:[%s5 + $0x20] sm:$0x1]
  %v907 = vld [vmem:[%s6 + $0x130] sm:$0xff]
  %v908 = vld [vmem:[%s6 + $0x138] sm:$0xff]
  %v909 = vld [vmem:[%s6 + $0x140] sm:$0xff]
  %v910 = vld [vmem:[%s6 + $0x148] sm:$0xff]
  %v911 = vld [vmem:[%s6 + $0x150] sm:$0xff]
  %v912 = vld [vmem:[%s6 + $0x158] sm:$0xff]
  %v913 = vld [vmem:[%s6 + $0x160] sm:$0xff]
  %v914 = vld [vmem:[%s6 + $0x168] sm:$0xff]
  %v915 = vld [vmem:[%s6 + $0x170] sm:$0xff]
  %v916 = vld [vmem:[%s6 + $0x178] sm:$0xff]
  %v917 = vld [vmem:[%s6 + $0x180] sm:$0xff]
  %v918 = vld [vmem:[%s6 + $0x188] sm:$0xff]
  %v919 = vld [vmem:[%s6 + $0x190] sm:$0xff]
  %v920 = vld [vmem:[%s6 + $0x198] sm:$0xff]
  %v921 = vld [vmem:[%s6 + $0x1a0] sm:$0xff]
  %v922 = vld [vmem:[%s6 + $0x1a8] sm:$0xff]
  %v923 = vld [vmem:[%s6 + $0x1b0] sm:$0x1]
  %v924 = vpack.c.bf16 %v901, %v900
  %v925 = vpack.c.bf16 %v903, %v902
  %v926 = vpack.c.bf16 %v905, %v904
  %v927 = vlaneseq
  %v928 = vshrl.u32 %v927, 7
  %v929 = vsub.s32 0, %v928
  %v930 = vrot.slane %v906, %v929
  %v932 = vsel %vm332, %v924, 0
  %934 = vmatprep.subr.bf16.mxu0 0
  %935 = vmatpush1.bf16.msra.mxu0 %v925
  %936 = vmatprep.subr.bf16.mxu0 0
  %937 = vmatpush1.bf16.msra.mxu0 %v926
  %938 = vmatprep.subr.bf16.mxu0 0
  %939 = vmatpush1.bf16.msra.mxu0 0
  %940 = vmatprep.subr.bf16.mxu0 0
  %941 = vmatpush1.bf16.msra.mxu0 0
  %942 = vmatprep.subr.bf16.mxu0 0
  %943 = vmatpush1.bf16.msra.mxu0 0
  %944 = vmatprep.subr.bf16.mxu0 0
  %945 = vmatpush1.bf16.msra.mxu0 0
  %946 = vmatprep.subr.bf16.mxu0 0
  %947 = vmatpush1.bf16.msra.mxu0 0
  %948 = vmatprep.subr.bf16.mxu0 0
  %949 = vmatpush1.bf16.msra.mxu0 0
  %950 = vmatprep.subr.bf16.mxu0 0
  %951 = vmatpush1.bf16.msra.mxu0 0
  %952 = vmatprep.subr.bf16.mxu0 0
  %953 = vmatpush1.bf16.msra.mxu0 0
  %954 = vmatprep.subr.bf16.mxu0 0
  %955 = vmatpush1.bf16.msra.mxu0 0
  %956 = vmatprep.subr.bf16.mxu0 0
  %957 = vmatpush1.bf16.msra.mxu0 0
  %958 = vmatprep.subr.bf16.mxu0 0
  %959 = vmatpush1.bf16.msra.mxu0 0
  %960 = vmatprep.subr.bf16.mxu0 0
  %961 = vmatpush1.bf16.msra.mxu0 0
  %962 = vmatprep.subr.bf16.mxu0 0
  %963 = vmatpush1.bf16.msra.mxu0 0
  %964 = vmatprep.subr.bf16.mxu0 0
  %965 = vmatpush1.bf16.msra.mxu0 0
  %966 = vmatprep.mubr.bf16.mxu0 0
  %967 = vmatmul.mubr.bf16.gmra.mrb[0].mxu0 %v932
  %v968 = vpop.f32.mrb[0].mxu0
  %v969 = vadd.f32 %v930, %v968
  %v970 = vpop.f32.mrb[0].mxu0
  %v971 = vpop.f32.mrb[0].mxu0
  %v972 = vadd.f32 %v930, %v971
  %v973 = vpop.f32.mrb[0].mxu0
  %974 = vdwg.mxu0
  %v975 = vmax.f32 %v969, 0.0
  %v976 = vmax.f32 %v972, 0.0
  %v977 = vpack.c.bf16 %v976, %v975
  %v978 = vpack.c.bf16 %v908, %v907
  %v979 = vpack.c.bf16 %v910, %v909
  %v980 = vpack.c.bf16 %v912, %v911
  %v981 = vpack.c.bf16 %v914, %v913
  %v982 = vpack.c.bf16 %v916, %v915
  %v983 = vpack.c.bf16 %v918, %v917
  %v984 = vpack.c.bf16 %v920, %v919
  %v985 = vpack.c.bf16 %v922, %v921
  %v986 = vlaneseq
  %v987 = vshrl.u32 %v986, 7
  %v988 = vsub.s32 0, %v987
  %v989 = vrot.slane %v923, %v988
  %990 = vmatprep.subr.bf16.mxu0 0
  %991 = vmatpush1.bf16.msra.mxu0 %v978
  %992 = vmatprep.subr.bf16.mxu0 0
  %993 = vmatpush1.bf16.msra.mxu0 %v979
  %994 = vmatprep.subr.bf16.mxu0 0
  %995 = vmatpush1.bf16.msra.mxu0 %v980
  %996 = vmatprep.subr.bf16.mxu0 0
  %997 = vmatpush1.bf16.msra.mxu0 %v981
  %998 = vmatprep.subr.bf16.mxu0 0
  %999 = vmatpush1.bf16.msra.mxu0 %v982
  %1000 = vmatprep.subr.bf16.mxu0 0
  %1001 = vmatpush1.bf16.msra.mxu0 %v983
  %1002 = vmatprep.subr.bf16.mxu0 0
  %1003 = vmatpush1.bf16.msra.mxu0 %v984
  %1004 = vmatprep.subr.bf16.mxu0 0
  %1005 = vmatpush1.bf16.msra.mxu0 %v985
  %1006 = vmatprep.subr.bf16.mxu0 0
  %1007 = vmatpush1.bf16.msra.mxu0 0
  %1008 = vmatprep.subr.bf16.mxu0 0
  %1009 = vmatpush1.bf16.msra.mxu0 0
  %1010 = vmatprep.subr.bf16.mxu0 0
  %1011 = vmatpush1.bf16.msra.mxu0 0
  %1012 = vmatprep.subr.bf16.mxu0 0
  %1013 = vmatpush1.bf16.msra.mxu0 0
  %1014 = vmatprep.subr.bf16.mxu0 0
  %1015 = vmatpush1.bf16.msra.mxu0 0
  %1016 = vmatprep.subr.bf16.mxu0 0
  %1017 = vmatpush1.bf16.msra.mxu0 0
  %1018 = vmatprep.subr.bf16.mxu0 0
  %1019 = vmatpush1.bf16.msra.mxu0 0
  %1020 = vmatprep.subr.bf16.mxu0 0
  %1021 = vmatpush1.bf16.msra.mxu0 0
  %1022 = vmatprep.mubr.bf16.mxu0 0
  %1023 = vmatmul.mubr.bf16.gmra.mrb[0].mxu0 %v977
  %v1024 = vpop.f32.mrb[0].mxu0
  %v1025 = vadd.f32 %v989, %v1024
  %v1026 = vpop.f32.mrb[0].mxu0
  %v1027 = vpop.f32.mrb[0].mxu0
  %v1028 = vadd.f32 %v989, %v1027
  %v1029 = vpop.f32.mrb[0].mxu0
  %1030 = vdwg.mxu0
  %v1031 = vadd.f32 %v1025, %v900
  %v1032 = vadd.f32 %v1028, %v901
  %v1033 = vld [vmem:[%s6 + $0xf8] sm:$0xff]
  %v1034 = vsel %vm332, %v1031, 0.0
  %1035 = vadd.xlane.f32.xlu0 %v1034
  %v1036 = vpop.xlane.xlu0 %1035
  %v1037 = vsel %vm332, %v1032, 0.0
  %1038 = vadd.xlane.f32.xlu0 %v1037
  %v1039 = vpop.xlane.xlu0 %1038
  %v1040 = vmul.f32 %v1036, %v869
  %v1041 = vmul.f32 %v1039, %v869
  %v1042 = vsub.f32 %v1031, %v1040
  %v1043 = vsub.f32 %v1032, %v1041
  %v1044 = vmul.f32 %v1042, %v1042
  %v1045 = vmul.f32 %v1043, %v1043
  %v1046 = vsel %vm332, %v1044, 0.0
  %1047 = vadd.xlane.f32.xlu0 %v1046
  %v1048 = vpop.xlane.xlu0 %1047
  %v1049 = vsel %vm332, %v1045, 0.0
  %1050 = vadd.xlane.f32.xlu0 %v1049
  %v1051 = vpop.xlane.xlu0 %1050
  %v1052 = vmul.f32 %v1048, %v869
  %v1053 = vmul.f32 %v1051, %v869
  %v1054 = vadd.f32 %v1052, 1e-05
  %v1055 = vadd.f32 %v1053, 1e-05
  %v1056 = vrsqrt.pop %v1054
  %v1057 = vrsqrt.pop %v1055
  %v1058 = vmul.f32 %v1042, %v1056
  %v1059 = vmul.f32 %v1043, %v1057
  %v1060 = vlaneseq
  %v1061 = vshrl.u32 %v1060, 7
  %v1062 = vsub.s32 0, %v1061
  %v1063 = vrot.slane %v1033, %v1062
  %v1064 = vmul.f32 %v1058, %v1063
  %v1065 = vmul.f32 %v1059, %v1063
  %v1066 = vlaneseq
  %v1067 = vshrl.u32 %v1066, 7
  %v1068 = vsub.s32 1, %v1067
  %v1069 = vrot.slane %v1033, %v1068
  %v1070 = vadd.f32 %v1064, %v1069
  %v1071 = vadd.f32 %v1065, %v1069
  %v1072 = vld [vmem:[%s4 + $0x28] sm:$0xff]
  %v1073 = vld [vmem:[%s4 + $0x30] sm:$0xff]
  %v1074 = vld [vmem:[%s4 + $0x38] sm:$0xff]
  %v1075 = vld [vmem:[%s4 + $0x40] sm:$0xff]
  %v1076 = vld [vmem:[%s4 + $0x48] sm:$0x1]
  %v1077 = vpack.c.bf16 %v1071, %v1070
  %v1078 = vpack.c.bf16 %v1073, %v1072
  %v1079 = vpack.c.bf16 %v1075, %v1074
  %v1080 = vlaneseq
  %v1081 = vshrl.u32 %v1080, 7
  %v1082 = vsub.s32 0, %v1081
  %v1083 = vrot.slane %v1076, %v1082
  %v1085 = vsel %vm332, %v1077, 0
  %1087 = vmatprep.subr.bf16.mxu0 0
  %1088 = vmatpush1.bf16.msra.mxu0 %v1078
  %1089 = vmatprep.subr.bf16.mxu0 0
  %1090 = vmatpush1.bf16.msra.mxu0 %v1079
  %1091 = vmatprep.subr.bf16.mxu0 0
  %1092 = vmatpush1.bf16.msra.mxu0 0
  %1093 = vmatprep.subr.bf16.mxu0 0
  %1094 = vmatpush1.bf16.msra.mxu0 0
  %1095 = vmatprep.subr.bf16.mxu0 0
  %1096 = vmatpush1.bf16.msra.mxu0 0
  %1097 = vmatprep.subr.bf16.mxu0 0
  %1098 = vmatpush1.bf16.msra.mxu0 0
  %1099 = vmatprep.subr.bf16.mxu0 0
  %1100 = vmatpush1.bf16.msra.mxu0 0
  %1101 = vmatprep.subr.bf16.mxu0 0
  %1102 = vmatpush1.bf16.msra.mxu0 0
  %1103 = vmatprep.subr.bf16.mxu0 0
  %1104 = vmatpush1.bf16.msra.mxu0 0
  %1105 = vmatprep.subr.bf16.mxu0 0
  %1106 = vmatpush1.bf16.msra.mxu0 0
  %1107 = vmatprep.subr.bf16.mxu0 0
  %1108 = vmatpush1.bf16.msra.mxu0 0
  %1109 = vmatprep.subr.bf16.mxu0 0
  %1110 = vmatpush1.bf16.msra.mxu0 0
  %1111 = vmatprep.subr.bf16.mxu0 0
  %1112 = vmatpush1.bf16.msra.mxu0 0
  %1113 = vmatprep.subr.bf16.mxu0 0
  %1114 = vmatpush1.bf16.msra.mxu0 0
  %1115 = vmatprep.subr.bf16.mxu0 0
  %1116 = vmatpush1.bf16.msra.mxu0 0
  %1117 = vmatprep.subr.bf16.mxu0 0
  %1118 = vmatpush1.bf16.msra.mxu0 0
  %1119 = vmatprep.mubr.bf16.mxu0 0
  %1120 = vmatmul.mubr.bf16.gmra.mrb[0].mxu0 %v1085
  %v1121 = vpop.f32.mrb[0].mxu0
  %v1122 = vadd.f32 %v1083, %v1121
  %v1123 = vpop.f32.mrb[0].mxu0
  %v1124 = vpop.f32.mrb[0].mxu0
  %v1125 = vadd.f32 %v1083, %v1124
  %v1126 = vpop.f32.mrb[0].mxu0
  %1127 = vdwg.mxu0
  %1130 = vrot.lane.b32.xlu0 %v1122, 120
  %v1131 = vpop.permute.xlu0 %1130
  %1132 = vrot.lane.b32.xlu0 %v1125, 120
  %v1133 = vpop.permute.xlu0 %1132
  %1136 = vrot.lane.b32.xlu0 %v1122, 112
  %v1137 = vpop.permute.xlu0 %1136
  %1138 = vrot.lane.b32.xlu0 %v1125, 112
  %v1139 = vpop.permute.xlu0 %1138
  %1142 = vrot.lane.b32.xlu0 %v1122, 104
  %v1143 = vpop.permute.xlu0 %1142
  %1144 = vrot.lane.b32.xlu0 %v1125, 104
  %v1145 = vpop.permute.xlu0 %1144
  %v1148 = vpack.c.bf16 %v1125, %v1122
  %v1149 = vpack.c.bf16 %v1133, %v1131
  %v1150 = vpack.c.bf16 %v1139, %v1137
  %v1151 = vpack.c.bf16 %v1145, %v1143
  %1156 = vrot.lane.b32.xlu0 %v1148, 96
  %v1157 = vpop.permute.xlu0 %1156
  %1158 = vrot.lane.b32.xlu0 %v1149, 96
  %v1159 = vpop.permute.xlu0 %1158
  %1160 = vrot.lane.b32.xlu0 %v1150, 96
  %v1161 = vpop.permute.xlu0 %1160
  %1162 = vrot.lane.b32.xlu0 %v1151, 96
  %v1163 = vpop.permute.xlu0 %1162
  %v1165 = vsel %vm502, %v1148, 0
  %v1168 = vsel %vm502, %v1149, 0
  %v1171 = vsel %vm502, %v1150, 0
  %v1174 = vsel %vm502, %v1151, 0
  %v1177 = vsel %vm502, %v1157, 0
  %v1180 = vsel %vm502, %v1159, 0
  %v1183 = vsel %vm502, %v1161, 0
  %v1186 = vsel %vm502, %v1163, 0
  %1188 = vmatprep.subr.bf16.mxu0 0
  %1189 = vmatpush1.bf16.xpose.msra.mxu0 %v1177
  %1190 = vmatprep.subr.bf16.mxu0 0
  %1191 = vmatpush1.bf16.xpose.msra.mxu0 %v1180
  %1192 = vmatprep.subr.bf16.mxu0 0
  %1193 = vmatpush1.bf16.xpose.msra.mxu0 %v1183
  %1194 = vmatprep.subr.bf16.mxu0 0
  %1195 = vmatpush1.bf16.xpose.msra.mxu0 %v1186
  %1196 = vmatprep.subr.bf16.mxu0 0
  %1197 = vmatpush1.bf16.xpose.msra.mxu0 0
  %1198 = vmatprep.subr.bf16.mxu0 0
  %1199 = vmatpush1.bf16.xpose.msra.mxu0 0
  %1200 = vmatprep.subr.bf16.mxu0 0
  %1201 = vmatpush1.bf16.xpose.msra.mxu0 0
  %1202 = vmatprep.subr.bf16.mxu0 0
  %1203 = vmatpush1.bf16.xpose.msra.mxu0 0
  %1204 = vmatprep.subr.bf16.mxu0 0
  %1205 = vmatpush1.bf16.xpose.msra.mxu0 0
  %1206 = vmatprep.subr.bf16.mxu0 0
  %1207 = vmatpush1.bf16.xpose.msra.mxu0 0
  %1208 = vmatprep.subr.bf16.mxu0 0
  %1209 = vmatpush1.bf16.xpose.msra.mxu0 0
  %1210 = vmatprep.subr.bf16.mxu0 0
  %1211 = vmatpush1.bf16.xpose.msra.mxu0 0
  %1212 = vmatprep.subr.bf16.mxu0 0
  %1213 = vmatpush1.bf16.xpose.msra.mxu0 0
  %1214 = vmatprep.subr.bf16.mxu0 0
  %1215 = vmatpush1.bf16.xpose.msra.mxu0 0
  %1216 = vmatprep.subr.bf16.mxu0 0
  %1217 = vmatpush1.bf16.xpose.msra.mxu0 0
  %1218 = vmatprep.subr.bf16.mxu0 0
  %1219 = vmatpush1.bf16.xpose.msra.mxu0 0
  %1220 = vmatprep.mubr.bf16.mxu0 0
  %1221 = vmatmul.mubr.bf16.gmra.mrb[0].mxu0 %v1165
  %v1222 = vpop.f32.mrb[0].mxu0
  %v1223 = vadd.f32 %v363, %v1222
  %v1224 = vpop.f32.mrb[0].mxu0
  %v1225 = vpop.f32.mrb[0].mxu0
  %v1226 = vadd.f32 %v364, %v1225
  %v1227 = vpop.f32.mrb[0].mxu0
  %1228 = vmatprep.mubr.bf16.mxu0 0
  %1229 = vmatmul.mubr.bf16.gmra.mrb[0].mxu0 %v1168
  %v1230 = vpop.f32.mrb[0].mxu0
  %v1231 = vadd.f32 %v365, %v1230
  %v1232 = vpop.f32.mrb[0].mxu0
  %v1233 = vpop.f32.mrb[0].mxu0
  %v1234 = vadd.f32 %v366, %v1233
  %v1235 = vpop.f32.mrb[0].mxu0
  %1236 = vmatprep.mubr.bf16.mxu0 0
  %1237 = vmatmul.mubr.bf16.gmra.mrb[0].mxu0 %v1171
  %v1238 = vpop.f32.mrb[0].mxu0
  %v1239 = vadd.f32 %v367, %v1238
  %v1240 = vpop.f32.mrb[0].mxu0
  %v1241 = vpop.f32.mrb[0].mxu0
  %v1242 = vadd.f32 %v368, %v1241
  %v1243 = vpop.f32.mrb[0].mxu0
  %1244 = vmatprep.mubr.bf16.mxu0 0
  %1245 = vmatmul.mubr.bf16.gmra.mrb[0].mxu0 %v1174
  %v1246 = vpop.f32.mrb[0].mxu0
  %v1247 = vadd.f32 %v369, %v1246
  %v1248 = vpop.f32.mrb[0].mxu0
  %v1249 = vpop.f32.mrb[0].mxu0
  %v1250 = vadd.f32 %v370, %v1249
  %v1251 = vpop.f32.mrb[0].mxu0
  %1252 = vdwg.mxu0
  %v1253 = vsel %vm53, %v1223, -inf
  %1254 = vmax.xlane.f32.xlu0 %v1253
  %v1255 = vpop.xlane.xlu0 %1254
  %v1256 = vsel %vm53, %v1226, -inf
  %1257 = vmax.xlane.f32.xlu0 %v1256
  %v1258 = vpop.xlane.xlu0 %1257
  %v1259 = vsel %vm53, %v1231, -inf
  %1260 = vmax.xlane.f32.xlu0 %v1259
  %v1261 = vpop.xlane.xlu0 %1260
  %v1262 = vsel %vm53, %v1234, -inf
  %1263 = vmax.xlane.f32.xlu0 %v1262
  %v1264 = vpop.xlane.xlu0 %1263
  %v1265 = vsel %vm53, %v1239, -inf
  %1266 = vmax.xlane.f32.xlu0 %v1265
  %v1267 = vpop.xlane.xlu0 %1266
  %v1268 = vsel %vm53, %v1242, -inf
  %1269 = vmax.xlane.f32.xlu0 %v1268
  %v1270 = vpop.xlane.xlu0 %1269
  %v1271 = vsel %vm53, %v1247, -inf
  %1272 = vmax.xlane.f32.xlu0 %v1271
  %v1273 = vpop.xlane.xlu0 %1272
  %v1274 = vsel %vm53, %v1250, -inf
  %1275 = vmax.xlane.f32.xlu0 %v1274
  %v1276 = vpop.xlane.xlu0 %1275
  %v1277 = vsub.f32 %v1223, %v1255
  %v1278 = vsub.f32 %v1226, %v1258
  %v1279 = vsub.f32 %v1231, %v1261
  %v1280 = vsub.f32 %v1234, %v1264
  %v1281 = vsub.f32 %v1239, %v1267
  %v1282 = vsub.f32 %v1242, %v1270
  %v1283 = vsub.f32 %v1247, %v1273
  %v1284 = vsub.f32 %v1250, %v1276
  %v1285 = vmul.f32 %v1277, 1.442695
  %v1286 = vpow.pop %v1285
  %v1287 = vmul.f32 %v1278, 1.442695
  %v1288 = vpow.pop %v1287
  %v1289 = vmul.f32 %v1279, 1.442695
  %v1290 = vpow.pop %v1289
  %v1291 = vmul.f32 %v1280, 1.442695
  %v1292 = vpow.pop %v1291
  %v1293 = vmul.f32 %v1281, 1.442695
  %v1294 = vpow.pop %v1293
  %v1295 = vmul.f32 %v1282, 1.442695
  %v1296 = vpow.pop %v1295
  %v1297 = vmul.f32 %v1283, 1.442695
  %v1298 = vpow.pop %v1297
  %v1299 = vmul.f32 %v1284, 1.442695
  %v1300 = vpow.pop %v1299
  %v1301 = vsel %vm53, %v1286, 0.0
  %1302 = vadd.xlane.f32.xlu0 %v1301
  %v1303 = vpop.xlane.xlu0 %1302
  %v1304 = vsel %vm53, %v1288, 0.0
  %1305 = vadd.xlane.f32.xlu0 %v1304
  %v1306 = vpop.xlane.xlu0 %1305
  %v1307 = vsel %vm53, %v1290, 0.0
  %1308 = vadd.xlane.f32.xlu0 %v1307
  %v1309 = vpop.xlane.xlu0 %1308
  %v1310 = vsel %vm53, %v1292, 0.0
  %1311 = vadd.xlane.f32.xlu0 %v1310
  %v1312 = vpop.xlane.xlu0 %1311
  %v1313 = vsel %vm53, %v1294, 0.0
  %1314 = vadd.xlane.f32.xlu0 %v1313
  %v1315 = vpop.xlane.xlu0 %1314
  %v1316 = vsel %vm53, %v1296, 0.0
  %1317 = vadd.xlane.f32.xlu0 %v1316
  %v1318 = vpop.xlane.xlu0 %1317
  %v1319 = vsel %vm53, %v1298, 0.0
  %1320 = vadd.xlane.f32.xlu0 %v1319
  %v1321 = vpop.xlane.xlu0 %1320
  %v1322 = vsel %vm53, %v1300, 0.0
  %1323 = vadd.xlane.f32.xlu0 %v1322
  %v1324 = vpop.xlane.xlu0 %1323
  %v1325 = vrcp.pop %v1303
  %v1326 = vrcp.pop %v1306
  %v1327 = vrcp.pop %v1309
  %v1328 = vrcp.pop %v1312
  %v1329 = vrcp.pop %v1315
  %v1330 = vrcp.pop %v1318
  %v1331 = vrcp.pop %v1321
  %v1332 = vrcp.pop %v1324
  %v1333 = vmul.f32 %v1286, %v1325
  %v1334 = vmul.f32 %v1288, %v1326
  %v1335 = vmul.f32 %v1290, %v1327
  %v1336 = vmul.f32 %v1292, %v1328
  %v1337 = vmul.f32 %v1294, %v1329
  %v1338 = vmul.f32 %v1296, %v1330
  %v1339 = vmul.f32 %v1298, %v1331
  %v1340 = vmul.f32 %v1300, %v1332
  %v1341 = vpack.c.bf16 %v1334, %v1333
  %v1342 = vpack.c.bf16 %v1336, %v1335
  %v1343 = vpack.c.bf16 %v1338, %v1337
  %v1344 = vpack.c.bf16 %v1340, %v1339
  %1345 = vrot.lane.b32.xlu0 %v1148, 64
  %v1346 = vpop.permute.xlu0 %1345
  %1347 = vrot.lane.b32.xlu0 %v1149, 64
  %v1348 = vpop.permute.xlu0 %1347
  %1349 = vrot.lane.b32.xlu0 %v1150, 64
  %v1350 = vpop.permute.xlu0 %1349
  %1351 = vrot.lane.b32.xlu0 %v1151, 64
  %v1352 = vpop.permute.xlu0 %1351
  %v1358 = vsel %vm53, %v1341, 0
  %v1361 = vsel %vm53, %v1342, 0
  %v1364 = vsel %vm53, %v1343, 0
  %v1367 = vsel %vm53, %v1344, 0
  %1369 = vmatprep.subr.bf16.mxu0 0
  %1370 = vmatpush1.bf16.msra.mxu0 %v1346
  %1371 = vmatprep.subr.bf16.mxu0 0
  %1372 = vmatpush1.bf16.msra.mxu0 %v1348
  %1373 = vmatprep.subr.bf16.mxu0 0
  %1374 = vmatpush1.bf16.msra.mxu0 %v1350
  %1375 = vmatprep.subr.bf16.mxu0 0
  %1376 = vmatpush1.bf16.msra.mxu0 %v1352
  %1377 = vmatprep.subr.bf16.mxu0 0
  %1378 = vmatpush1.bf16.msra.mxu0 0
  %1379 = vmatprep.subr.bf16.mxu0 0
  %1380 = vmatpush1.bf16.msra.mxu0 0
  %1381 = vmatprep.subr.bf16.mxu0 0
  %1382 = vmatpush1.bf16.msra.mxu0 0
  %1383 = vmatprep.subr.bf16.mxu0 0
  %1384 = vmatpush1.bf16.msra.mxu0 0
  %1385 = vmatprep.subr.bf16.mxu0 0
  %1386 = vmatpush1.bf16.msra.mxu0 0
  %1387 = vmatprep.subr.bf16.mxu0 0
  %1388 = vmatpush1.bf16.msra.mxu0 0
  %1389 = vmatprep.subr.bf16.mxu0 0
  %1390 = vmatpush1.bf16.msra.mxu0 0
  %1391 = vmatprep.subr.bf16.mxu0 0
  %1392 = vmatpush1.bf16.msra.mxu0 0
  %1393 = vmatprep.subr.bf16.mxu0 0
  %1394 = vmatpush1.bf16.msra.mxu0 0
  %1395 = vmatprep.subr.bf16.mxu0 0
  %1396 = vmatpush1.bf16.msra.mxu0 0
  %1397 = vmatprep.subr.bf16.mxu0 0
  %1398 = vmatpush1.bf16.msra.mxu0 0
  %1399 = vmatprep.subr.bf16.mxu0 0
  %1400 = vmatpush1.bf16.msra.mxu0 0
  %1401 = vmatprep.mubr.bf16.mxu0 0
  %1402 = vmatmul.mubr.bf16.gmra.mrb[0].mxu0 %v1358
  %v1403 = vpop.f32.mrb[0].mxu0
  %v1404 = vadd.f32 0.0, %v1403
  %v1405 = vpop.f32.mrb[0].mxu0
  %v1406 = vpop.f32.mrb[0].mxu0
  %v1407 = vadd.f32 0.0, %v1406
  %v1408 = vpop.f32.mrb[0].mxu0
  %1409 = vmatprep.mubr.bf16.mxu0 0
  %1410 = vmatmul.mubr.bf16.gmra.mrb[0].mxu0 %v1361
  %v1411 = vpop.f32.mrb[0].mxu0
  %v1412 = vadd.f32 0.0, %v1411
  %v1413 = vpop.f32.mrb[0].mxu0
  %v1414 = vpop.f32.mrb[0].mxu0
  %v1415 = vadd.f32 0.0, %v1414
  %v1416 = vpop.f32.mrb[0].mxu0
  %1417 = vmatprep.mubr.bf16.mxu0 0
  %1418 = vmatmul.mubr.bf16.gmra.mrb[0].mxu0 %v1364
  %v1419 = vpop.f32.mrb[0].mxu0
  %v1420 = vadd.f32 0.0, %v1419
  %v1421 = vpop.f32.mrb[0].mxu0
  %v1422 = vpop.f32.mrb[0].mxu0
  %v1423 = vadd.f32 0.0, %v1422
  %v1424 = vpop.f32.mrb[0].mxu0
  %1425 = vmatprep.mubr.bf16.mxu0 0
  %1426 = vmatmul.mubr.bf16.gmra.mrb[0].mxu0 %v1367
  %v1427 = vpop.f32.mrb[0].mxu0
  %v1428 = vadd.f32 0.0, %v1427
  %v1429 = vpop.f32.mrb[0].mxu0
  %v1430 = vpop.f32.mrb[0].mxu0
  %v1431 = vadd.f32 0.0, %v1430
  %v1432 = vpop.f32.mrb[0].mxu0
  %1433 = vdwg.mxu0
  %1436 = vrot.lane.b32.xlu0 %v1412, 8
  %v1437 = vpop.permute.xlu0 %1436
  %1438 = vrot.lane.b32.xlu0 %v1415, 8
  %v1439 = vpop.permute.xlu0 %1438
  %1444 = vrot.lane.b32.xlu0 %v1420, 16
  %v1445 = vpop.permute.xlu0 %1444
  %1446 = vrot.lane.b32.xlu0 %v1423, 16
  %v1447 = vpop.permute.xlu0 %1446
  %1452 = vrot.lane.b32.xlu0 %v1428, 24
  %v1453 = vpop.permute.xlu0 %1452
  %1454 = vrot.lane.b32.xlu0 %v1431, 24
  %v1455 = vpop.permute.xlu0 %1454
  %v1458 = vsel %vm502, %v1404, %v1437
  %v1459 = vsel %vm502, %v1407, %v1439
  %v1460 = vsel %vm330, %v1458, %v1445
  %v1461 = vsel %vm330, %v1459, %v1447
  %v1462 = vsel %vm801, %v1460, %v1453
  %v1463 = vsel %vm801, %v1461, %v1455
  %v1464 = vld [vmem:[%s6 + $0x28] sm:$0xff]
  %v1465 = vld [vmem:[%s6 + $0x30] sm:$0xff]
  %v1466 = vld [vmem:[%s6 + $0x38] sm:$0xff]
  %v1467 = vld [vmem:[%s6 + $0x40] sm:$0xff]
  %v1468 = vld [vmem:[%s6 + $0x48] sm:$0x1]
  %v1469 = vpack.c.bf16 %v1463, %v1462
  %v1470 = vpack.c.bf16 %v1465, %v1464
  %v1471 = vpack.c.bf16 %v1467, %v1466
  %v1472 = vlaneseq
  %v1473 = vshrl.u32 %v1472, 7
  %v1474 = vsub.s32 0, %v1473
  %v1475 = vrot.slane %v1468, %v1474
  %v1477 = vsel %vm332, %v1469, 0
  %1479 = vmatprep.subr.bf16.mxu0 0
  %1480 = vmatpush1.bf16.msra.mxu0 %v1470
  %1481 = vmatprep.subr.bf16.mxu0 0
  %1482 = vmatpush1.bf16.msra.mxu0 %v1471
  %1483 = vmatprep.subr.bf16.mxu0 0
  %1484 = vmatpush1.bf16.msra.mxu0 0
  %1485 = vmatprep.subr.bf16.mxu0 0
  %1486 = vmatpush1.bf16.msra.mxu0 0
  %1487 = vmatprep.subr.bf16.mxu0 0
  %1488 = vmatpush1.bf16.msra.mxu0 0
  %1489 = vmatprep.subr.bf16.mxu0 0
  %1490 = vmatpush1.bf16.msra.mxu0 0
  %1491 = vmatprep.subr.bf16.mxu0 0
  %1492 = vmatpush1.bf16.msra.mxu0 0
  %1493 = vmatprep.subr.bf16.mxu0 0
  %1494 = vmatpush1.bf16.msra.mxu0 0
  %1495 = vmatprep.subr.bf16.mxu0 0
  %1496 = vmatpush1.bf16.msra.mxu0 0
  %1497 = vmatprep.subr.bf16.mxu0 0
  %1498 = vmatpush1.bf16.msra.mxu0 0
  %1499 = vmatprep.subr.bf16.mxu0 0
  %1500 = vmatpush1.bf16.msra.mxu0 0
  %1501 = vmatprep.subr.bf16.mxu0 0
  %1502 = vmatpush1.bf16.msra.mxu0 0
  %1503 = vmatprep.subr.bf16.mxu0 0
  %1504 = vmatpush1.bf16.msra.mxu0 0
  %1505 = vmatprep.subr.bf16.mxu0 0
  %1506 = vmatpush1.bf16.msra.mxu0 0
  %1507 = vmatprep.subr.bf16.mxu0 0
  %1508 = vmatpush1.bf16.msra.mxu0 0
  %1509 = vmatprep.subr.bf16.mxu0 0
  %1510 = vmatpush1.bf16.msra.mxu0 0
  %1511 = vmatprep.mubr.bf16.mxu0 0
  %1512 = vmatmul.mubr.bf16.gmra.mrb[0].mxu0 %v1477
  %v1513 = vpop.f32.mrb[0].mxu0
  %v1514 = vadd.f32 %v1475, %v1513
  %v1515 = vpop.f32.mrb[0].mxu0
  %v1516 = vpop.f32.mrb[0].mxu0
  %v1517 = vadd.f32 %v1475, %v1516
  %v1518 = vpop.f32.mrb[0].mxu0
  %1519 = vdwg.mxu0
  %v1520 = vadd.f32 %v1514, %v1070
  %v1521 = vadd.f32 %v1517, %v1071
  %v1522 = vld [vmem:[%s6 + $0x100] sm:$0xff]
  %v1523 = vsel %vm332, %v1520, 0.0
  %1524 = vadd.xlane.f32.xlu0 %v1523
  %v1525 = vpop.xlane.xlu0 %1524
  %v1526 = vsel %vm332, %v1521, 0.0
  %1527 = vadd.xlane.f32.xlu0 %v1526
  %v1528 = vpop.xlane.xlu0 %1527
  %v1529 = vmul.f32 %v1525, %v869
  %v1530 = vmul.f32 %v1528, %v869
  %v1531 = vsub.f32 %v1520, %v1529
  %v1532 = vsub.f32 %v1521, %v1530
  %v1533 = vmul.f32 %v1531, %v1531
  %v1534 = vmul.f32 %v1532, %v1532
  %v1535 = vsel %vm332, %v1533, 0.0
  %1536 = vadd.xlane.f32.xlu0 %v1535
  %v1537 = vpop.xlane.xlu0 %1536
  %v1538 = vsel %vm332, %v1534, 0.0
  %1539 = vadd.xlane.f32.xlu0 %v1538
  %v1540 = vpop.xlane.xlu0 %1539
  %v1541 = vmul.f32 %v1537, %v869
  %v1542 = vmul.f32 %v1540, %v869
  %v1543 = vadd.f32 %v1541, 1e-05
  %v1544 = vadd.f32 %v1542, 1e-05
  %v1545 = vrsqrt.pop %v1543
  %v1546 = vrsqrt.pop %v1544
  %v1547 = vmul.f32 %v1531, %v1545
  %v1548 = vmul.f32 %v1532, %v1546
  %v1549 = vlaneseq
  %v1550 = vshrl.u32 %v1549, 7
  %v1551 = vsub.s32 0, %v1550
  %v1552 = vrot.slane %v1522, %v1551
  %v1553 = vmul.f32 %v1547, %v1552
  %v1554 = vmul.f32 %v1548, %v1552
  %v1555 = vlaneseq
  %v1556 = vshrl.u32 %v1555, 7
  %v1557 = vsub.s32 1, %v1556
  %v1558 = vrot.slane %v1522, %v1557
  %v1559 = vadd.f32 %v1553, %v1558
  %v1560 = vadd.f32 %v1554, %v1558
  %v1561 = vld [vmem:[%s5 + $0x28] sm:$0xff]
  %v1562 = vld [vmem:[%s5 + $0x30] sm:$0xff]
  %v1563 = vld [vmem:[%s5 + $0x38] sm:$0xff]
  %v1564 = vld [vmem:[%s5 + $0x40] sm:$0xff]
  %v1565 = vld [vmem:[%s5 + $0x48] sm:$0x1]
  %v1566 = vld [vmem:[%s6 + $0x1b8] sm:$0xff]
  %v1567 = vld [vmem:[%s6 + $0x1c0] sm:$0xff]
  %v1568 = vld [vmem:[%s6 + $0x1c8] sm:$0xff]
  %v1569 = vld [vmem:[%s6 + $0x1d0] sm:$0xff]
  %v1570 = vld [vmem:[%s6 + $0x1d8] sm:$0xff]
  %v1571 = vld [vmem:[%s6 + $0x1e0] sm:$0xff]
  %v1572 = vld [vmem:[%s6 + $0x1e8] sm:$0xff]
  %v1573 = vld [vmem:[%s6 + $0x1f0] sm:$0xff]
  %v1574 = vld [vmem:[%s6 + $0x1f8] sm:$0xff]
  %v1575 = vld [vmem:[%s6 + $0x200] sm:$0xff]
  %v1576 = vld [vmem:[%s6 + $0x208] sm:$0xff]
  %v1577 = vld [vmem:[%s6 + $0x210] sm:$0xff]
  %v1578 = vld [vmem:[%s6 + $0x218] sm:$0xff]
  %v1579 = vld [vmem:[%s6 + $0x220] sm:$0xff]
  %v1580 = vld [vmem:[%s6 + $0x228] sm:$0xff]
  %v1581 = vld [vmem:[%s6 + $0x230] sm:$0xff]
  %v1582 = vld [vmem:[%s6 + $0x238] sm:$0x1]
  %v1583 = vpack.c.bf16 %v1560, %v1559
  %v1584 = vpack.c.bf16 %v1562, %v1561
  %v1585 = vpack.c.bf16 %v1564, %v1563
  %v1586 = vlaneseq
  %v1587 = vshrl.u32 %v1586, 7
  %v1588 = vsub.s32 0, %v1587
  %v1589 = vrot.slane %v1565, %v1588
  %v1591 = vsel %vm332, %v1583, 0
  %1593 = vmatprep.subr.bf16.mxu0 0
  %1594 = vmatpush1.bf16.msra.mxu0 %v1584
  %1595 = vmatprep.subr.bf16.mxu0 0
  %1596 = vmatpush1.bf16.msra.mxu0 %v1585
  %1597 = vmatprep.subr.bf16.mxu0 0
  %1598 = vmatpush1.bf16.msra.mxu0 0
  %1599 = vmatprep.subr.bf16.mxu0 0
  %1600 = vmatpush1.bf16.msra.mxu0 0
  %1601 = vmatprep.subr.bf16.mxu0 0
  %1602 = vmatpush1.bf16.msra.mxu0 0
  %1603 = vmatprep.subr.bf16.mxu0 0
  %1604 = vmatpush1.bf16.msra.mxu0 0
  %1605 = vmatprep.subr.bf16.mxu0 0
  %1606 = vmatpush1.bf16.msra.mxu0 0
  %1607 = vmatprep.subr.bf16.mxu0 0
  %1608 = vmatpush1.bf16.msra.mxu0 0
  %1609 = vmatprep.subr.bf16.mxu0 0
  %1610 = vmatpush1.bf16.msra.mxu0 0
  %1611 = vmatprep.subr.bf16.mxu0 0
  %1612 = vmatpush1.bf16.msra.mxu0 0
  %1613 = vmatprep.subr.bf16.mxu0 0
  %1614 = vmatpush1.bf16.msra.mxu0 0
  %1615 = vmatprep.subr.bf16.mxu0 0
  %1616 = vmatpush1.bf16.msra.mxu0 0
  %1617 = vmatprep.subr.bf16.mxu0 0
  %1618 = vmatpush1.bf16.msra.mxu0 0
  %1619 = vmatprep.subr.bf16.mxu0 0
  %1620 = vmatpush1.bf16.msra.mxu0 0
  %1621 = vmatprep.subr.bf16.mxu0 0
  %1622 = vmatpush1.bf16.msra.mxu0 0
  %1623 = vmatprep.subr.bf16.mxu0 0
  %1624 = vmatpush1.bf16.msra.mxu0 0
  %1625 = vmatprep.mubr.bf16.mxu0 0
  %1626 = vmatmul.mubr.bf16.gmra.mrb[0].mxu0 %v1591
  %v1627 = vpop.f32.mrb[0].mxu0
  %v1628 = vadd.f32 %v1589, %v1627
  %v1629 = vpop.f32.mrb[0].mxu0
  %v1630 = vpop.f32.mrb[0].mxu0
  %v1631 = vadd.f32 %v1589, %v1630
  %v1632 = vpop.f32.mrb[0].mxu0
  %1633 = vdwg.mxu0
  %v1634 = vmax.f32 %v1628, 0.0
  %v1635 = vmax.f32 %v1631, 0.0
  %v1636 = vpack.c.bf16 %v1635, %v1634
  %v1637 = vpack.c.bf16 %v1567, %v1566
  %v1638 = vpack.c.bf16 %v1569, %v1568
  %v1639 = vpack.c.bf16 %v1571, %v1570
  %v1640 = vpack.c.bf16 %v1573, %v1572
  %v1641 = vpack.c.bf16 %v1575, %v1574
  %v1642 = vpack.c.bf16 %v1577, %v1576
  %v1643 = vpack.c.bf16 %v1579, %v1578
  %v1644 = vpack.c.bf16 %v1581, %v1580
  %v1645 = vlaneseq
  %v1646 = vshrl.u32 %v1645, 7
  %v1647 = vsub.s32 0, %v1646
  %v1648 = vrot.slane %v1582, %v1647
  %1649 = vmatprep.subr.bf16.mxu0 0
  %1650 = vmatpush1.bf16.msra.mxu0 %v1637
  %1651 = vmatprep.subr.bf16.mxu0 0
  %1652 = vmatpush1.bf16.msra.mxu0 %v1638
  %1653 = vmatprep.subr.bf16.mxu0 0
  %1654 = vmatpush1.bf16.msra.mxu0 %v1639
  %1655 = vmatprep.subr.bf16.mxu0 0
  %1656 = vmatpush1.bf16.msra.mxu0 %v1640
  %1657 = vmatprep.subr.bf16.mxu0 0
  %1658 = vmatpush1.bf16.msra.mxu0 %v1641
  %1659 = vmatprep.subr.bf16.mxu0 0
  %1660 = vmatpush1.bf16.msra.mxu0 %v1642
  %1661 = vmatprep.subr.bf16.mxu0 0
  %1662 = vmatpush1.bf16.msra.mxu0 %v1643
  %1663 = vmatprep.subr.bf16.mxu0 0
  %1664 = vmatpush1.bf16.msra.mxu0 %v1644
  %1665 = vmatprep.subr.bf16.mxu0 0
  %1666 = vmatpush1.bf16.msra.mxu0 0
  %1667 = vmatprep.subr.bf16.mxu0 0
  %1668 = vmatpush1.bf16.msra.mxu0 0
  %1669 = vmatprep.subr.bf16.mxu0 0
  %1670 = vmatpush1.bf16.msra.mxu0 0
  %1671 = vmatprep.subr.bf16.mxu0 0
  %1672 = vmatpush1.bf16.msra.mxu0 0
  %1673 = vmatprep.subr.bf16.mxu0 0
  %1674 = vmatpush1.bf16.msra.mxu0 0
  %1675 = vmatprep.subr.bf16.mxu0 0
  %1676 = vmatpush1.bf16.msra.mxu0 0
  %1677 = vmatprep.subr.bf16.mxu0 0
  %1678 = vmatpush1.bf16.msra.mxu0 0
  %1679 = vmatprep.subr.bf16.mxu0 0
  %1680 = vmatpush1.bf16.msra.mxu0 0
  %1681 = vmatprep.mubr.bf16.mxu0 0
  %1682 = vmatmul.mubr.bf16.gmra.mrb[0].mxu0 %v1636
  %v1683 = vpop.f32.mrb[0].mxu0
  %v1684 = vadd.f32 %v1648, %v1683
  %v1685 = vpop.f32.mrb[0].mxu0
  %v1686 = vpop.f32.mrb[0].mxu0
  %v1687 = vadd.f32 %v1648, %v1686
  %v1688 = vpop.f32.mrb[0].mxu0
  %1689 = vdwg.mxu0
  %v1690 = vadd.f32 %v1684, %v1559
  %v1691 = vadd.f32 %v1687, %v1560
  %v1692 = vld [vmem:[%s6 + $0x108] sm:$0xff]
  %v1693 = vsel %vm332, %v1690, 0.0
  %1694 = vadd.xlane.f32.xlu0 %v1693
  %v1695 = vpop.xlane.xlu0 %1694
  %v1696 = vsel %vm332, %v1691, 0.0
  %1697 = vadd.xlane.f32.xlu0 %v1696
  %v1698 = vpop.xlane.xlu0 %1697
  %v1699 = vmul.f32 %v1695, %v869
  %v1700 = vmul.f32 %v1698, %v869
  %v1701 = vsub.f32 %v1690, %v1699
  %v1702 = vsub.f32 %v1691, %v1700
  %v1703 = vmul.f32 %v1701, %v1701
  %v1704 = vmul.f32 %v1702, %v1702
  %v1705 = vsel %vm332, %v1703, 0.0
  %1706 = vadd.xlane.f32.xlu0 %v1705
  %v1707 = vpop.xlane.xlu0 %1706
  %v1708 = vsel %vm332, %v1704, 0.0
  %1709 = vadd.xlane.f32.xlu0 %v1708
  %v1710 = vpop.xlane.xlu0 %1709
  %v1711 = vmul.f32 %v1707, %v869
  %v1712 = vmul.f32 %v1710, %v869
  %v1713 = vadd.f32 %v1711, 1e-05
  %v1714 = vadd.f32 %v1712, 1e-05
  %v1715 = vrsqrt.pop %v1713
  %v1716 = vrsqrt.pop %v1714
  %v1717 = vmul.f32 %v1701, %v1715
  %v1718 = vmul.f32 %v1702, %v1716
  %v1719 = vlaneseq
  %v1720 = vshrl.u32 %v1719, 7
  %v1721 = vsub.s32 0, %v1720
  %v1722 = vrot.slane %v1692, %v1721
  %v1723 = vmul.f32 %v1717, %v1722
  %v1724 = vmul.f32 %v1718, %v1722
  %v1725 = vlaneseq
  %v1726 = vshrl.u32 %v1725, 7
  %v1727 = vsub.s32 1, %v1726
  %v1728 = vrot.slane %v1692, %v1727
  %v1729 = vadd.f32 %v1723, %v1728
  %v1730 = vadd.f32 %v1724, %v1728
  %v1731 = vld [vmem:[%s4 + $0x50] sm:$0xff]
  %v1732 = vld [vmem:[%s4 + $0x58] sm:$0xff]
  %v1733 = vld [vmem:[%s4 + $0x60] sm:$0xff]
  %v1734 = vld [vmem:[%s4 + $0x68] sm:$0xff]
  %v1735 = vld [vmem:[%s4 + $0x70] sm:$0x1]
  %v1736 = vpack.c.bf16 %v235, %v230
  %v1737 = vpack.c.bf16 %v1732, %v1731
  %v1738 = vpack.c.bf16 %v1734, %v1733
  %v1739 = vlaneseq
  %v1740 = vshrl.u32 %v1739, 7
  %v1741 = vsub.s32 0, %v1740
  %v1742 = vrot.slane %v1735, %v1741
  %v1744 = vsel %vm332, %v1736, 0
  %1746 = vmatprep.subr.bf16.mxu0 0
  %1747 = vmatpush1.bf16.msra.mxu0 %v1737
  %1748 = vmatprep.subr.bf16.mxu0 0
  %1749 = vmatpush1.bf16.msra.mxu0 %v1738
  %1750 = vmatprep.subr.bf16.mxu0 0
  %1751 = vmatpush1.bf16.msra.mxu0 0
  %1752 = vmatprep.subr.bf16.mxu0 0
  %1753 = vmatpush1.bf16.msra.mxu0 0
  %1754 = vmatprep.subr.bf16.mxu0 0
  %1755 = vmatpush1.bf16.msra.mxu0 0
  %1756 = vmatprep.subr.bf16.mxu0 0
  %1757 = vmatpush1.bf16.msra.mxu0 0
  %1758 = vmatprep.subr.bf16.mxu0 0
  %1759 = vmatpush1.bf16.msra.mxu0 0
  %1760 = vmatprep.subr.bf16.mxu0 0
  %1761 = vmatpush1.bf16.msra.mxu0 0
  %1762 = vmatprep.subr.bf16.mxu0 0
  %1763 = vmatpush1.bf16.msra.mxu0 0
  %1764 = vmatprep.subr.bf16.mxu0 0
  %1765 = vmatpush1.bf16.msra.mxu0 0
  %1766 = vmatprep.subr.bf16.mxu0 0
  %1767 = vmatpush1.bf16.msra.mxu0 0
  %1768 = vmatprep.subr.bf16.mxu0 0
  %1769 = vmatpush1.bf16.msra.mxu0 0
  %1770 = vmatprep.subr.bf16.mxu0 0
  %1771 = vmatpush1.bf16.msra.mxu0 0
  %1772 = vmatprep.subr.bf16.mxu0 0
  %1773 = vmatpush1.bf16.msra.mxu0 0
  %1774 = vmatprep.subr.bf16.mxu0 0
  %1775 = vmatpush1.bf16.msra.mxu0 0
  %1776 = vmatprep.subr.bf16.mxu0 0
  %1777 = vmatpush1.bf16.msra.mxu0 0
  %1778 = vmatprep.mubr.bf16.mxu0 0
  %1779 = vmatmul.mubr.bf16.gmra.mrb[0].mxu0 %v1744
  %v1780 = vpop.f32.mrb[0].mxu0
  %v1781 = vadd.f32 %v1742, %v1780
  %v1782 = vpop.f32.mrb[0].mxu0
  %v1783 = vpop.f32.mrb[0].mxu0
  %v1784 = vadd.f32 %v1742, %v1783
  %v1785 = vpop.f32.mrb[0].mxu0
  %1786 = vdwg.mxu0
  %1789 = vrot.lane.b32.xlu0 %v1781, 120
  %v1790 = vpop.permute.xlu0 %1789
  %1791 = vrot.lane.b32.xlu0 %v1784, 120
  %v1792 = vpop.permute.xlu0 %1791
  %1795 = vrot.lane.b32.xlu0 %v1781, 112
  %v1796 = vpop.permute.xlu0 %1795
  %1797 = vrot.lane.b32.xlu0 %v1784, 112
  %v1798 = vpop.permute.xlu0 %1797
  %1801 = vrot.lane.b32.xlu0 %v1781, 104
  %v1802 = vpop.permute.xlu0 %1801
  %1803 = vrot.lane.b32.xlu0 %v1784, 104
  %v1804 = vpop.permute.xlu0 %1803
  %v1807 = vpack.c.bf16 %v1784, %v1781
  %v1808 = vpack.c.bf16 %v1792, %v1790
  %v1809 = vpack.c.bf16 %v1798, %v1796
  %v1810 = vpack.c.bf16 %v1804, %v1802
  %1815 = vrot.lane.b32.xlu0 %v1807, 96
  %v1816 = vpop.permute.xlu0 %1815
  %1817 = vrot.lane.b32.xlu0 %v1808, 96
  %v1818 = vpop.permute.xlu0 %1817
  %1819 = vrot.lane.b32.xlu0 %v1809, 96
  %v1820 = vpop.permute.xlu0 %1819
  %1821 = vrot.lane.b32.xlu0 %v1810, 96
  %v1822 = vpop.permute.xlu0 %1821
  %v1824 = vsel %vm502, %v1807, 0
  %v1827 = vsel %vm502, %v1808, 0
  %v1830 = vsel %vm502, %v1809, 0
  %v1833 = vsel %vm502, %v1810, 0
  %v1836 = vsel %vm502, %v1816, 0
  %v1839 = vsel %vm502, %v1818, 0
  %v1842 = vsel %vm502, %v1820, 0
  %v1845 = vsel %vm502, %v1822, 0
  %1847 = vmatprep.subr.bf16.mxu0 0
  %1848 = vmatpush1.bf16.xpose.msra.mxu0 %v1836
  %1849 = vmatprep.subr.bf16.mxu0 0
  %1850 = vmatpush1.bf16.xpose.msra.mxu0 %v1839
  %1851 = vmatprep.subr.bf16.mxu0 0
  %1852 = vmatpush1.bf16.xpose.msra.mxu0 %v1842
  %1853 = vmatprep.subr.bf16.mxu0 0
  %1854 = vmatpush1.bf16.xpose.msra.mxu0 %v1845
  %1855 = vmatprep.subr.bf16.mxu0 0
  %1856 = vmatpush1.bf16.xpose.msra.mxu0 0
  %1857 = vmatprep.subr.bf16.mxu0 0
  %1858 = vmatpush1.bf16.xpose.msra.mxu0 0
  %1859 = vmatprep.subr.bf16.mxu0 0
  %1860 = vmatpush1.bf16.xpose.msra.mxu0 0
  %1861 = vmatprep.subr.bf16.mxu0 0
  %1862 = vmatpush1.bf16.xpose.msra.mxu0 0
  %1863 = vmatprep.subr.bf16.mxu0 0
  %1864 = vmatpush1.bf16.xpose.msra.mxu0 0
  %1865 = vmatprep.subr.bf16.mxu0 0
  %1866 = vmatpush1.bf16.xpose.msra.mxu0 0
  %1867 = vmatprep.subr.bf16.mxu0 0
  %1868 = vmatpush1.bf16.xpose.msra.mxu0 0
  %1869 = vmatprep.subr.bf16.mxu0 0
  %1870 = vmatpush1.bf16.xpose.msra.mxu0 0
  %1871 = vmatprep.subr.bf16.mxu0 0
  %1872 = vmatpush1.bf16.xpose.msra.mxu0 0
  %1873 = vmatprep.subr.bf16.mxu0 0
  %1874 = vmatpush1.bf16.xpose.msra.mxu0 0
  %1875 = vmatprep.subr.bf16.mxu0 0
  %1876 = vmatpush1.bf16.xpose.msra.mxu0 0
  %1877 = vmatprep.subr.bf16.mxu0 0
  %1878 = vmatpush1.bf16.xpose.msra.mxu0 0
  %1879 = vmatprep.mubr.bf16.mxu0 0
  %1880 = vmatmul.mubr.bf16.gmra.mrb[0].mxu0 %v1824
  %v1881 = vpop.f32.mrb[0].mxu0
  %v1882 = vadd.f32 %v393, %v1881
  %v1883 = vpop.f32.mrb[0].mxu0
  %v1884 = vpop.f32.mrb[0].mxu0
  %v1885 = vadd.f32 %v394, %v1884
  %v1886 = vpop.f32.mrb[0].mxu0
  %1887 = vmatprep.mubr.bf16.mxu0 0
  %1888 = vmatmul.mubr.bf16.gmra.mrb[0].mxu0 %v1827
  %v1889 = vpop.f32.mrb[0].mxu0
  %v1890 = vadd.f32 %v395, %v1889
  %v1891 = vpop.f32.mrb[0].mxu0
  %v1892 = vpop.f32.mrb[0].mxu0
  %v1893 = vadd.f32 %v396, %v1892
  %v1894 = vpop.f32.mrb[0].mxu0
  %1895 = vmatprep.mubr.bf16.mxu0 0
  %1896 = vmatmul.mubr.bf16.gmra.mrb[0].mxu0 %v1830
  %v1897 = vpop.f32.mrb[0].mxu0
  %v1898 = vadd.f32 %v397, %v1897
  %v1899 = vpop.f32.mrb[0].mxu0
  %v1900 = vpop.f32.mrb[0].mxu0
  %v1901 = vadd.f32 %v398, %v1900
  %v1902 = vpop.f32.mrb[0].mxu0
  %1903 = vmatprep.mubr.bf16.mxu0 0
  %1904 = vmatmul.mubr.bf16.gmra.mrb[0].mxu0 %v1833
  %v1905 = vpop.f32.mrb[0].mxu0
  %v1906 = vadd.f32 %v399, %v1905
  %v1907 = vpop.f32.mrb[0].mxu0
  %v1908 = vpop.f32.mrb[0].mxu0
  %v1909 = vadd.f32 %v400, %v1908
  %v1910 = vpop.f32.mrb[0].mxu0
  %1911 = vdwg.mxu0
  %v1912 = vsel %vm53, %v1882, -inf
  %1913 = vmax.xlane.f32.xlu0 %v1912
  %v1914 = vpop.xlane.xlu0 %1913
  %v1915 = vsel %vm53, %v1885, -inf
  %1916 = vmax.xlane.f32.xlu0 %v1915
  %v1917 = vpop.xlane.xlu0 %1916
  %v1918 = vsel %vm53, %v1890, -inf
  %1919 = vmax.xlane.f32.xlu0 %v1918
  %v1920 = vpop.xlane.xlu0 %1919
  %v1921 = vsel %vm53, %v1893, -inf
  %1922 = vmax.xlane.f32.xlu0 %v1921
  %v1923 = vpop.xlane.xlu0 %1922
  %v1924 = vsel %vm53, %v1898, -inf
  %1925 = vmax.xlane.f32.xlu0 %v1924
  %v1926 = vpop.xlane.xlu0 %1925
  %v1927 = vsel %vm53, %v1901, -inf
  %1928 = vmax.xlane.f32.xlu0 %v1927
  %v1929 = vpop.xlane.xlu0 %1928
  %v1930 = vsel %vm53, %v1906, -inf
  %1931 = vmax.xlane.f32.xlu0 %v1930
  %v1932 = vpop.xlane.xlu0 %1931
  %v1933 = vsel %vm53, %v1909, -inf
  %1934 = vmax.xlane.f32.xlu0 %v1933
  %v1935 = vpop.xlane.xlu0 %1934
  %v1936 = vsub.f32 %v1882, %v1914
  %v1937 = vsub.f32 %v1885, %v1917
  %v1938 = vsub.f32 %v1890, %v1920
  %v1939 = vsub.f32 %v1893, %v1923
  %v1940 = vsub.f32 %v1898, %v1926
  %v1941 = vsub.f32 %v1901, %v1929
  %v1942 = vsub.f32 %v1906, %v1932
  %v1943 = vsub.f32 %v1909, %v1935
  %v1944 = vmul.f32 %v1936, 1.442695
  %v1945 = vpow.pop %v1944
  %v1946 = vmul.f32 %v1937, 1.442695
  %v1947 = vpow.pop %v1946
  %v1948 = vmul.f32 %v1938, 1.442695
  %v1949 = vpow.pop %v1948
  %v1950 = vmul.f32 %v1939, 1.442695
  %v1951 = vpow.pop %v1950
  %v1952 = vmul.f32 %v1940, 1.442695
  %v1953 = vpow.pop %v1952
  %v1954 = vmul.f32 %v1941, 1.442695
  %v1955 = vpow.pop %v1954
  %v1956 = vmul.f32 %v1942, 1.442695
  %v1957 = vpow.pop %v1956
  %v1958 = vmul.f32 %v1943, 1.442695
  %v1959 = vpow.pop %v1958
  %v1960 = vsel %vm53, %v1945, 0.0
  %1961 = vadd.xlane.f32.xlu0 %v1960
  %v1962 = vpop.xlane.xlu0 %1961
  %v1963 = vsel %vm53, %v1947, 0.0
  %1964 = vadd.xlane.f32.xlu0 %v1963
  %v1965 = vpop.xlane.xlu0 %1964
  %v1966 = vsel %vm53, %v1949, 0.0
  %1967 = vadd.xlane.f32.xlu0 %v1966
  %v1968 = vpop.xlane.xlu0 %1967
  %v1969 = vsel %vm53, %v1951, 0.0
  %1970 = vadd.xlane.f32.xlu0 %v1969
  %v1971 = vpop.xlane.xlu0 %1970
  %v1972 = vsel %vm53, %v1953, 0.0
  %1973 = vadd.xlane.f32.xlu0 %v1972
  %v1974 = vpop.xlane.xlu0 %1973
  %v1975 = vsel %vm53, %v1955, 0.0
  %1976 = vadd.xlane.f32.xlu0 %v1975
  %v1977 = vpop.xlane.xlu0 %1976
  %v1978 = vsel %vm53, %v1957, 0.0
  %1979 = vadd.xlane.f32.xlu0 %v1978
  %v1980 = vpop.xlane.xlu0 %1979
  %v1981 = vsel %vm53, %v1959, 0.0
  %1982 = vadd.xlane.f32.xlu0 %v1981
  %v1983 = vpop.xlane.xlu0 %1982
  %v1984 = vrcp.pop %v1962
  %v1985 = vrcp.pop %v1965
  %v1986 = vrcp.pop %v1968
  %v1987 = vrcp.pop %v1971
  %v1988 = vrcp.pop %v1974
  %v1989 = vrcp.pop %v1977
  %v1990 = vrcp.pop %v1980
  %v1991 = vrcp.pop %v1983
  %v1992 = vmul.f32 %v1945, %v1984
  %v1993 = vmul.f32 %v1947, %v1985
  %v1994 = vmul.f32 %v1949, %v1986
  %v1995 = vmul.f32 %v1951, %v1987
  %v1996 = vmul.f32 %v1953, %v1988
  %v1997 = vmul.f32 %v1955, %v1989
  %v1998 = vmul.f32 %v1957, %v1990
  %v1999 = vmul.f32 %v1959, %v1991
  %v2000 = vpack.c.bf16 %v1993, %v1992
  %v2001 = vpack.c.bf16 %v1995, %v1994
  %v2002 = vpack.c.bf16 %v1997, %v1996
  %v2003 = vpack.c.bf16 %v1999, %v1998
  %2004 = vrot.lane.b32.xlu0 %v1807, 64
  %v2005 = vpop.permute.xlu0 %2004
  %2006 = vrot.lane.b32.xlu0 %v1808, 64
  %v2007 = vpop.permute.xlu0 %2006
  %2008 = vrot.lane.b32.xlu0 %v1809, 64
  %v2009 = vpop.permute.xlu0 %2008
  %2010 = vrot.lane.b32.xlu0 %v1810, 64
  %v2011 = vpop.permute.xlu0 %2010
  %v2017 = vsel %vm53, %v2000, 0
  %v2020 = vsel %vm53, %v2001, 0
  %v2023 = vsel %vm53, %v2002, 0
  %v2026 = vsel %vm53, %v2003, 0
  %2028 = vmatprep.subr.bf16.mxu0 0
  %2029 = vmatpush1.bf16.msra.mxu0 %v2005
  %2030 = vmatprep.subr.bf16.mxu0 0
  %2031 = vmatpush1.bf16.msra.mxu0 %v2007
  %2032 = vmatprep.subr.bf16.mxu0 0
  %2033 = vmatpush1.bf16.msra.mxu0 %v2009
  %2034 = vmatprep.subr.bf16.mxu0 0
  %2035 = vmatpush1.bf16.msra.mxu0 %v2011
  %2036 = vmatprep.subr.bf16.mxu0 0
  %2037 = vmatpush1.bf16.msra.mxu0 0
  %2038 = vmatprep.subr.bf16.mxu0 0
  %2039 = vmatpush1.bf16.msra.mxu0 0
  %2040 = vmatprep.subr.bf16.mxu0 0
  %2041 = vmatpush1.bf16.msra.mxu0 0
  %2042 = vmatprep.subr.bf16.mxu0 0
  %2043 = vmatpush1.bf16.msra.mxu0 0
  %2044 = vmatprep.subr.bf16.mxu0 0
  %2045 = vmatpush1.bf16.msra.mxu0 0
  %2046 = vmatprep.subr.bf16.mxu0 0
  %2047 = vmatpush1.bf16.msra.mxu0 0
  %2048 = vmatprep.subr.bf16.mxu0 0
  %2049 = vmatpush1.bf16.msra.mxu0 0
  %2050 = vmatprep.subr.bf16.mxu0 0
  %2051 = vmatpush1.bf16.msra.mxu0 0
  %2052 = vmatprep.subr.bf16.mxu0 0
  %2053 = vmatpush1.bf16.msra.mxu0 0
  %2054 = vmatprep.subr.bf16.mxu0 0
  %2055 = vmatpush1.bf16.msra.mxu0 0
  %2056 = vmatprep.subr.bf16.mxu0 0
  %2057 = vmatpush1.bf16.msra.mxu0 0
  %2058 = vmatprep.subr.bf16.mxu0 0
  %2059 = vmatpush1.bf16.msra.mxu0 0
  %2060 = vmatprep.mubr.bf16.mxu0 0
  %2061 = vmatmul.mubr.bf16.gmra.mrb[0].mxu0 %v2017
  %v2062 = vpop.f32.mrb[0].mxu0
  %v2063 = vadd.f32 0.0, %v2062
  %v2064 = vpop.f32.mrb[0].mxu0
  %v2065 = vpop.f32.mrb[0].mxu0
  %v2066 = vadd.f32 0.0, %v2065
  %v2067 = vpop.f32.mrb[0].mxu0
  %2068 = vmatprep.mubr.bf16.mxu0 0
  %2069 = vmatmul.mubr.bf16.gmra.mrb[0].mxu0 %v2020
  %v2070 = vpop.f32.mrb[0].mxu0
  %v2071 = vadd.f32 0.0, %v2070
  %v2072 = vpop.f32.mrb[0].mxu0
  %v2073 = vpop.f32.mrb[0].mxu0
  %v2074 = vadd.f32 0.0, %v2073
  %v2075 = vpop.f32.mrb[0].mxu0
  %2076 = vmatprep.mubr.bf16.mxu0 0
  %2077 = vmatmul.mubr.bf16.gmra.mrb[0].mxu0 %v2023
  %v2078 = vpop.f32.mrb[0].mxu0
  %v2079 = vadd.f32 0.0, %v2078
  %v2080 = vpop.f32.mrb[0].mxu0
  %v2081 = vpop.f32.mrb[0].mxu0
  %v2082 = vadd.f32 0.0, %v2081
  %v2083 = vpop.f32.mrb[0].mxu0
  %2084 = vmatprep.mubr.bf16.mxu0 0
  %2085 = vmatmul.mubr.bf16.gmra.mrb[0].mxu0 %v2026
  %v2086 = vpop.f32.mrb[0].mxu0
  %v2087 = vadd.f32 0.0, %v2086
  %v2088 = vpop.f32.mrb[0].mxu0
  %v2089 = vpop.f32.mrb[0].mxu0
  %v2090 = vadd.f32 0.0, %v2089
  %v2091 = vpop.f32.mrb[0].mxu0
  %2092 = vdwg.mxu0
  %2095 = vrot.lane.b32.xlu0 %v2071, 8
  %v2096 = vpop.permute.xlu0 %2095
  %2097 = vrot.lane.b32.xlu0 %v2074, 8
  %v2098 = vpop.permute.xlu0 %2097
  %2103 = vrot.lane.b32.xlu0 %v2079, 16
  %v2104 = vpop.permute.xlu0 %2103
  %2105 = vrot.lane.b32.xlu0 %v2082, 16
  %v2106 = vpop.permute.xlu0 %2105
  %2111 = vrot.lane.b32.xlu0 %v2087, 24
  %v2112 = vpop.permute.xlu0 %2111
  %2113 = vrot.lane.b32.xlu0 %v2090, 24
  %v2114 = vpop.permute.xlu0 %2113
  %v2117 = vsel %vm502, %v2063, %v2096
  %v2118 = vsel %vm502, %v2066, %v2098
  %v2119 = vsel %vm330, %v2117, %v2104
  %v2120 = vsel %vm330, %v2118, %v2106
  %v2121 = vsel %vm801, %v2119, %v2112
  %v2122 = vsel %vm801, %v2120, %v2114
  %v2123 = vld [vmem:[%s6 + $0x50] sm:$0xff]
  %v2124 = vld [vmem:[%s6 + $0x58] sm:$0xff]
  %v2125 = vld [vmem:[%s6 + $0x60] sm:$0xff]
  %v2126 = vld [vmem:[%s6 + $0x68] sm:$0xff]
  %v2127 = vld [vmem:[%s6 + $0x70] sm:$0x1]
  %v2128 = vpack.c.bf16 %v2122, %v2121
  %v2129 = vpack.c.bf16 %v2124, %v2123
  %v2130 = vpack.c.bf16 %v2126, %v2125
  %v2131 = vlaneseq
  %v2132 = vshrl.u32 %v2131, 7
  %v2133 = vsub.s32 0, %v2132
  %v2134 = vrot.slane %v2127, %v2133
  %v2136 = vsel %vm332, %v2128, 0
  %2138 = vmatprep.subr.bf16.mxu0 0
  %2139 = vmatpush1.bf16.msra.mxu0 %v2129
  %2140 = vmatprep.subr.bf16.mxu0 0
  %2141 = vmatpush1.bf16.msra.mxu0 %v2130
  %2142 = vmatprep.subr.bf16.mxu0 0
  %2143 = vmatpush1.bf16.msra.mxu0 0
  %2144 = vmatprep.subr.bf16.mxu0 0
  %2145 = vmatpush1.bf16.msra.mxu0 0
  %2146 = vmatprep.subr.bf16.mxu0 0
  %2147 = vmatpush1.bf16.msra.mxu0 0
  %2148 = vmatprep.subr.bf16.mxu0 0
  %2149 = vmatpush1.bf16.msra.mxu0 0
  %2150 = vmatprep.subr.bf16.mxu0 0
  %2151 = vmatpush1.bf16.msra.mxu0 0
  %2152 = vmatprep.subr.bf16.mxu0 0
  %2153 = vmatpush1.bf16.msra.mxu0 0
  %2154 = vmatprep.subr.bf16.mxu0 0
  %2155 = vmatpush1.bf16.msra.mxu0 0
  %2156 = vmatprep.subr.bf16.mxu0 0
  %2157 = vmatpush1.bf16.msra.mxu0 0
  %2158 = vmatprep.subr.bf16.mxu0 0
  %2159 = vmatpush1.bf16.msra.mxu0 0
  %2160 = vmatprep.subr.bf16.mxu0 0
  %2161 = vmatpush1.bf16.msra.mxu0 0
  %2162 = vmatprep.subr.bf16.mxu0 0
  %2163 = vmatpush1.bf16.msra.mxu0 0
  %2164 = vmatprep.subr.bf16.mxu0 0
  %2165 = vmatpush1.bf16.msra.mxu0 0
  %2166 = vmatprep.subr.bf16.mxu0 0
  %2167 = vmatpush1.bf16.msra.mxu0 0
  %2168 = vmatprep.subr.bf16.mxu0 0
  %2169 = vmatpush1.bf16.msra.mxu0 0
  %2170 = vmatprep.mubr.bf16.mxu0 0
  %2171 = vmatmul.mubr.bf16.gmra.mrb[0].mxu0 %v2136
  %v2172 = vpop.f32.mrb[0].mxu0
  %v2173 = vadd.f32 %v2134, %v2172
  %v2174 = vpop.f32.mrb[0].mxu0
  %v2175 = vpop.f32.mrb[0].mxu0
  %v2176 = vadd.f32 %v2134, %v2175
  %v2177 = vpop.f32.mrb[0].mxu0
  %2178 = vdwg.mxu0
  %v2179 = vadd.f32 %v2173, %v230
  %v2180 = vadd.f32 %v2176, %v235
  %v2181 = vld [vmem:[%s6 + $0x110] sm:$0xff]
  %v2182 = vsel %vm332, %v2179, 0.0
  %2183 = vadd.xlane.f32.xlu0 %v2182
  %v2184 = vpop.xlane.xlu0 %2183
  %v2185 = vsel %vm332, %v2180, 0.0
  %2186 = vadd.xlane.f32.xlu0 %v2185
  %v2187 = vpop.xlane.xlu0 %2186
  %v2188 = vmul.f32 %v2184, %v869
  %v2189 = vmul.f32 %v2187, %v869
  %v2190 = vsub.f32 %v2179, %v2188
  %v2191 = vsub.f32 %v2180, %v2189
  %v2192 = vmul.f32 %v2190, %v2190
  %v2193 = vmul.f32 %v2191, %v2191
  %v2194 = vsel %vm332, %v2192, 0.0
  %2195 = vadd.xlane.f32.xlu0 %v2194
  %v2196 = vpop.xlane.xlu0 %2195
  %v2197 = vsel %vm332, %v2193, 0.0
  %2198 = vadd.xlane.f32.xlu0 %v2197
  %v2199 = vpop.xlane.xlu0 %2198
  %v2200 = vmul.f32 %v2196, %v869
  %v2201 = vmul.f32 %v2199, %v869
  %v2202 = vadd.f32 %v2200, 1e-05
  %v2203 = vadd.f32 %v2201, 1e-05
  %v2204 = vrsqrt.pop %v2202
  %v2205 = vrsqrt.pop %v2203
  %v2206 = vmul.f32 %v2190, %v2204
  %v2207 = vmul.f32 %v2191, %v2205
  %v2208 = vlaneseq
  %v2209 = vshrl.u32 %v2208, 7
  %v2210 = vsub.s32 0, %v2209
  %v2211 = vrot.slane %v2181, %v2210
  %v2212 = vmul.f32 %v2206, %v2211
  %v2213 = vmul.f32 %v2207, %v2211
  %v2214 = vlaneseq
  %v2215 = vshrl.u32 %v2214, 7
  %v2216 = vsub.s32 1, %v2215
  %v2217 = vrot.slane %v2181, %v2216
  %v2218 = vadd.f32 %v2212, %v2217
  %v2219 = vadd.f32 %v2213, %v2217
  %v2220 = vld [vmem:[%s4 + $0x78] sm:$0xff]
  %v2221 = vld [vmem:[%s4 + $0x80] sm:$0xff]
  %v2222 = vld [vmem:[%s4 + $0x88] sm:$0xff]
  %v2223 = vld [vmem:[%s4 + $0x90] sm:$0xff]
  %v2224 = vld [vmem:[%s4 + $0x98] sm:$0x1]
  %v2225 = vpack.c.bf16 %v2219, %v2218
  %v2226 = vpack.c.bf16 %v2221, %v2220
  %v2227 = vpack.c.bf16 %v2223, %v2222
  %v2228 = vlaneseq
  %v2229 = vshrl.u32 %v2228, 7
  %v2230 = vsub.s32 0, %v2229
  %v2231 = vrot.slane %v2224, %v2230
  %v2233 = vsel %vm332, %v2225, 0
  %2235 = vmatprep.subr.bf16.mxu0 0
  %2236 = vmatpush1.bf16.msra.mxu0 %v2226
  %2237 = vmatprep.subr.bf16.mxu0 0
  %2238 = vmatpush1.bf16.msra.mxu0 %v2227
  %2239 = vmatprep.subr.bf16.mxu0 0
  %2240 = vmatpush1.bf16.msra.mxu0 0
  %2241 = vmatprep.subr.bf16.mxu0 0
  %2242 = vmatpush1.bf16.msra.mxu0 0
  %2243 = vmatprep.subr.bf16.mxu0 0
  %2244 = vmatpush1.bf16.msra.mxu0 0
  %2245 = vmatprep.subr.bf16.mxu0 0
  %2246 = vmatpush1.bf16.msra.mxu0 0
  %2247 = vmatprep.subr.bf16.mxu0 0
  %2248 = vmatpush1.bf16.msra.mxu0 0
  %2249 = vmatprep.subr.bf16.mxu0 0
  %2250 = vmatpush1.bf16.msra.mxu0 0
  %2251 = vmatprep.subr.bf16.mxu0 0
  %2252 = vmatpush1.bf16.msra.mxu0 0
  %2253 = vmatprep.subr.bf16.mxu0 0
  %2254 = vmatpush1.bf16.msra.mxu0 0
  %2255 = vmatprep.subr.bf16.mxu0 0
  %2256 = vmatpush1.bf16.msra.mxu0 0
  %2257 = vmatprep.subr.bf16.mxu0 0
  %2258 = vmatpush1.bf16.msra.mxu0 0
  %2259 = vmatprep.subr.bf16.mxu0 0
  %2260 = vmatpush1.bf16.msra.mxu0 0
  %2261 = vmatprep.subr.bf16.mxu0 0
  %2262 = vmatpush1.bf16.msra.mxu0 0
  %2263 = vmatprep.subr.bf16.mxu0 0
  %2264 = vmatpush1.bf16.msra.mxu0 0
  %2265 = vmatprep.subr.bf16.mxu0 0
  %2266 = vmatpush1.bf16.msra.mxu0 0
  %2267 = vmatprep.mubr.bf16.mxu0 0
  %2268 = vmatmul.mubr.bf16.gmra.mrb[0].mxu0 %v2233
  %v2269 = vpop.f32.mrb[0].mxu0
  %v2270 = vadd.f32 %v2231, %v2269
  %v2271 = vpop.f32.mrb[0].mxu0
  %v2272 = vpop.f32.mrb[0].mxu0
  %v2273 = vadd.f32 %v2231, %v2272
  %v2274 = vpop.f32.mrb[0].mxu0
  %2275 = vdwg.mxu0
  %v2276 = vpack.c.bf16 %v1730, %v1729
  %2279 = vrot.lane.b32.xlu0 %v2226, 96
  %v2280 = vpop.permute.xlu0 %2279
  %2281 = vrot.lane.b32.xlu0 %v2227, 96
  %v2282 = vpop.permute.xlu0 %2281
  %2286 = vrot.lane.b32.xlu0 %v2231, 96
  %v2287 = vpop.permute.xlu0 %2286
  %v2290 = vsel %vm332, %v2276, 0
  %2292 = vmatprep.subr.bf16.mxu0 0
  %2293 = vmatpush1.bf16.msra.mxu0 %v2280
  %2294 = vmatprep.subr.bf16.mxu0 0
  %2295 = vmatpush1.bf16.msra.mxu0 %v2282
  %2296 = vmatprep.subr.bf16.mxu0 0
  %2297 = vmatpush1.bf16.msra.mxu0 0
  %2298 = vmatprep.subr.bf16.mxu0 0
  %2299 = vmatpush1.bf16.msra.mxu0 0
  %2300 = vmatprep.subr.bf16.mxu0 0
  %2301 = vmatpush1.bf16.msra.mxu0 0
  %2302 = vmatprep.subr.bf16.mxu0 0
  %2303 = vmatpush1.bf16.msra.mxu0 0
  %2304 = vmatprep.subr.bf16.mxu0 0
  %2305 = vmatpush1.bf16.msra.mxu0 0
  %2306 = vmatprep.subr.bf16.mxu0 0
  %2307 = vmatpush1.bf16.msra.mxu0 0
  %2308 = vmatprep.subr.bf16.mxu0 0
  %2309 = vmatpush1.bf16.msra.mxu0 0
  %2310 = vmatprep.subr.bf16.mxu0 0
  %2311 = vmatpush1.bf16.msra.mxu0 0
  %2312 = vmatprep.subr.bf16.mxu0 0
  %2313 = vmatpush1.bf16.msra.mxu0 0
  %2314 = vmatprep.subr.bf16.mxu0 0
  %2315 = vmatpush1.bf16.msra.mxu0 0
  %2316 = vmatprep.subr.bf16.mxu0 0
  %2317 = vmatpush1.bf16.msra.mxu0 0
  %2318 = vmatprep.subr.bf16.mxu0 0
  %2319 = vmatpush1.bf16.msra.mxu0 0
  %2320 = vmatprep.subr.bf16.mxu0 0
  %2321 = vmatpush1.bf16.msra.mxu0 0
  %2322 = vmatprep.subr.bf16.mxu0 0
  %2323 = vmatpush1.bf16.msra.mxu0 0
  %2324 = vmatprep.mubr.bf16.mxu0 0
  %2325 = vmatmul.mubr.bf16.gmra.mrb[0].mxu0 %v2290
  %v2326 = vpop.f32.mrb[0].mxu0
  %v2327 = vadd.f32 %v2287, %v2326
  %v2328 = vpop.f32.mrb[0].mxu0
  %v2329 = vpop.f32.mrb[0].mxu0
  %v2330 = vadd.f32 %v2287, %v2329
  %v2331 = vpop.f32.mrb[0].mxu0
  %2332 = vdwg.mxu0
  %2335 = vrot.lane.b32.xlu0 %v2270, 120
  %v2336 = vpop.permute.xlu0 %2335
  %2337 = vrot.lane.b32.xlu0 %v2273, 120
  %v2338 = vpop.permute.xlu0 %2337
  %2341 = vrot.lane.b32.xlu0 %v2270, 112
  %v2342 = vpop.permute.xlu0 %2341
  %2343 = vrot.lane.b32.xlu0 %v2273, 112
  %v2344 = vpop.permute.xlu0 %2343
  %2347 = vrot.lane.b32.xlu0 %v2270, 104
  %v2348 = vpop.permute.xlu0 %2347
  %2349 = vrot.lane.b32.xlu0 %v2273, 104
  %v2350 = vpop.permute.xlu0 %2349
  %2355 = vrot.lane.b32.xlu0 %v2327, 120
  %v2356 = vpop.permute.xlu0 %2355
  %2357 = vrot.lane.b32.xlu0 %v2330, 120
  %v2358 = vpop.permute.xlu0 %2357
  %2361 = vrot.lane.b32.xlu0 %v2327, 112
  %v2362 = vpop.permute.xlu0 %2361
  %2363 = vrot.lane.b32.xlu0 %v2330, 112
  %v2364 = vpop.permute.xlu0 %2363
  %2367 = vrot.lane.b32.xlu0 %v2327, 104
  %v2368 = vpop.permute.xlu0 %2367
  %2369 = vrot.lane.b32.xlu0 %v2330, 104
  %v2370 = vpop.permute.xlu0 %2369
  %v2373 = vpack.c.bf16 %v2273, %v2270
  %v2374 = vpack.c.bf16 %v2338, %v2336
  %v2375 = vpack.c.bf16 %v2344, %v2342
  %v2376 = vpack.c.bf16 %v2350, %v2348
  %v2377 = vpack.c.bf16 %v2330, %v2327
  %v2378 = vpack.c.bf16 %v2358, %v2356
  %v2379 = vpack.c.bf16 %v2364, %v2362
  %v2380 = vpack.c.bf16 %v2370, %v2368
  %v2382 = vsel %vm502, %v2373, 0
  %v2385 = vsel %vm502, %v2374, 0
  %v2388 = vsel %vm502, %v2375, 0
  %v2391 = vsel %vm502, %v2376, 0
  %v2394 = vsel %vm502, %v2377, 0
  %v2397 = vsel %vm502, %v2378, 0
  %v2400 = vsel %vm502, %v2379, 0
  %v2403 = vsel %vm502, %v2380, 0
  %2405 = vmatprep.subr.bf16.mxu0 0
  %2406 = vmatpush1.bf16.xpose.msra.mxu0 %v2394
  %2407 = vmatprep.subr.bf16.mxu0 0
  %2408 = vmatpush1.bf16.xpose.msra.mxu0 %v2397
  %2409 = vmatprep.subr.bf16.mxu0 0
  %2410 = vmatpush1.bf16.xpose.msra.mxu0 %v2400
  %2411 = vmatprep.subr.bf16.mxu0 0
  %2412 = vmatpush1.bf16.xpose.msra.mxu0 %v2403
  %2413 = vmatprep.subr.bf16.mxu0 0
  %2414 = vmatpush1.bf16.xpose.msra.mxu0 0
  %2415 = vmatprep.subr.bf16.mxu0 0
  %2416 = vmatpush1.bf16.xpose.msra.mxu0 0
  %2417 = vmatprep.subr.bf16.mxu0 0
  %2418 = vmatpush1.bf16.xpose.msra.mxu0 0
  %2419 = vmatprep.subr.bf16.mxu0 0
  %2420 = vmatpush1.bf16.xpose.msra.mxu0 0
  %2421 = vmatprep.subr.bf16.mxu0 0
  %2422 = vmatpush1.bf16.xpose.msra.mxu0 0
  %2423 = vmatprep.subr.bf16.mxu0 0
  %2424 = vmatpush1.bf16.xpose.msra.mxu0 0
  %2425 = vmatprep.subr.bf16.mxu0 0
  %2426 = vmatpush1.bf16.xpose.msra.mxu0 0
  %2427 = vmatprep.subr.bf16.mxu0 0
  %2428 = vmatpush1.bf16.xpose.msra.mxu0 0
  %2429 = vmatprep.subr.bf16.mxu0 0
  %2430 = vmatpush1.bf16.xpose.msra.mxu0 0
  %2431 = vmatprep.subr.bf16.mxu0 0
  %2432 = vmatpush1.bf16.xpose.msra.mxu0 0
  %2433 = vmatprep.subr.bf16.mxu0 0
  %2434 = vmatpush1.bf16.xpose.msra.mxu0 0
  %2435 = vmatprep.subr.bf16.mxu0 0
  %2436 = vmatpush1.bf16.xpose.msra.mxu0 0
  %2437 = vmatprep.mubr.bf16.mxu0 0
  %2438 = vmatmul.mubr.bf16.gmra.mrb[0].mxu0 %v2382
  %v2439 = vpop.f32.mrb[0].mxu0
  %v2440 = vadd.f32 %v402, %v2439
  %v2441 = vpop.f32.mrb[0].mxu0
  %v2442 = vpop.f32.mrb[0].mxu0
  %v2443 = vadd.f32 %v403, %v2442
  %v2444 = vpop.f32.mrb[0].mxu0
  %2445 = vmatprep.mubr.bf16.mxu0 0
  %2446 = vmatmul.mubr.bf16.gmra.mrb[0].mxu0 %v2385
  %v2447 = vpop.f32.mrb[0].mxu0
  %v2448 = vadd.f32 %v404, %v2447
  %v2449 = vpop.f32.mrb[0].mxu0
  %v2450 = vpop.f32.mrb[0].mxu0
  %v2451 = vadd.f32 %v405, %v2450
  %v2452 = vpop.f32.mrb[0].mxu0
  %2453 = vmatprep.mubr.bf16.mxu0 0
  %2454 = vmatmul.mubr.bf16.gmra.mrb[0].mxu0 %v2388
  %v2455 = vpop.f32.mrb[0].mxu0
  %v2456 = vadd.f32 %v406, %v2455
  %v2457 = vpop.f32.mrb[0].mxu0
  %v2458 = vpop.f32.mrb[0].mxu0
  %v2459 = vadd.f32 %v407, %v2458
  %v2460 = vpop.f32.mrb[0].mxu0
  %2461 = vmatprep.mubr.bf16.mxu0 0
  %2462 = vmatmul.mubr.bf16.gmra.mrb[0].mxu0 %v2391
  %v2463 = vpop.f32.mrb[0].mxu0
  %v2464 = vadd.f32 %v408, %v2463
  %v2465 = vpop.f32.mrb[0].mxu0
  %v2466 = vpop.f32.mrb[0].mxu0
  %v2467 = vadd.f32 %v409, %v2466
  %v2468 = vpop.f32.mrb[0].mxu0
  %2469 = vdwg.mxu0
  %v2470 = vsel %vm53, %v2440, -inf
  %2471 = vmax.xlane.f32.xlu0 %v2470
  %v2472 = vpop.xlane.xlu0 %2471
  %v2473 = vsel %vm53, %v2443, -inf
  %2474 = vmax.xlane.f32.xlu0 %v2473
  %v2475 = vpop.xlane.xlu0 %2474
  %v2476 = vsel %vm53, %v2448, -inf
  %2477 = vmax.xlane.f32.xlu0 %v2476
  %v2478 = vpop.xlane.xlu0 %2477
  %v2479 = vsel %vm53, %v2451, -inf
  %2480 = vmax.xlane.f32.xlu0 %v2479
  %v2481 = vpop.xlane.xlu0 %2480
  %v2482 = vsel %vm53, %v2456, -inf
  %2483 = vmax.xlane.f32.xlu0 %v2482
  %v2484 = vpop.xlane.xlu0 %2483
  %v2485 = vsel %vm53, %v2459, -inf
  %2486 = vmax.xlane.f32.xlu0 %v2485
  %v2487 = vpop.xlane.xlu0 %2486
  %v2488 = vsel %vm53, %v2464, -inf
  %2489 = vmax.xlane.f32.xlu0 %v2488
  %v2490 = vpop.xlane.xlu0 %2489
  %v2491 = vsel %vm53, %v2467, -inf
  %2492 = vmax.xlane.f32.xlu0 %v2491
  %v2493 = vpop.xlane.xlu0 %2492
  %v2494 = vsub.f32 %v2440, %v2472
  %v2495 = vsub.f32 %v2443, %v2475
  %v2496 = vsub.f32 %v2448, %v2478
  %v2497 = vsub.f32 %v2451, %v2481
  %v2498 = vsub.f32 %v2456, %v2484
  %v2499 = vsub.f32 %v2459, %v2487
  %v2500 = vsub.f32 %v2464, %v2490
  %v2501 = vsub.f32 %v2467, %v2493
  %v2502 = vmul.f32 %v2494, 1.442695
  %v2503 = vpow.pop %v2502
  %v2504 = vmul.f32 %v2495, 1.442695
  %v2505 = vpow.pop %v2504
  %v2506 = vmul.f32 %v2496, 1.442695
  %v2507 = vpow.pop %v2506
  %v2508 = vmul.f32 %v2497, 1.442695
  %v2509 = vpow.pop %v2508
  %v2510 = vmul.f32 %v2498, 1.442695
  %v2511 = vpow.pop %v2510
  %v2512 = vmul.f32 %v2499, 1.442695
  %v2513 = vpow.pop %v2512
  %v2514 = vmul.f32 %v2500, 1.442695
  %v2515 = vpow.pop %v2514
  %v2516 = vmul.f32 %v2501, 1.442695
  %v2517 = vpow.pop %v2516
  %v2518 = vsel %vm53, %v2503, 0.0
  %2519 = vadd.xlane.f32.xlu0 %v2518
  %v2520 = vpop.xlane.xlu0 %2519
  %v2521 = vsel %vm53, %v2505, 0.0
  %2522 = vadd.xlane.f32.xlu0 %v2521
  %v2523 = vpop.xlane.xlu0 %2522
  %v2524 = vsel %vm53, %v2507, 0.0
  %2525 = vadd.xlane.f32.xlu0 %v2524
  %v2526 = vpop.xlane.xlu0 %2525
  %v2527 = vsel %vm53, %v2509, 0.0
  %2528 = vadd.xlane.f32.xlu0 %v2527
  %v2529 = vpop.xlane.xlu0 %2528
  %v2530 = vsel %vm53, %v2511, 0.0
  %2531 = vadd.xlane.f32.xlu0 %v2530
  %v2532 = vpop.xlane.xlu0 %2531
  %v2533 = vsel %vm53, %v2513, 0.0
  %2534 = vadd.xlane.f32.xlu0 %v2533
  %v2535 = vpop.xlane.xlu0 %2534
  %v2536 = vsel %vm53, %v2515, 0.0
  %2537 = vadd.xlane.f32.xlu0 %v2536
  %v2538 = vpop.xlane.xlu0 %2537
  %v2539 = vsel %vm53, %v2517, 0.0
  %2540 = vadd.xlane.f32.xlu0 %v2539
  %v2541 = vpop.xlane.xlu0 %2540
  %v2542 = vrcp.pop %v2520
  %v2543 = vrcp.pop %v2523
  %v2544 = vrcp.pop %v2526
  %v2545 = vrcp.pop %v2529
  %v2546 = vrcp.pop %v2532
  %v2547 = vrcp.pop %v2535
  %v2548 = vrcp.pop %v2538
  %v2549 = vrcp.pop %v2541
  %v2550 = vmul.f32 %v2503, %v2542
  %v2551 = vmul.f32 %v2505, %v2543
  %v2552 = vmul.f32 %v2507, %v2544
  %v2553 = vmul.f32 %v2509, %v2545
  %v2554 = vmul.f32 %v2511, %v2546
  %v2555 = vmul.f32 %v2513, %v2547
  %v2556 = vmul.f32 %v2515, %v2548
  %v2557 = vmul.f32 %v2517, %v2549
  %v2558 = vpack.c.bf16 %v2551, %v2550
  %v2559 = vpack.c.bf16 %v2553, %v2552
  %v2560 = vpack.c.bf16 %v2555, %v2554
  %v2561 = vpack.c.bf16 %v2557, %v2556
  %2566 = vrot.lane.b32.xlu0 %v2377, 96
  %v2567 = vpop.permute.xlu0 %2566
  %2568 = vrot.lane.b32.xlu0 %v2378, 96
  %v2569 = vpop.permute.xlu0 %2568
  %2570 = vrot.lane.b32.xlu0 %v2379, 96
  %v2571 = vpop.permute.xlu0 %2570
  %2572 = vrot.lane.b32.xlu0 %v2380, 96
  %v2573 = vpop.permute.xlu0 %2572
  %v2579 = vsel %vm53, %v2558, 0
  %v2582 = vsel %vm53, %v2559, 0
  %v2585 = vsel %vm53, %v2560, 0
  %v2588 = vsel %vm53, %v2561, 0
  %2590 = vmatprep.subr.bf16.mxu0 0
  %2591 = vmatpush1.bf16.msra.mxu0 %v2567
  %2592 = vmatprep.subr.bf16.mxu0 0
  %2593 = vmatpush1.bf16.msra.mxu0 %v2569
  %2594 = vmatprep.subr.bf16.mxu0 0
  %2595 = vmatpush1.bf16.msra.mxu0 %v2571
  %2596 = vmatprep.subr.bf16.mxu0 0
  %2597 = vmatpush1.bf16.msra.mxu0 %v2573
  %2598 = vmatprep.subr.bf16.mxu0 0
  %2599 = vmatpush1.bf16.msra.mxu0 0
  %2600 = vmatprep.subr.bf16.mxu0 0
  %2601 = vmatpush1.bf16.msra.mxu0 0
  %2602 = vmatprep.subr.bf16.mxu0 0
  %2603 = vmatpush1.bf16.msra.mxu0 0
  %2604 = vmatprep.subr.bf16.mxu0 0
  %2605 = vmatpush1.bf16.msra.mxu0 0
  %2606 = vmatprep.subr.bf16.mxu0 0
  %2607 = vmatpush1.bf16.msra.mxu0 0
  %2608 = vmatprep.subr.bf16.mxu0 0
  %2609 = vmatpush1.bf16.msra.mxu0 0
  %2610 = vmatprep.subr.bf16.mxu0 0
  %2611 = vmatpush1.bf16.msra.mxu0 0
  %2612 = vmatprep.subr.bf16.mxu0 0
  %2613 = vmatpush1.bf16.msra.mxu0 0
  %2614 = vmatprep.subr.bf16.mxu0 0
  %2615 = vmatpush1.bf16.msra.mxu0 0
  %2616 = vmatprep.subr.bf16.mxu0 0
  %2617 = vmatpush1.bf16.msra.mxu0 0
  %2618 = vmatprep.subr.bf16.mxu0 0
  %2619 = vmatpush1.bf16.msra.mxu0 0
  %2620 = vmatprep.subr.bf16.mxu0 0
  %2621 = vmatpush1.bf16.msra.mxu0 0
  %2622 = vmatprep.mubr.bf16.mxu0 0
  %2623 = vmatmul.mubr.bf16.gmra.mrb[0].mxu0 %v2579
  %v2624 = vpop.f32.mrb[0].mxu0
  %v2625 = vadd.f32 0.0, %v2624
  %v2626 = vpop.f32.mrb[0].mxu0
  %v2627 = vpop.f32.mrb[0].mxu0
  %v2628 = vadd.f32 0.0, %v2627
  %v2629 = vpop.f32.mrb[0].mxu0
  %2630 = vmatprep.mubr.bf16.mxu0 0
  %2631 = vmatmul.mubr.bf16.gmra.mrb[0].mxu0 %v2582
  %v2632 = vpop.f32.mrb[0].mxu0
  %v2633 = vadd.f32 0.0, %v2632
  %v2634 = vpop.f32.mrb[0].mxu0
  %v2635 = vpop.f32.mrb[0].mxu0
  %v2636 = vadd.f32 0.0, %v2635
  %v2637 = vpop.f32.mrb[0].mxu0
  %2638 = vmatprep.mubr.bf16.mxu0 0
  %2639 = vmatmul.mubr.bf16.gmra.mrb[0].mxu0 %v2585
  %v2640 = vpop.f32.mrb[0].mxu0
  %v2641 = vadd.f32 0.0, %v2640
  %v2642 = vpop.f32.mrb[0].mxu0
  %v2643 = vpop.f32.mrb[0].mxu0
  %v2644 = vadd.f32 0.0, %v2643
  %v2645 = vpop.f32.mrb[0].mxu0
  %2646 = vmatprep.mubr.bf16.mxu0 0
  %2647 = vmatmul.mubr.bf16.gmra.mrb[0].mxu0 %v2588
  %v2648 = vpop.f32.mrb[0].mxu0
  %v2649 = vadd.f32 0.0, %v2648
  %v2650 = vpop.f32.mrb[0].mxu0
  %v2651 = vpop.f32.mrb[0].mxu0
  %v2652 = vadd.f32 0.0, %v2651
  %v2653 = vpop.f32.mrb[0].mxu0
  %2654 = vdwg.mxu0
  %2657 = vrot.lane.b32.xlu0 %v2633, 8
  %v2658 = vpop.permute.xlu0 %2657
  %2659 = vrot.lane.b32.xlu0 %v2636, 8
  %v2660 = vpop.permute.xlu0 %2659
  %2665 = vrot.lane.b32.xlu0 %v2641, 16
  %v2666 = vpop.permute.xlu0 %2665
  %2667 = vrot.lane.b32.xlu0 %v2644, 16
  %v2668 = vpop.permute.xlu0 %2667
  %2673 = vrot.lane.b32.xlu0 %v2649, 24
  %v2674 = vpop.permute.xlu0 %2673
  %2675 = vrot.lane.b32.xlu0 %v2652, 24
  %v2676 = vpop.permute.xlu0 %2675
  %v2679 = vsel %vm502, %v2625, %v2658
  %v2680 = vsel %vm502, %v2628, %v2660
  %v2681 = vsel %vm330, %v2679, %v2666
  %v2682 = vsel %vm330, %v2680, %v2668
  %v2683 = vsel %vm801, %v2681, %v2674
  %v2684 = vsel %vm801, %v2682, %v2676
  %v2685 = vld [vmem:[%s6 + $0x78] sm:$0xff]
  %v2686 = vld [vmem:[%s6 + $0x80] sm:$0xff]
  %v2687 = vld [vmem:[%s6 + $0x88] sm:$0xff]
  %v2688 = vld [vmem:[%s6 + $0x90] sm:$0xff]
  %v2689 = vld [vmem:[%s6 + $0x98] sm:$0x1]
  %v2690 = vpack.c.bf16 %v2684, %v2683
  %v2691 = vpack.c.bf16 %v2686, %v2685
  %v2692 = vpack.c.bf16 %v2688, %v2687
  %v2693 = vlaneseq
  %v2694 = vshrl.u32 %v2693, 7
  %v2695 = vsub.s32 0, %v2694
  %v2696 = vrot.slane %v2689, %v2695
  %v2698 = vsel %vm332, %v2690, 0
  %2700 = vmatprep.subr.bf16.mxu0 0
  %2701 = vmatpush1.bf16.msra.mxu0 %v2691
  %2702 = vmatprep.subr.bf16.mxu0 0
  %2703 = vmatpush1.bf16.msra.mxu0 %v2692
  %2704 = vmatprep.subr.bf16.mxu0 0
  %2705 = vmatpush1.bf16.msra.mxu0 0
  %2706 = vmatprep.subr.bf16.mxu0 0
  %2707 = vmatpush1.bf16.msra.mxu0 0
  %2708 = vmatprep.subr.bf16.mxu0 0
  %2709 = vmatpush1.bf16.msra.mxu0 0
  %2710 = vmatprep.subr.bf16.mxu0 0
  %2711 = vmatpush1.bf16.msra.mxu0 0
  %2712 = vmatprep.subr.bf16.mxu0 0
  %2713 = vmatpush1.bf16.msra.mxu0 0
  %2714 = vmatprep.subr.bf16.mxu0 0
  %2715 = vmatpush1.bf16.msra.mxu0 0
  %2716 = vmatprep.subr.bf16.mxu0 0
  %2717 = vmatpush1.bf16.msra.mxu0 0
  %2718 = vmatprep.subr.bf16.mxu0 0
  %2719 = vmatpush1.bf16.msra.mxu0 0
  %2720 = vmatprep.subr.bf16.mxu0 0
  %2721 = vmatpush1.bf16.msra.mxu0 0
  %2722 = vmatprep.subr.bf16.mxu0 0
  %2723 = vmatpush1.bf16.msra.mxu0 0
  %2724 = vmatprep.subr.bf16.mxu0 0
  %2725 = vmatpush1.bf16.msra.mxu0 0
  %2726 = vmatprep.subr.bf16.mxu0 0
  %2727 = vmatpush1.bf16.msra.mxu0 0
  %2728 = vmatprep.subr.bf16.mxu0 0
  %2729 = vmatpush1.bf16.msra.mxu0 0
  %2730 = vmatprep.subr.bf16.mxu0 0
  %2731 = vmatpush1.bf16.msra.mxu0 0
  %2732 = vmatprep.mubr.bf16.mxu0 0
  %2733 = vmatmul.mubr.bf16.gmra.mrb[0].mxu0 %v2698
  %v2734 = vpop.f32.mrb[0].mxu0
  %v2735 = vadd.f32 %v2696, %v2734
  %v2736 = vpop.f32.mrb[0].mxu0
  %v2737 = vpop.f32.mrb[0].mxu0
  %v2738 = vadd.f32 %v2696, %v2737
  %v2739 = vpop.f32.mrb[0].mxu0
  %2740 = vdwg.mxu0
  %v2741 = vadd.f32 %v2735, %v2218
  %v2742 = vadd.f32 %v2738, %v2219
  %v2743 = vld [vmem:[%s6 + $0x118] sm:$0xff]
  %v2744 = vsel %vm332, %v2741, 0.0
  %2745 = vadd.xlane.f32.xlu0 %v2744
  %v2746 = vpop.xlane.xlu0 %2745
  %v2747 = vsel %vm332, %v2742, 0.0
  %2748 = vadd.xlane.f32.xlu0 %v2747
  %v2749 = vpop.xlane.xlu0 %2748
  %v2750 = vmul.f32 %v2746, %v869
  %v2751 = vmul.f32 %v2749, %v869
  %v2752 = vsub.f32 %v2741, %v2750
  %v2753 = vsub.f32 %v2742, %v2751
  %v2754 = vmul.f32 %v2752, %v2752
  %v2755 = vmul.f32 %v2753, %v2753
  %v2756 = vsel %vm332, %v2754, 0.0
  %2757 = vadd.xlane.f32.xlu0 %v2756
  %v2758 = vpop.xlane.xlu0 %2757
  %v2759 = vsel %vm332, %v2755, 0.0
  %2760 = vadd.xlane.f32.xlu0 %v2759
  %v2761 = vpop.xlane.xlu0 %2760
  %v2762 = vmul.f32 %v2758, %v869
  %v2763 = vmul.f32 %v2761, %v869
  %v2764 = vadd.f32 %v2762, 1e-05
  %v2765 = vadd.f32 %v2763, 1e-05
  %v2766 = vrsqrt.pop %v2764
  %v2767 = vrsqrt.pop %v2765
  %v2768 = vmul.f32 %v2752, %v2766
  %v2769 = vmul.f32 %v2753, %v2767
  %v2770 = vlaneseq
  %v2771 = vshrl.u32 %v2770, 7
  %v2772 = vsub.s32 0, %v2771
  %v2773 = vrot.slane %v2743, %v2772
  %v2774 = vmul.f32 %v2768, %v2773
  %v2775 = vmul.f32 %v2769, %v2773
  %v2776 = vlaneseq
  %v2777 = vshrl.u32 %v2776, 7
  %v2778 = vsub.s32 1, %v2777
  %v2779 = vrot.slane %v2743, %v2778
  %v2780 = vadd.f32 %v2774, %v2779
  %v2781 = vadd.f32 %v2775, %v2779
  %v2782 = vld [vmem:[%s5 + $0x50] sm:$0xff]
  %v2783 = vld [vmem:[%s5 + $0x58] sm:$0xff]
  %v2784 = vld [vmem:[%s5 + $0x60] sm:$0xff]
  %v2785 = vld [vmem:[%s5 + $0x68] sm:$0xff]
  %v2786 = vld [vmem:[%s5 + $0x70] sm:$0x1]
  %v2787 = vld [vmem:[%s6 + $0x240] sm:$0xff]
  %v2788 = vld [vmem:[%s6 + $0x248] sm:$0xff]
  %v2789 = vld [vmem:[%s6 + $0x250] sm:$0xff]
  %v2790 = vld [vmem:[%s6 + $0x258] sm:$0xff]
  %v2791 = vld [vmem:[%s6 + $0x260] sm:$0xff]
  %v2792 = vld [vmem:[%s6 + $0x268] sm:$0xff]
  %v2793 = vld [vmem:[%s6 + $0x270] sm:$0xff]
  %v2794 = vld [vmem:[%s6 + $0x278] sm:$0xff]
  %v2795 = vld [vmem:[%s6 + $0x280] sm:$0xff]
  %v2796 = vld [vmem:[%s6 + $0x288] sm:$0xff]
  %v2797 = vld [vmem:[%s6 + $0x290] sm:$0xff]
  %v2798 = vld [vmem:[%s6 + $0x298] sm:$0xff]
  %v2799 = vld [vmem:[%s6 + $0x2a0] sm:$0xff]
  %v2800 = vld [vmem:[%s6 + $0x2a8] sm:$0xff]
  %v2801 = vld [vmem:[%s6 + $0x2b0] sm:$0xff]
  %v2802 = vld [vmem:[%s6 + $0x2b8] sm:$0xff]
  %v2803 = vld [vmem:[%s6 + $0x2c0] sm:$0x1]
  %v2804 = vpack.c.bf16 %v2781, %v2780
  %v2805 = vpack.c.bf16 %v2783, %v2782
  %v2806 = vpack.c.bf16 %v2785, %v2784
  %v2807 = vlaneseq
  %v2808 = vshrl.u32 %v2807, 7
  %v2809 = vsub.s32 0, %v2808
  %v2810 = vrot.slane %v2786, %v2809
  %v2812 = vsel %vm332, %v2804, 0
  %2814 = vmatprep.subr.bf16.mxu0 0
  %2815 = vmatpush1.bf16.msra.mxu0 %v2805
  %2816 = vmatprep.subr.bf16.mxu0 0
  %2817 = vmatpush1.bf16.msra.mxu0 %v2806
  %2818 = vmatprep.subr.bf16.mxu0 0
  %2819 = vmatpush1.bf16.msra.mxu0 0
  %2820 = vmatprep.subr.bf16.mxu0 0
  %2821 = vmatpush1.bf16.msra.mxu0 0
  %2822 = vmatprep.subr.bf16.mxu0 0
  %2823 = vmatpush1.bf16.msra.mxu0 0
  %2824 = vmatprep.subr.bf16.mxu0 0
  %2825 = vmatpush1.bf16.msra.mxu0 0
  %2826 = vmatprep.subr.bf16.mxu0 0
  %2827 = vmatpush1.bf16.msra.mxu0 0
  %2828 = vmatprep.subr.bf16.mxu0 0
  %2829 = vmatpush1.bf16.msra.mxu0 0
  %2830 = vmatprep.subr.bf16.mxu0 0
  %2831 = vmatpush1.bf16.msra.mxu0 0
  %2832 = vmatprep.subr.bf16.mxu0 0
  %2833 = vmatpush1.bf16.msra.mxu0 0
  %2834 = vmatprep.subr.bf16.mxu0 0
  %2835 = vmatpush1.bf16.msra.mxu0 0
  %2836 = vmatprep.subr.bf16.mxu0 0
  %2837 = vmatpush1.bf16.msra.mxu0 0
  %2838 = vmatprep.subr.bf16.mxu0 0
  %2839 = vmatpush1.bf16.msra.mxu0 0
  %2840 = vmatprep.subr.bf16.mxu0 0
  %2841 = vmatpush1.bf16.msra.mxu0 0
  %2842 = vmatprep.subr.bf16.mxu0 0
  %2843 = vmatpush1.bf16.msra.mxu0 0
  %2844 = vmatprep.subr.bf16.mxu0 0
  %2845 = vmatpush1.bf16.msra.mxu0 0
  %2846 = vmatprep.mubr.bf16.mxu0 0
  %2847 = vmatmul.mubr.bf16.gmra.mrb[0].mxu0 %v2812
  %v2848 = vpop.f32.mrb[0].mxu0
  %v2849 = vadd.f32 %v2810, %v2848
  %v2850 = vpop.f32.mrb[0].mxu0
  %v2851 = vpop.f32.mrb[0].mxu0
  %v2852 = vadd.f32 %v2810, %v2851
  %v2853 = vpop.f32.mrb[0].mxu0
  %2854 = vdwg.mxu0
  %v2855 = vmax.f32 %v2849, 0.0
  %v2856 = vmax.f32 %v2852, 0.0
  %v2857 = vpack.c.bf16 %v2856, %v2855
  %v2858 = vpack.c.bf16 %v2788, %v2787
  %v2859 = vpack.c.bf16 %v2790, %v2789
  %v2860 = vpack.c.bf16 %v2792, %v2791
  %v2861 = vpack.c.bf16 %v2794, %v2793
  %v2862 = vpack.c.bf16 %v2796, %v2795
  %v2863 = vpack.c.bf16 %v2798, %v2797
  %v2864 = vpack.c.bf16 %v2800, %v2799
  %v2865 = vpack.c.bf16 %v2802, %v2801
  %v2866 = vlaneseq
  %v2867 = vshrl.u32 %v2866, 7
  %v2868 = vsub.s32 0, %v2867
  %v2869 = vrot.slane %v2803, %v2868
  %2870 = vmatprep.subr.bf16.mxu0 0
  %2871 = vmatpush1.bf16.msra.mxu0 %v2858
  %2872 = vmatprep.subr.bf16.mxu0 0
  %2873 = vmatpush1.bf16.msra.mxu0 %v2859
  %2874 = vmatprep.subr.bf16.mxu0 0
  %2875 = vmatpush1.bf16.msra.mxu0 %v2860
  %2876 = vmatprep.subr.bf16.mxu0 0
  %2877 = vmatpush1.bf16.msra.mxu0 %v2861
  %2878 = vmatprep.subr.bf16.mxu0 0
  %2879 = vmatpush1.bf16.msra.mxu0 %v2862
  %2880 = vmatprep.subr.bf16.mxu0 0
  %2881 = vmatpush1.bf16.msra.mxu0 %v2863
  %2882 = vmatprep.subr.bf16.mxu0 0
  %2883 = vmatpush1.bf16.msra.mxu0 %v2864
  %2884 = vmatprep.subr.bf16.mxu0 0
  %2885 = vmatpush1.bf16.msra.mxu0 %v2865
  %2886 = vmatprep.subr.bf16.mxu0 0
  %2887 = vmatpush1.bf16.msra.mxu0 0
  %2888 = vmatprep.subr.bf16.mxu0 0
  %2889 = vmatpush1.bf16.msra.mxu0 0
  %2890 = vmatprep.subr.bf16.mxu0 0
  %2891 = vmatpush1.bf16.msra.mxu0 0
  %2892 = vmatprep.subr.bf16.mxu0 0
  %2893 = vmatpush1.bf16.msra.mxu0 0
  %2894 = vmatprep.subr.bf16.mxu0 0
  %2895 = vmatpush1.bf16.msra.mxu0 0
  %2896 = vmatprep.subr.bf16.mxu0 0
  %2897 = vmatpush1.bf16.msra.mxu0 0
  %2898 = vmatprep.subr.bf16.mxu0 0
  %2899 = vmatpush1.bf16.msra.mxu0 0
  %2900 = vmatprep.subr.bf16.mxu0 0
  %2901 = vmatpush1.bf16.msra.mxu0 0
  %2902 = vmatprep.mubr.bf16.mxu0 0
  %2903 = vmatmul.mubr.bf16.gmra.mrb[0].mxu0 %v2857
  %v2904 = vpop.f32.mrb[0].mxu0
  %v2905 = vadd.f32 %v2869, %v2904
  %v2906 = vpop.f32.mrb[0].mxu0
  %v2907 = vpop.f32.mrb[0].mxu0
  %v2908 = vadd.f32 %v2869, %v2907
  %v2909 = vpop.f32.mrb[0].mxu0
  %2910 = vdwg.mxu0
  %v2911 = vadd.f32 %v2905, %v2780
  %v2912 = vadd.f32 %v2908, %v2781
  %v2913 = vld [vmem:[%s4 + $0xa0] sm:$0xff]
  %v2914 = vld [vmem:[%s4 + $0xa8] sm:$0xff]
  %v2915 = vld [vmem:[%s4 + $0xb0] sm:$0xff]
  %v2916 = vld [vmem:[%s4 + $0xb8] sm:$0xff]
  %v2917 = vld [vmem:[%s4 + $0xc0] sm:$0x1]
  %v2918 = vpack.c.bf16 %v2912, %v2911
  %v2919 = vpack.c.bf16 %v2914, %v2913
  %v2920 = vpack.c.bf16 %v2916, %v2915
  %v2921 = vlaneseq
  %v2922 = vshrl.u32 %v2921, 7
  %v2923 = vsub.s32 0, %v2922
  %v2924 = vrot.slane %v2917, %v2923
  %v2926 = vsel %vm332, %v2918, 0
  %2928 = vmatprep.subr.bf16.mxu0 0
  %2929 = vmatpush1.bf16.msra.mxu0 %v2919
  %2930 = vmatprep.subr.bf16.mxu0 0
  %2931 = vmatpush1.bf16.msra.mxu0 %v2920
  %2932 = vmatprep.subr.bf16.mxu0 0
  %2933 = vmatpush1.bf16.msra.mxu0 0
  %2934 = vmatprep.subr.bf16.mxu0 0
  %2935 = vmatpush1.bf16.msra.mxu0 0
  %2936 = vmatprep.subr.bf16.mxu0 0
  %2937 = vmatpush1.bf16.msra.mxu0 0
  %2938 = vmatprep.subr.bf16.mxu0 0
  %2939 = vmatpush1.bf16.msra.mxu0 0
  %2940 = vmatprep.subr.bf16.mxu0 0
  %2941 = vmatpush1.bf16.msra.mxu0 0
  %2942 = vmatprep.subr.bf16.mxu0 0
  %2943 = vmatpush1.bf16.msra.mxu0 0
  %2944 = vmatprep.subr.bf16.mxu0 0
  %2945 = vmatpush1.bf16.msra.mxu0 0
  %2946 = vmatprep.subr.bf16.mxu0 0
  %2947 = vmatpush1.bf16.msra.mxu0 0
  %2948 = vmatprep.subr.bf16.mxu0 0
  %2949 = vmatpush1.bf16.msra.mxu0 0
  %2950 = vmatprep.subr.bf16.mxu0 0
  %2951 = vmatpush1.bf16.msra.mxu0 0
  %2952 = vmatprep.subr.bf16.mxu0 0
  %2953 = vmatpush1.bf16.msra.mxu0 0
  %2954 = vmatprep.subr.bf16.mxu0 0
  %2955 = vmatpush1.bf16.msra.mxu0 0
  %2956 = vmatprep.subr.bf16.mxu0 0
  %2957 = vmatpush1.bf16.msra.mxu0 0
  %2958 = vmatprep.subr.bf16.mxu0 0
  %2959 = vmatpush1.bf16.msra.mxu0 0
  %2960 = vmatprep.mubr.bf16.mxu0 0
  %2961 = vmatmul.mubr.bf16.gmra.mrb[0].mxu0 %v2926
  %v2962 = vpop.f32.mrb[0].mxu0
  %v2963 = vadd.f32 %v2924, %v2962
  %v2964 = vpop.f32.mrb[0].mxu0
  %v2965 = vpop.f32.mrb[0].mxu0
  %v2966 = vadd.f32 %v2924, %v2965
  %v2967 = vpop.f32.mrb[0].mxu0
  %2968 = vdwg.mxu0
  %2971 = vrot.lane.b32.xlu0 %v2963, 120
  %v2972 = vpop.permute.xlu0 %2971
  %2973 = vrot.lane.b32.xlu0 %v2966, 120
  %v2974 = vpop.permute.xlu0 %2973
  %2977 = vrot.lane.b32.xlu0 %v2963, 112
  %v2978 = vpop.permute.xlu0 %2977
  %2979 = vrot.lane.b32.xlu0 %v2966, 112
  %v2980 = vpop.permute.xlu0 %2979
  %2983 = vrot.lane.b32.xlu0 %v2963, 104
  %v2984 = vpop.permute.xlu0 %2983
  %2985 = vrot.lane.b32.xlu0 %v2966, 104
  %v2986 = vpop.permute.xlu0 %2985
  %v2989 = vpack.c.bf16 %v2966, %v2963
  %v2990 = vpack.c.bf16 %v2974, %v2972
  %v2991 = vpack.c.bf16 %v2980, %v2978
  %v2992 = vpack.c.bf16 %v2986, %v2984
  %2997 = vrot.lane.b32.xlu0 %v2989, 96
  %v2998 = vpop.permute.xlu0 %2997
  %2999 = vrot.lane.b32.xlu0 %v2990, 96
  %v3000 = vpop.permute.xlu0 %2999
  %3001 = vrot.lane.b32.xlu0 %v2991, 96
  %v3002 = vpop.permute.xlu0 %3001
  %3003 = vrot.lane.b32.xlu0 %v2992, 96
  %v3004 = vpop.permute.xlu0 %3003
  %v3006 = vsel %vm502, %v2989, 0
  %v3009 = vsel %vm502, %v2990, 0
  %v3012 = vsel %vm502, %v2991, 0
  %v3015 = vsel %vm502, %v2992, 0
  %v3018 = vsel %vm502, %v2998, 0
  %v3021 = vsel %vm502, %v3000, 0
  %v3024 = vsel %vm502, %v3002, 0
  %v3027 = vsel %vm502, %v3004, 0
  %3029 = vmatprep.subr.bf16.mxu0 0
  %3030 = vmatpush1.bf16.xpose.msra.mxu0 %v3018
  %3031 = vmatprep.subr.bf16.mxu0 0
  %3032 = vmatpush1.bf16.xpose.msra.mxu0 %v3021
  %3033 = vmatprep.subr.bf16.mxu0 0
  %3034 = vmatpush1.bf16.xpose.msra.mxu0 %v3024
  %3035 = vmatprep.subr.bf16.mxu0 0
  %3036 = vmatpush1.bf16.xpose.msra.mxu0 %v3027
  %3037 = vmatprep.subr.bf16.mxu0 0
  %3038 = vmatpush1.bf16.xpose.msra.mxu0 0
  %3039 = vmatprep.subr.bf16.mxu0 0
  %3040 = vmatpush1.bf16.xpose.msra.mxu0 0
  %3041 = vmatprep.subr.bf16.mxu0 0
  %3042 = vmatpush1.bf16.xpose.msra.mxu0 0
  %3043 = vmatprep.subr.bf16.mxu0 0
  %3044 = vmatpush1.bf16.xpose.msra.mxu0 0
  %3045 = vmatprep.subr.bf16.mxu0 0
  %3046 = vmatpush1.bf16.xpose.msra.mxu0 0
  %3047 = vmatprep.subr.bf16.mxu0 0
  %3048 = vmatpush1.bf16.xpose.msra.mxu0 0
  %3049 = vmatprep.subr.bf16.mxu0 0
  %3050 = vmatpush1.bf16.xpose.msra.mxu0 0
  %3051 = vmatprep.subr.bf16.mxu0 0
  %3052 = vmatpush1.bf16.xpose.msra.mxu0 0
  %3053 = vmatprep.subr.bf16.mxu0 0
  %3054 = vmatpush1.bf16.xpose.msra.mxu0 0
  %3055 = vmatprep.subr.bf16.mxu0 0
  %3056 = vmatpush1.bf16.xpose.msra.mxu0 0
  %3057 = vmatprep.subr.bf16.mxu0 0
  %3058 = vmatpush1.bf16.xpose.msra.mxu0 0
  %3059 = vmatprep.subr.bf16.mxu0 0
  %3060 = vmatpush1.bf16.xpose.msra.mxu0 0
  %3061 = vmatprep.mubr.bf16.mxu0 0
  %3062 = vmatmul.mubr.bf16.gmra.mrb[0].mxu0 %v3006
  %v3063 = vpop.f32.mrb[0].mxu0
  %v3064 = vadd.f32 %v393, %v3063
  %v3065 = vpop.f32.mrb[0].mxu0
  %v3066 = vpop.f32.mrb[0].mxu0
  %v3067 = vadd.f32 %v394, %v3066
  %v3068 = vpop.f32.mrb[0].mxu0
  %3069 = vmatprep.mubr.bf16.mxu0 0
  %3070 = vmatmul.mubr.bf16.gmra.mrb[0].mxu0 %v3009
  %v3071 = vpop.f32.mrb[0].mxu0
  %v3072 = vadd.f32 %v395, %v3071
  %v3073 = vpop.f32.mrb[0].mxu0
  %v3074 = vpop.f32.mrb[0].mxu0
  %v3075 = vadd.f32 %v396, %v3074
  %v3076 = vpop.f32.mrb[0].mxu0
  %3077 = vmatprep.mubr.bf16.mxu0 0
  %3078 = vmatmul.mubr.bf16.gmra.mrb[0].mxu0 %v3012
  %v3079 = vpop.f32.mrb[0].mxu0
  %v3080 = vadd.f32 %v397, %v3079
  %v3081 = vpop.f32.mrb[0].mxu0
  %v3082 = vpop.f32.mrb[0].mxu0
  %v3083 = vadd.f32 %v398, %v3082
  %v3084 = vpop.f32.mrb[0].mxu0
  %3085 = vmatprep.mubr.bf16.mxu0 0
  %3086 = vmatmul.mubr.bf16.gmra.mrb[0].mxu0 %v3015
  %v3087 = vpop.f32.mrb[0].mxu0
  %v3088 = vadd.f32 %v399, %v3087
  %v3089 = vpop.f32.mrb[0].mxu0
  %v3090 = vpop.f32.mrb[0].mxu0
  %v3091 = vadd.f32 %v400, %v3090
  %v3092 = vpop.f32.mrb[0].mxu0
  %3093 = vdwg.mxu0
  %v3094 = vsel %vm53, %v3064, -inf
  %3095 = vmax.xlane.f32.xlu0 %v3094
  %v3096 = vpop.xlane.xlu0 %3095
  %v3097 = vsel %vm53, %v3067, -inf
  %3098 = vmax.xlane.f32.xlu0 %v3097
  %v3099 = vpop.xlane.xlu0 %3098
  %v3100 = vsel %vm53, %v3072, -inf
  %3101 = vmax.xlane.f32.xlu0 %v3100
  %v3102 = vpop.xlane.xlu0 %3101
  %v3103 = vsel %vm53, %v3075, -inf
  %3104 = vmax.xlane.f32.xlu0 %v3103
  %v3105 = vpop.xlane.xlu0 %3104
  %v3106 = vsel %vm53, %v3080, -inf
  %3107 = vmax.xlane.f32.xlu0 %v3106
  %v3108 = vpop.xlane.xlu0 %3107
  %v3109 = vsel %vm53, %v3083, -inf
  %3110 = vmax.xlane.f32.xlu0 %v3109
  %v3111 = vpop.xlane.xlu0 %3110
  %v3112 = vsel %vm53, %v3088, -inf
  %3113 = vmax.xlane.f32.xlu0 %v3112
  %v3114 = vpop.xlane.xlu0 %3113
  %v3115 = vsel %vm53, %v3091, -inf
  %3116 = vmax.xlane.f32.xlu0 %v3115
  %v3117 = vpop.xlane.xlu0 %3116
  %v3118 = vsub.f32 %v3064, %v3096
  %v3119 = vsub.f32 %v3067, %v3099
  %v3120 = vsub.f32 %v3072, %v3102
  %v3121 = vsub.f32 %v3075, %v3105
  %v3122 = vsub.f32 %v3080, %v3108
  %v3123 = vsub.f32 %v3083, %v3111
  %v3124 = vsub.f32 %v3088, %v3114
  %v3125 = vsub.f32 %v3091, %v3117
  %v3126 = vmul.f32 %v3118, 1.442695
  %v3127 = vpow.pop %v3126
  %v3128 = vmul.f32 %v3119, 1.442695
  %v3129 = vpow.pop %v3128
  %v3130 = vmul.f32 %v3120, 1.442695
  %v3131 = vpow.pop %v3130
  %v3132 = vmul.f32 %v3121, 1.442695
  %v3133 = vpow.pop %v3132
  %v3134 = vmul.f32 %v3122, 1.442695
  %v3135 = vpow.pop %v3134
  %v3136 = vmul.f32 %v3123, 1.442695
  %v3137 = vpow.pop %v3136
  %v3138 = vmul.f32 %v3124, 1.442695
  %v3139 = vpow.pop %v3138
  %v3140 = vmul.f32 %v3125, 1.442695
  %v3141 = vpow.pop %v3140
  %v3142 = vsel %vm53, %v3127, 0.0
  %3143 = vadd.xlane.f32.xlu0 %v3142
  %v3144 = vpop.xlane.xlu0 %3143
  %v3145 = vsel %vm53, %v3129, 0.0
  %3146 = vadd.xlane.f32.xlu0 %v3145
  %v3147 = vpop.xlane.xlu0 %3146
  %v3148 = vsel %vm53, %v3131, 0.0
  %3149 = vadd.xlane.f32.xlu0 %v3148
  %v3150 = vpop.xlane.xlu0 %3149
  %v3151 = vsel %vm53, %v3133, 0.0
  %3152 = vadd.xlane.f32.xlu0 %v3151
  %v3153 = vpop.xlane.xlu0 %3152
  %v3154 = vsel %vm53, %v3135, 0.0
  %3155 = vadd.xlane.f32.xlu0 %v3154
  %v3156 = vpop.xlane.xlu0 %3155
  %v3157 = vsel %vm53, %v3137, 0.0
  %3158 = vadd.xlane.f32.xlu0 %v3157
  %v3159 = vpop.xlane.xlu0 %3158
  %v3160 = vsel %vm53, %v3139, 0.0
  %3161 = vadd.xlane.f32.xlu0 %v3160
  %v3162 = vpop.xlane.xlu0 %3161
  %v3163 = vsel %vm53, %v3141, 0.0
  %3164 = vadd.xlane.f32.xlu0 %v3163
  %v3165 = vpop.xlane.xlu0 %3164
  %v3166 = vrcp.pop %v3144
  %v3167 = vrcp.pop %v3147
  %v3168 = vrcp.pop %v3150
  %v3169 = vrcp.pop %v3153
  %v3170 = vrcp.pop %v3156
  %v3171 = vrcp.pop %v3159
  %v3172 = vrcp.pop %v3162
  %v3173 = vrcp.pop %v3165
  %v3174 = vmul.f32 %v3127, %v3166
  %v3175 = vmul.f32 %v3129, %v3167
  %v3176 = vmul.f32 %v3131, %v3168
  %v3177 = vmul.f32 %v3133, %v3169
  %v3178 = vmul.f32 %v3135, %v3170
  %v3179 = vmul.f32 %v3137, %v3171
  %v3180 = vmul.f32 %v3139, %v3172
  %v3181 = vmul.f32 %v3141, %v3173
  %v3182 = vpack.c.bf16 %v3175, %v3174
  %v3183 = vpack.c.bf16 %v3177, %v3176
  %v3184 = vpack.c.bf16 %v3179, %v3178
  %v3185 = vpack.c.bf16 %v3181, %v3180
  %3186 = vrot.lane.b32.xlu0 %v2989, 64
  %v3187 = vpop.permute.xlu0 %3186
  %3188 = vrot.lane.b32.xlu0 %v2990, 64
  %v3189 = vpop.permute.xlu0 %3188
  %3190 = vrot.lane.b32.xlu0 %v2991, 64
  %v3191 = vpop.permute.xlu0 %3190
  %3192 = vrot.lane.b32.xlu0 %v2992, 64
  %v3193 = vpop.permute.xlu0 %3192
  %v3199 = vsel %vm53, %v3182, 0
  %v3202 = vsel %vm53, %v3183, 0
  %v3205 = vsel %vm53, %v3184, 0
  %v3208 = vsel %vm53, %v3185, 0
  %3210 = vmatprep.subr.bf16.mxu0 0
  %3211 = vmatpush1.bf16.msra.mxu0 %v3187
  %3212 = vmatprep.subr.bf16.mxu0 0
  %3213 = vmatpush1.bf16.msra.mxu0 %v3189
  %3214 = vmatprep.subr.bf16.mxu0 0
  %3215 = vmatpush1.bf16.msra.mxu0 %v3191
  %3216 = vmatprep.subr.bf16.mxu0 0
  %3217 = vmatpush1.bf16.msra.mxu0 %v3193
  %3218 = vmatprep.subr.bf16.mxu0 0
  %3219 = vmatpush1.bf16.msra.mxu0 0
  %3220 = vmatprep.subr.bf16.mxu0 0
  %3221 = vmatpush1.bf16.msra.mxu0 0
  %3222 = vmatprep.subr.bf16.mxu0 0
  %3223 = vmatpush1.bf16.msra.mxu0 0
  %3224 = vmatprep.subr.bf16.mxu0 0
  %3225 = vmatpush1.bf16.msra.mxu0 0
  %3226 = vmatprep.subr.bf16.mxu0 0
  %3227 = vmatpush1.bf16.msra.mxu0 0
  %3228 = vmatprep.subr.bf16.mxu0 0
  %3229 = vmatpush1.bf16.msra.mxu0 0
  %3230 = vmatprep.subr.bf16.mxu0 0
  %3231 = vmatpush1.bf16.msra.mxu0 0
  %3232 = vmatprep.subr.bf16.mxu0 0
  %3233 = vmatpush1.bf16.msra.mxu0 0
  %3234 = vmatprep.subr.bf16.mxu0 0
  %3235 = vmatpush1.bf16.msra.mxu0 0
  %3236 = vmatprep.subr.bf16.mxu0 0
  %3237 = vmatpush1.bf16.msra.mxu0 0
  %3238 = vmatprep.subr.bf16.mxu0 0
  %3239 = vmatpush1.bf16.msra.mxu0 0
  %3240 = vmatprep.subr.bf16.mxu0 0
  %3241 = vmatpush1.bf16.msra.mxu0 0
  %3242 = vmatprep.mubr.bf16.mxu0 0
  %3243 = vmatmul.mubr.bf16.gmra.mrb[0].mxu0 %v3199
  %v3244 = vpop.f32.mrb[0].mxu0
  %v3245 = vadd.f32 0.0, %v3244
  %v3246 = vpop.f32.mrb[0].mxu0
  %v3247 = vpop.f32.mrb[0].mxu0
  %v3248 = vadd.f32 0.0, %v3247
  %v3249 = vpop.f32.mrb[0].mxu0
  %3250 = vmatprep.mubr.bf16.mxu0 0
  %3251 = vmatmul.mubr.bf16.gmra.mrb[0].mxu0 %v3202
  %v3252 = vpop.f32.mrb[0].mxu0
  %v3253 = vadd.f32 0.0, %v3252
  %v3254 = vpop.f32.mrb[0].mxu0
  %v3255 = vpop.f32.mrb[0].mxu0
  %v3256 = vadd.f32 0.0, %v3255
  %v3257 = vpop.f32.mrb[0].mxu0
  %3258 = vmatprep.mubr.bf16.mxu0 0
  %3259 = vmatmul.mubr.bf16.gmra.mrb[0].mxu0 %v3205
  %v3260 = vpop.f32.mrb[0].mxu0
  %v3261 = vadd.f32 0.0, %v3260
  %v3262 = vpop.f32.mrb[0].mxu0
  %v3263 = vpop.f32.mrb[0].mxu0
  %v3264 = vadd.f32 0.0, %v3263
  %v3265 = vpop.f32.mrb[0].mxu0
  %3266 = vmatprep.mubr.bf16.mxu0 0
  %3267 = vmatmul.mubr.bf16.gmra.mrb[0].mxu0 %v3208
  %v3268 = vpop.f32.mrb[0].mxu0
  %v3269 = vadd.f32 0.0, %v3268
  %v3270 = vpop.f32.mrb[0].mxu0
  %v3271 = vpop.f32.mrb[0].mxu0
  %v3272 = vadd.f32 0.0, %v3271
  %v3273 = vpop.f32.mrb[0].mxu0
  %3274 = vdwg.mxu0
  %3277 = vrot.lane.b32.xlu0 %v3253, 8
  %v3278 = vpop.permute.xlu0 %3277
  %3279 = vrot.lane.b32.xlu0 %v3256, 8
  %v3280 = vpop.permute.xlu0 %3279
  %3285 = vrot.lane.b32.xlu0 %v3261, 16
  %v3286 = vpop.permute.xlu0 %3285
  %3287 = vrot.lane.b32.xlu0 %v3264, 16
  %v3288 = vpop.permute.xlu0 %3287
  %3293 = vrot.lane.b32.xlu0 %v3269, 24
  %v3294 = vpop.permute.xlu0 %3293
  %3295 = vrot.lane.b32.xlu0 %v3272, 24
  %v3296 = vpop.permute.xlu0 %3295
  %v3299 = vsel %vm502, %v3245, %v3278
  %v3300 = vsel %vm502, %v3248, %v3280
  %v3301 = vsel %vm330, %v3299, %v3286
  %v3302 = vsel %vm330, %v3300, %v3288
  %v3303 = vsel %vm801, %v3301, %v3294
  %v3304 = vsel %vm801, %v3302, %v3296
  %v3305 = vld [vmem:[%s6 + $0xa0] sm:$0xff]
  %v3306 = vld [vmem:[%s6 + $0xa8] sm:$0xff]
  %v3307 = vld [vmem:[%s6 + $0xb0] sm:$0xff]
  %v3308 = vld [vmem:[%s6 + $0xb8] sm:$0xff]
  %v3309 = vld [vmem:[%s6 + $0xc0] sm:$0x1]
  %v3310 = vpack.c.bf16 %v3304, %v3303
  %v3311 = vpack.c.bf16 %v3306, %v3305
  %v3312 = vpack.c.bf16 %v3308, %v3307
  %v3313 = vlaneseq
  %v3314 = vshrl.u32 %v3313, 7
  %v3315 = vsub.s32 0, %v3314
  %v3316 = vrot.slane %v3309, %v3315
  %v3318 = vsel %vm332, %v3310, 0
  %3320 = vmatprep.subr.bf16.mxu0 0
  %3321 = vmatpush1.bf16.msra.mxu0 %v3311
  %3322 = vmatprep.subr.bf16.mxu0 0
  %3323 = vmatpush1.bf16.msra.mxu0 %v3312
  %3324 = vmatprep.subr.bf16.mxu0 0
  %3325 = vmatpush1.bf16.msra.mxu0 0
  %3326 = vmatprep.subr.bf16.mxu0 0
  %3327 = vmatpush1.bf16.msra.mxu0 0
  %3328 = vmatprep.subr.bf16.mxu0 0
  %3329 = vmatpush1.bf16.msra.mxu0 0
  %3330 = vmatprep.subr.bf16.mxu0 0
  %3331 = vmatpush1.bf16.msra.mxu0 0
  %3332 = vmatprep.subr.bf16.mxu0 0
  %3333 = vmatpush1.bf16.msra.mxu0 0
  %3334 = vmatprep.subr.bf16.mxu0 0
  %3335 = vmatpush1.bf16.msra.mxu0 0
  %3336 = vmatprep.subr.bf16.mxu0 0
  %3337 = vmatpush1.bf16.msra.mxu0 0
  %3338 = vmatprep.subr.bf16.mxu0 0
  %3339 = vmatpush1.bf16.msra.mxu0 0
  %3340 = vmatprep.subr.bf16.mxu0 0
  %3341 = vmatpush1.bf16.msra.mxu0 0
  %3342 = vmatprep.subr.bf16.mxu0 0
  %3343 = vmatpush1.bf16.msra.mxu0 0
  %3344 = vmatprep.subr.bf16.mxu0 0
  %3345 = vmatpush1.bf16.msra.mxu0 0
  %3346 = vmatprep.subr.bf16.mxu0 0
  %3347 = vmatpush1.bf16.msra.mxu0 0
  %3348 = vmatprep.subr.bf16.mxu0 0
  %3349 = vmatpush1.bf16.msra.mxu0 0
  %3350 = vmatprep.subr.bf16.mxu0 0
  %3351 = vmatpush1.bf16.msra.mxu0 0
  %3352 = vmatprep.mubr.bf16.mxu0 0
  %3353 = vmatmul.mubr.bf16.gmra.mrb[0].mxu0 %v3318
  %v3354 = vpop.f32.mrb[0].mxu0
  %v3355 = vadd.f32 %v3316, %v3354
  %v3356 = vpop.f32.mrb[0].mxu0
  %v3357 = vpop.f32.mrb[0].mxu0
  %v3358 = vadd.f32 %v3316, %v3357
  %v3359 = vpop.f32.mrb[0].mxu0
  %3360 = vdwg.mxu0
  %v3361 = vadd.f32 %v3355, %v2911
  %v3362 = vadd.f32 %v3358, %v2912
  %v3363 = vld [vmem:[%s6 + $0x120] sm:$0xff]
  %v3364 = vsel %vm332, %v3361, 0.0
  %3365 = vadd.xlane.f32.xlu0 %v3364
  %v3366 = vpop.xlane.xlu0 %3365
  %v3367 = vsel %vm332, %v3362, 0.0
  %3368 = vadd.xlane.f32.xlu0 %v3367
  %v3369 = vpop.xlane.xlu0 %3368
  %v3370 = vmul.f32 %v3366, %v869
  %v3371 = vmul.f32 %v3369, %v869
  %v3372 = vsub.f32 %v3361, %v3370
  %v3373 = vsub.f32 %v3362, %v3371
  %v3374 = vmul.f32 %v3372, %v3372
  %v3375 = vmul.f32 %v3373, %v3373
  %v3376 = vsel %vm332, %v3374, 0.0
  %3377 = vadd.xlane.f32.xlu0 %v3376
  %v3378 = vpop.xlane.xlu0 %3377
  %v3379 = vsel %vm332, %v3375, 0.0
  %3380 = vadd.xlane.f32.xlu0 %v3379
  %v3381 = vpop.xlane.xlu0 %3380
  %v3382 = vmul.f32 %v3378, %v869
  %v3383 = vmul.f32 %v3381, %v869
  %v3384 = vadd.f32 %v3382, 1e-05
  %v3385 = vadd.f32 %v3383, 1e-05
  %v3386 = vrsqrt.pop %v3384
  %v3387 = vrsqrt.pop %v3385
  %v3388 = vmul.f32 %v3372, %v3386
  %v3389 = vmul.f32 %v3373, %v3387
  %v3390 = vlaneseq
  %v3391 = vshrl.u32 %v3390, 7
  %v3392 = vsub.s32 0, %v3391
  %v3393 = vrot.slane %v3363, %v3392
  %v3394 = vmul.f32 %v3388, %v3393
  %v3395 = vmul.f32 %v3389, %v3393
  %v3396 = vlaneseq
  %v3397 = vshrl.u32 %v3396, 7
  %v3398 = vsub.s32 1, %v3397
  %v3399 = vrot.slane %v3363, %v3398
  %v3400 = vadd.f32 %v3394, %v3399
  %v3401 = vadd.f32 %v3395, %v3399
  %v3402 = vld [vmem:[%s4 + $0xc8] sm:$0xff]
  %v3403 = vld [vmem:[%s4 + $0xd0] sm:$0xff]
  %v3404 = vld [vmem:[%s4 + $0xd8] sm:$0xff]
  %v3405 = vld [vmem:[%s4 + $0xe0] sm:$0xff]
  %v3406 = vld [vmem:[%s4 + $0xe8] sm:$0x1]
  %v3407 = vpack.c.bf16 %v3401, %v3400
  %v3408 = vpack.c.bf16 %v3403, %v3402
  %v3409 = vpack.c.bf16 %v3405, %v3404
  %v3410 = vlaneseq
  %v3411 = vshrl.u32 %v3410, 7
  %v3412 = vsub.s32 0, %v3411
  %v3413 = vrot.slane %v3406, %v3412
  %v3415 = vsel %vm332, %v3407, 0
  %3417 = vmatprep.subr.bf16.mxu0 0
  %3418 = vmatpush1.bf16.msra.mxu0 %v3408
  %3419 = vmatprep.subr.bf16.mxu0 0
  %3420 = vmatpush1.bf16.msra.mxu0 %v3409
  %3421 = vmatprep.subr.bf16.mxu0 0
  %3422 = vmatpush1.bf16.msra.mxu0 0
  %3423 = vmatprep.subr.bf16.mxu0 0
  %3424 = vmatpush1.bf16.msra.mxu0 0
  %3425 = vmatprep.subr.bf16.mxu0 0
  %3426 = vmatpush1.bf16.msra.mxu0 0
  %3427 = vmatprep.subr.bf16.mxu0 0
  %3428 = vmatpush1.bf16.msra.mxu0 0
  %3429 = vmatprep.subr.bf16.mxu0 0
  %3430 = vmatpush1.bf16.msra.mxu0 0
  %3431 = vmatprep.subr.bf16.mxu0 0
  %3432 = vmatpush1.bf16.msra.mxu0 0
  %3433 = vmatprep.subr.bf16.mxu0 0
  %3434 = vmatpush1.bf16.msra.mxu0 0
  %3435 = vmatprep.subr.bf16.mxu0 0
  %3436 = vmatpush1.bf16.msra.mxu0 0
  %3437 = vmatprep.subr.bf16.mxu0 0
  %3438 = vmatpush1.bf16.msra.mxu0 0
  %3439 = vmatprep.subr.bf16.mxu0 0
  %3440 = vmatpush1.bf16.msra.mxu0 0
  %3441 = vmatprep.subr.bf16.mxu0 0
  %3442 = vmatpush1.bf16.msra.mxu0 0
  %3443 = vmatprep.subr.bf16.mxu0 0
  %3444 = vmatpush1.bf16.msra.mxu0 0
  %3445 = vmatprep.subr.bf16.mxu0 0
  %3446 = vmatpush1.bf16.msra.mxu0 0
  %3447 = vmatprep.subr.bf16.mxu0 0
  %3448 = vmatpush1.bf16.msra.mxu0 0
  %3449 = vmatprep.mubr.bf16.mxu0 0
  %3450 = vmatmul.mubr.bf16.gmra.mrb[0].mxu0 %v3415
  %v3451 = vpop.f32.mrb[0].mxu0
  %v3452 = vadd.f32 %v3413, %v3451
  %v3453 = vpop.f32.mrb[0].mxu0
  %v3454 = vpop.f32.mrb[0].mxu0
  %v3455 = vadd.f32 %v3413, %v3454
  %v3456 = vpop.f32.mrb[0].mxu0
  %3457 = vdwg.mxu0
  %3460 = vrot.lane.b32.xlu0 %v3408, 96
  %v3461 = vpop.permute.xlu0 %3460
  %3462 = vrot.lane.b32.xlu0 %v3409, 96
  %v3463 = vpop.permute.xlu0 %3462
  %3467 = vrot.lane.b32.xlu0 %v3413, 96
  %v3468 = vpop.permute.xlu0 %3467
  %3470 = vmatprep.subr.bf16.mxu0 0
  %3471 = vmatpush1.bf16.msra.mxu0 %v3461
  %3472 = vmatprep.subr.bf16.mxu0 0
  %3473 = vmatpush1.bf16.msra.mxu0 %v3463
  %3474 = vmatprep.subr.bf16.mxu0 0
  %3475 = vmatpush1.bf16.msra.mxu0 0
  %3476 = vmatprep.subr.bf16.mxu0 0
  %3477 = vmatpush1.bf16.msra.mxu0 0
  %3478 = vmatprep.subr.bf16.mxu0 0
  %3479 = vmatpush1.bf16.msra.mxu0 0
  %3480 = vmatprep.subr.bf16.mxu0 0
  %3481 = vmatpush1.bf16.msra.mxu0 0
  %3482 = vmatprep.subr.bf16.mxu0 0
  %3483 = vmatpush1.bf16.msra.mxu0 0
  %3484 = vmatprep.subr.bf16.mxu0 0
  %3485 = vmatpush1.bf16.msra.mxu0 0
  %3486 = vmatprep.subr.bf16.mxu0 0
  %3487 = vmatpush1.bf16.msra.mxu0 0
  %3488 = vmatprep.subr.bf16.mxu0 0
  %3489 = vmatpush1.bf16.msra.mxu0 0
  %3490 = vmatprep.subr.bf16.mxu0 0
  %3491 = vmatpush1.bf16.msra.mxu0 0
  %3492 = vmatprep.subr.bf16.mxu0 0
  %3493 = vmatpush1.bf16.msra.mxu0 0
  %3494 = vmatprep.subr.bf16.mxu0 0
  %3495 = vmatpush1.bf16.msra.mxu0 0
  %3496 = vmatprep.subr.bf16.mxu0 0
  %3497 = vmatpush1.bf16.msra.mxu0 0
  %3498 = vmatprep.subr.bf16.mxu0 0
  %3499 = vmatpush1.bf16.msra.mxu0 0
  %3500 = vmatprep.subr.bf16.mxu0 0
  %3501 = vmatpush1.bf16.msra.mxu0 0
  %3502 = vmatprep.mubr.bf16.mxu0 0
  %3503 = vmatmul.mubr.bf16.gmra.mrb[0].mxu0 %v2290
  %v3504 = vpop.f32.mrb[0].mxu0
  %v3505 = vadd.f32 %v3468, %v3504
  %v3506 = vpop.f32.mrb[0].mxu0
  %v3507 = vpop.f32.mrb[0].mxu0
  %v3508 = vadd.f32 %v3468, %v3507
  %v3509 = vpop.f32.mrb[0].mxu0
  %3510 = vdwg.mxu0
  %3513 = vrot.lane.b32.xlu0 %v3452, 120
  %v3514 = vpop.permute.xlu0 %3513
  %3515 = vrot.lane.b32.xlu0 %v3455, 120
  %v3516 = vpop.permute.xlu0 %3515
  %3519 = vrot.lane.b32.xlu0 %v3452, 112
  %v3520 = vpop.permute.xlu0 %3519
  %3521 = vrot.lane.b32.xlu0 %v3455, 112
  %v3522 = vpop.permute.xlu0 %3521
  %3525 = vrot.lane.b32.xlu0 %v3452, 104
  %v3526 = vpop.permute.xlu0 %3525
  %3527 = vrot.lane.b32.xlu0 %v3455, 104
  %v3528 = vpop.permute.xlu0 %3527
  %3533 = vrot.lane.b32.xlu0 %v3505, 120
  %v3534 = vpop.permute.xlu0 %3533
  %3535 = vrot.lane.b32.xlu0 %v3508, 120
  %v3536 = vpop.permute.xlu0 %3535
  %3539 = vrot.lane.b32.xlu0 %v3505, 112
  %v3540 = vpop.permute.xlu0 %3539
  %3541 = vrot.lane.b32.xlu0 %v3508, 112
  %v3542 = vpop.permute.xlu0 %3541
  %3545 = vrot.lane.b32.xlu0 %v3505, 104
  %v3546 = vpop.permute.xlu0 %3545
  %3547 = vrot.lane.b32.xlu0 %v3508, 104
  %v3548 = vpop.permute.xlu0 %3547
  %v3551 = vpack.c.bf16 %v3455, %v3452
  %v3552 = vpack.c.bf16 %v3516, %v3514
  %v3553 = vpack.c.bf16 %v3522, %v3520
  %v3554 = vpack.c.bf16 %v3528, %v3526
  %v3555 = vpack.c.bf16 %v3508, %v3505
  %v3556 = vpack.c.bf16 %v3536, %v3534
  %v3557 = vpack.c.bf16 %v3542, %v3540
  %v3558 = vpack.c.bf16 %v3548, %v3546
  %v3560 = vsel %vm502, %v3551, 0
  %v3563 = vsel %vm502, %v3552, 0
  %v3566 = vsel %vm502, %v3553, 0
  %v3569 = vsel %vm502, %v3554, 0
  %v3572 = vsel %vm502, %v3555, 0
  %v3575 = vsel %vm502, %v3556, 0
  %v3578 = vsel %vm502, %v3557, 0
  %v3581 = vsel %vm502, %v3558, 0
  %3583 = vmatprep.subr.bf16.mxu0 0
  %3584 = vmatpush1.bf16.xpose.msra.mxu0 %v3572
  %3585 = vmatprep.subr.bf16.mxu0 0
  %3586 = vmatpush1.bf16.xpose.msra.mxu0 %v3575
  %3587 = vmatprep.subr.bf16.mxu0 0
  %3588 = vmatpush1.bf16.xpose.msra.mxu0 %v3578
  %3589 = vmatprep.subr.bf16.mxu0 0
  %3590 = vmatpush1.bf16.xpose.msra.mxu0 %v3581
  %3591 = vmatprep.subr.bf16.mxu0 0
  %3592 = vmatpush1.bf16.xpose.msra.mxu0 0
  %3593 = vmatprep.subr.bf16.mxu0 0
  %3594 = vmatpush1.bf16.xpose.msra.mxu0 0
  %3595 = vmatprep.subr.bf16.mxu0 0
  %3596 = vmatpush1.bf16.xpose.msra.mxu0 0
  %3597 = vmatprep.subr.bf16.mxu0 0
  %3598 = vmatpush1.bf16.xpose.msra.mxu0 0
  %3599 = vmatprep.subr.bf16.mxu0 0
  %3600 = vmatpush1.bf16.xpose.msra.mxu0 0
  %3601 = vmatprep.subr.bf16.mxu0 0
  %3602 = vmatpush1.bf16.xpose.msra.mxu0 0
  %3603 = vmatprep.subr.bf16.mxu0 0
  %3604 = vmatpush1.bf16.xpose.msra.mxu0 0
  %3605 = vmatprep.subr.bf16.mxu0 0
  %3606 = vmatpush1.bf16.xpose.msra.mxu0 0
  %3607 = vmatprep.subr.bf16.mxu0 0
  %3608 = vmatpush1.bf16.xpose.msra.mxu0 0
  %3609 = vmatprep.subr.bf16.mxu0 0
  %3610 = vmatpush1.bf16.xpose.msra.mxu0 0
  %3611 = vmatprep.subr.bf16.mxu0 0
  %3612 = vmatpush1.bf16.xpose.msra.mxu0 0
  %3613 = vmatprep.subr.bf16.mxu0 0
  %3614 = vmatpush1.bf16.xpose.msra.mxu0 0
  %3615 = vmatprep.mubr.bf16.mxu0 0
  %3616 = vmatmul.mubr.bf16.gmra.mrb[0].mxu0 %v3560
  %v3617 = vpop.f32.mrb[0].mxu0
  %v3618 = vadd.f32 %v402, %v3617
  %v3619 = vpop.f32.mrb[0].mxu0
  %v3620 = vpop.f32.mrb[0].mxu0
  %v3621 = vadd.f32 %v403, %v3620
  %v3622 = vpop.f32.mrb[0].mxu0
  %3623 = vmatprep.mubr.bf16.mxu0 0
  %3624 = vmatmul.mubr.bf16.gmra.mrb[0].mxu0 %v3563
  %v3625 = vpop.f32.mrb[0].mxu0
  %v3626 = vadd.f32 %v404, %v3625
  %v3627 = vpop.f32.mrb[0].mxu0
  %v3628 = vpop.f32.mrb[0].mxu0
  %v3629 = vadd.f32 %v405, %v3628
  %v3630 = vpop.f32.mrb[0].mxu0
  %3631 = vmatprep.mubr.bf16.mxu0 0
  %3632 = vmatmul.mubr.bf16.gmra.mrb[0].mxu0 %v3566
  %v3633 = vpop.f32.mrb[0].mxu0
  %v3634 = vadd.f32 %v406, %v3633
  %v3635 = vpop.f32.mrb[0].mxu0
  %v3636 = vpop.f32.mrb[0].mxu0
  %v3637 = vadd.f32 %v407, %v3636
  %v3638 = vpop.f32.mrb[0].mxu0
  %3639 = vmatprep.mubr.bf16.mxu0 0
  %3640 = vmatmul.mubr.bf16.gmra.mrb[0].mxu0 %v3569
  %v3641 = vpop.f32.mrb[0].mxu0
  %v3642 = vadd.f32 %v408, %v3641
  %v3643 = vpop.f32.mrb[0].mxu0
  %v3644 = vpop.f32.mrb[0].mxu0
  %v3645 = vadd.f32 %v409, %v3644
  %v3646 = vpop.f32.mrb[0].mxu0
  %3647 = vdwg.mxu0
  %v3648 = vsel %vm53, %v3618, -inf
  %3649 = vmax.xlane.f32.xlu0 %v3648
  %v3650 = vpop.xlane.xlu0 %3649
  %v3651 = vsel %vm53, %v3621, -inf
  %3652 = vmax.xlane.f32.xlu0 %v3651
  %v3653 = vpop.xlane.xlu0 %3652
  %v3654 = vsel %vm53, %v3626, -inf
  %3655 = vmax.xlane.f32.xlu0 %v3654
  %v3656 = vpop.xlane.xlu0 %3655
  %v3657 = vsel %vm53, %v3629, -inf
  %3658 = vmax.xlane.f32.xlu0 %v3657
  %v3659 = vpop.xlane.xlu0 %3658
  %v3660 = vsel %vm53, %v3634, -inf
  %3661 = vmax.xlane.f32.xlu0 %v3660
  %v3662 = vpop.xlane.xlu0 %3661
  %v3663 = vsel %vm53, %v3637, -inf
  %3664 = vmax.xlane.f32.xlu0 %v3663
  %v3665 = vpop.xlane.xlu0 %3664
  %v3666 = vsel %vm53, %v3642, -inf
  %3667 = vmax.xlane.f32.xlu0 %v3666
  %v3668 = vpop.xlane.xlu0 %3667
  %v3669 = vsel %vm53, %v3645, -inf
  %3670 = vmax.xlane.f32.xlu0 %v3669
  %v3671 = vpop.xlane.xlu0 %3670
  %v3672 = vsub.f32 %v3618, %v3650
  %v3673 = vsub.f32 %v3621, %v3653
  %v3674 = vsub.f32 %v3626, %v3656
  %v3675 = vsub.f32 %v3629, %v3659
  %v3676 = vsub.f32 %v3634, %v3662
  %v3677 = vsub.f32 %v3637, %v3665
  %v3678 = vsub.f32 %v3642, %v3668
  %v3679 = vsub.f32 %v3645, %v3671
  %v3680 = vmul.f32 %v3672, 1.442695
  %v3681 = vpow.pop %v3680
  %v3682 = vmul.f32 %v3673, 1.442695
  %v3683 = vpow.pop %v3682
  %v3684 = vmul.f32 %v3674, 1.442695
  %v3685 = vpow.pop %v3684
  %v3686 = vmul.f32 %v3675, 1.442695
  %v3687 = vpow.pop %v3686
  %v3688 = vmul.f32 %v3676, 1.442695
  %v3689 = vpow.pop %v3688
  %v3690 = vmul.f32 %v3677, 1.442695
  %v3691 = vpow.pop %v3690
  %v3692 = vmul.f32 %v3678, 1.442695
  %v3693 = vpow.pop %v3692
  %v3694 = vmul.f32 %v3679, 1.442695
  %v3695 = vpow.pop %v3694
  %v3696 = vsel %vm53, %v3681, 0.0
  %3697 = vadd.xlane.f32.xlu0 %v3696
  %v3698 = vpop.xlane.xlu0 %3697
  %v3699 = vsel %vm53, %v3683, 0.0
  %3700 = vadd.xlane.f32.xlu0 %v3699
  %v3701 = vpop.xlane.xlu0 %3700
  %v3702 = vsel %vm53, %v3685, 0.0
  %3703 = vadd.xlane.f32.xlu0 %v3702
  %v3704 = vpop.xlane.xlu0 %3703
  %v3705 = vsel %vm53, %v3687, 0.0
  %3706 = vadd.xlane.f32.xlu0 %v3705
  %v3707 = vpop.xlane.xlu0 %3706
  %v3708 = vsel %vm53, %v3689, 0.0
  %3709 = vadd.xlane.f32.xlu0 %v3708
  %v3710 = vpop.xlane.xlu0 %3709
  %v3711 = vsel %vm53, %v3691, 0.0
  %3712 = vadd.xlane.f32.xlu0 %v3711
  %v3713 = vpop.xlane.xlu0 %3712
  %v3714 = vsel %vm53, %v3693, 0.0
  %3715 = vadd.xlane.f32.xlu0 %v3714
  %v3716 = vpop.xlane.xlu0 %3715
  %v3717 = vsel %vm53, %v3695, 0.0
  %3718 = vadd.xlane.f32.xlu0 %v3717
  %v3719 = vpop.xlane.xlu0 %3718
  %v3720 = vrcp.pop %v3698
  %v3721 = vrcp.pop %v3701
  %v3722 = vrcp.pop %v3704
  %v3723 = vrcp.pop %v3707
  %v3724 = vrcp.pop %v3710
  %v3725 = vrcp.pop %v3713
  %v3726 = vrcp.pop %v3716
  %v3727 = vrcp.pop %v3719
  %v3728 = vmul.f32 %v3681, %v3720
  %v3729 = vmul.f32 %v3683, %v3721
  %v3730 = vmul.f32 %v3685, %v3722
  %v3731 = vmul.f32 %v3687, %v3723
  %v3732 = vmul.f32 %v3689, %v3724
  %v3733 = vmul.f32 %v3691, %v3725
  %v3734 = vmul.f32 %v3693, %v3726
  %v3735 = vmul.f32 %v3695, %v3727
  %v3736 = vpack.c.bf16 %v3729, %v3728
  %v3737 = vpack.c.bf16 %v3731, %v3730
  %v3738 = vpack.c.bf16 %v3733, %v3732
  %v3739 = vpack.c.bf16 %v3735, %v3734
  %3744 = vrot.lane.b32.xlu0 %v3555, 96
  %v3745 = vpop.permute.xlu0 %3744
  %3746 = vrot.lane.b32.xlu0 %v3556, 96
  %v3747 = vpop.permute.xlu0 %3746
  %3748 = vrot.lane.b32.xlu0 %v3557, 96
  %v3749 = vpop.permute.xlu0 %3748
  %3750 = vrot.lane.b32.xlu0 %v3558, 96
  %v3751 = vpop.permute.xlu0 %3750
  %v3757 = vsel %vm53, %v3736, 0
  %v3760 = vsel %vm53, %v3737, 0
  %v3763 = vsel %vm53, %v3738, 0
  %v3766 = vsel %vm53, %v3739, 0
  %3768 = vmatprep.subr.bf16.mxu0 0
  %3769 = vmatpush1.bf16.msra.mxu0 %v3745
  %3770 = vmatprep.subr.bf16.mxu0 0
  %3771 = vmatpush1.bf16.msra.mxu0 %v3747
  %3772 = vmatprep.subr.bf16.mxu0 0
  %3773 = vmatpush1.bf16.msra.mxu0 %v3749
  %3774 = vmatprep.subr.bf16.mxu0 0
  %3775 = vmatpush1.bf16.msra.mxu0 %v3751
  %3776 = vmatprep.subr.bf16.mxu0 0
  %3777 = vmatpush1.bf16.msra.mxu0 0
  %3778 = vmatprep.subr.bf16.mxu0 0
  %3779 = vmatpush1.bf16.msra.mxu0 0
  %3780 = vmatprep.subr.bf16.mxu0 0
  %3781 = vmatpush1.bf16.msra.mxu0 0
  %3782 = vmatprep.subr.bf16.mxu0 0
  %3783 = vmatpush1.bf16.msra.mxu0 0
  %3784 = vmatprep.subr.bf16.mxu0 0
  %3785 = vmatpush1.bf16.msra.mxu0 0
  %3786 = vmatprep.subr.bf16.mxu0 0
  %3787 = vmatpush1.bf16.msra.mxu0 0
  %3788 = vmatprep.subr.bf16.mxu0 0
  %3789 = vmatpush1.bf16.msra.mxu0 0
  %3790 = vmatprep.subr.bf16.mxu0 0
  %3791 = vmatpush1.bf16.msra.mxu0 0
  %3792 = vmatprep.subr.bf16.mxu0 0
  %3793 = vmatpush1.bf16.msra.mxu0 0
  %3794 = vmatprep.subr.bf16.mxu0 0
  %3795 = vmatpush1.bf16.msra.mxu0 0
  %3796 = vmatprep.subr.bf16.mxu0 0
  %3797 = vmatpush1.bf16.msra.mxu0 0
  %3798 = vmatprep.subr.bf16.mxu0 0
  %3799 = vmatpush1.bf16.msra.mxu0 0
  %3800 = vmatprep.mubr.bf16.mxu0 0
  %3801 = vmatmul.mubr.bf16.gmra.mrb[0].mxu0 %v3757
  %v3802 = vpop.f32.mrb[0].mxu0
  %v3803 = vadd.f32 0.0, %v3802
  %v3804 = vpop.f32.mrb[0].mxu0
  %v3805 = vpop.f32.mrb[0].mxu0
  %v3806 = vadd.f32 0.0, %v3805
  %v3807 = vpop.f32.mrb[0].mxu0
  %3808 = vmatprep.mubr.bf16.mxu0 0
  %3809 = vmatmul.mubr.bf16.gmra.mrb[0].mxu0 %v3760
  %v3810 = vpop.f32.mrb[0].mxu0
  %v3811 = vadd.f32 0.0, %v3810
  %v3812 = vpop.f32.mrb[0].mxu0
  %v3813 = vpop.f32.mrb[0].mxu0
  %v3814 = vadd.f32 0.0, %v3813
  %v3815 = vpop.f32.mrb[0].mxu0
  %3816 = vmatprep.mubr.bf16.mxu0 0
  %3817 = vmatmul.mubr.bf16.gmra.mrb[0].mxu0 %v3763
  %v3818 = vpop.f32.mrb[0].mxu0
  %v3819 = vadd.f32 0.0, %v3818
  %v3820 = vpop.f32.mrb[0].mxu0
  %v3821 = vpop.f32.mrb[0].mxu0
  %v3822 = vadd.f32 0.0, %v3821
  %v3823 = vpop.f32.mrb[0].mxu0
  %3824 = vmatprep.mubr.bf16.mxu0 0
  %3825 = vmatmul.mubr.bf16.gmra.mrb[0].mxu0 %v3766
  %v3826 = vpop.f32.mrb[0].mxu0
  %v3827 = vadd.f32 0.0, %v3826
  %v3828 = vpop.f32.mrb[0].mxu0
  %v3829 = vpop.f32.mrb[0].mxu0
  %v3830 = vadd.f32 0.0, %v3829
  %v3831 = vpop.f32.mrb[0].mxu0
  %3832 = vdwg.mxu0
  %3835 = vrot.lane.b32.xlu0 %v3811, 8
  %v3836 = vpop.permute.xlu0 %3835
  %3837 = vrot.lane.b32.xlu0 %v3814, 8
  %v3838 = vpop.permute.xlu0 %3837
  %3843 = vrot.lane.b32.xlu0 %v3819, 16
  %v3844 = vpop.permute.xlu0 %3843
  %3845 = vrot.lane.b32.xlu0 %v3822, 16
  %v3846 = vpop.permute.xlu0 %3845
  %3851 = vrot.lane.b32.xlu0 %v3827, 24
  %v3852 = vpop.permute.xlu0 %3851
  %3853 = vrot.lane.b32.xlu0 %v3830, 24
  %v3854 = vpop.permute.xlu0 %3853
  %v3857 = vsel %vm502, %v3803, %v3836
  %v3858 = vsel %vm502, %v3806, %v3838
  %v3859 = vsel %vm330, %v3857, %v3844
  %v3860 = vsel %vm330, %v3858, %v3846
  %v3861 = vsel %vm801, %v3859, %v3852
  %v3862 = vsel %vm801, %v3860, %v3854
  %v3863 = vld [vmem:[%s6 + $0xc8] sm:$0xff]
  %v3864 = vld [vmem:[%s6 + $0xd0] sm:$0xff]
  %v3865 = vld [vmem:[%s6 + $0xd8] sm:$0xff]
  %v3866 = vld [vmem:[%s6 + $0xe0] sm:$0xff]
  %v3867 = vld [vmem:[%s6 + $0xe8] sm:$0x1]
  %v3868 = vpack.c.bf16 %v3862, %v3861
  %v3869 = vpack.c.bf16 %v3864, %v3863
  %v3870 = vpack.c.bf16 %v3866, %v3865
  %v3871 = vlaneseq
  %v3872 = vshrl.u32 %v3871, 7
  %v3873 = vsub.s32 0, %v3872
  %v3874 = vrot.slane %v3867, %v3873
  %v3876 = vsel %vm332, %v3868, 0
  %3878 = vmatprep.subr.bf16.mxu0 0
  %3879 = vmatpush1.bf16.msra.mxu0 %v3869
  %3880 = vmatprep.subr.bf16.mxu0 0
  %3881 = vmatpush1.bf16.msra.mxu0 %v3870
  %3882 = vmatprep.subr.bf16.mxu0 0
  %3883 = vmatpush1.bf16.msra.mxu0 0
  %3884 = vmatprep.subr.bf16.mxu0 0
  %3885 = vmatpush1.bf16.msra.mxu0 0
  %3886 = vmatprep.subr.bf16.mxu0 0
  %3887 = vmatpush1.bf16.msra.mxu0 0
  %3888 = vmatprep.subr.bf16.mxu0 0
  %3889 = vmatpush1.bf16.msra.mxu0 0
  %3890 = vmatprep.subr.bf16.mxu0 0
  %3891 = vmatpush1.bf16.msra.mxu0 0
  %3892 = vmatprep.subr.bf16.mxu0 0
  %3893 = vmatpush1.bf16.msra.mxu0 0
  %3894 = vmatprep.subr.bf16.mxu0 0
  %3895 = vmatpush1.bf16.msra.mxu0 0
  %3896 = vmatprep.subr.bf16.mxu0 0
  %3897 = vmatpush1.bf16.msra.mxu0 0
  %3898 = vmatprep.subr.bf16.mxu0 0
  %3899 = vmatpush1.bf16.msra.mxu0 0
  %3900 = vmatprep.subr.bf16.mxu0 0
  %3901 = vmatpush1.bf16.msra.mxu0 0
  %3902 = vmatprep.subr.bf16.mxu0 0
  %3903 = vmatpush1.bf16.msra.mxu0 0
  %3904 = vmatprep.subr.bf16.mxu0 0
  %3905 = vmatpush1.bf16.msra.mxu0 0
  %3906 = vmatprep.subr.bf16.mxu0 0
  %3907 = vmatpush1.bf16.msra.mxu0 0
  %3908 = vmatprep.subr.bf16.mxu0 0
  %3909 = vmatpush1.bf16.msra.mxu0 0
  %3910 = vmatprep.mubr.bf16.mxu0 0
  %3911 = vmatmul.mubr.bf16.gmra.mrb[0].mxu0 %v3876
  %v3912 = vpop.f32.mrb[0].mxu0
  %v3913 = vadd.f32 %v3874, %v3912
  %v3914 = vpop.f32.mrb[0].mxu0
  %v3915 = vpop.f32.mrb[0].mxu0
  %v3916 = vadd.f32 %v3874, %v3915
  %v3917 = vpop.f32.mrb[0].mxu0
  %3918 = vdwg.mxu0
  %v3919 = vadd.f32 %v3913, %v3400
  %v3920 = vadd.f32 %v3916, %v3401
  %v3921 = vld [vmem:[%s6 + $0x128] sm:$0xff]
  %v3922 = vsel %vm332, %v3919, 0.0
  %3923 = vadd.xlane.f32.xlu0 %v3922
  %v3924 = vpop.xlane.xlu0 %3923
  %v3925 = vsel %vm332, %v3920, 0.0
  %3926 = vadd.xlane.f32.xlu0 %v3925
  %v3927 = vpop.xlane.xlu0 %3926
  %v3928 = vmul.f32 %v3924, %v869
  %v3929 = vmul.f32 %v3927, %v869
  %v3930 = vsub.f32 %v3919, %v3928
  %v3931 = vsub.f32 %v3920, %v3929
  %v3932 = vmul.f32 %v3930, %v3930
  %v3933 = vmul.f32 %v3931, %v3931
  %v3934 = vsel %vm332, %v3932, 0.0
  %3935 = vadd.xlane.f32.xlu0 %v3934
  %v3936 = vpop.xlane.xlu0 %3935
  %v3937 = vsel %vm332, %v3933, 0.0
  %3938 = vadd.xlane.f32.xlu0 %v3937
  %v3939 = vpop.xlane.xlu0 %3938
  %v3940 = vmul.f32 %v3936, %v869
  %v3941 = vmul.f32 %v3939, %v869
  %v3942 = vadd.f32 %v3940, 1e-05
  %v3943 = vadd.f32 %v3941, 1e-05
  %v3944 = vrsqrt.pop %v3942
  %v3945 = vrsqrt.pop %v3943
  %v3946 = vmul.f32 %v3930, %v3944
  %v3947 = vmul.f32 %v3931, %v3945
  %v3948 = vlaneseq
  %v3949 = vshrl.u32 %v3948, 7
  %v3950 = vsub.s32 0, %v3949
  %v3951 = vrot.slane %v3921, %v3950
  %v3952 = vmul.f32 %v3946, %v3951
  %v3953 = vmul.f32 %v3947, %v3951
  %v3954 = vlaneseq
  %v3955 = vshrl.u32 %v3954, 7
  %v3956 = vsub.s32 1, %v3955
  %v3957 = vrot.slane %v3921, %v3956
  %v3958 = vadd.f32 %v3952, %v3957
  %v3959 = vadd.f32 %v3953, %v3957
  %v3960 = vld [vmem:[%s5 + $0x78] sm:$0xff]
  %v3961 = vld [vmem:[%s5 + $0x80] sm:$0xff]
  %v3962 = vld [vmem:[%s5 + $0x88] sm:$0xff]
  %v3963 = vld [vmem:[%s5 + $0x90] sm:$0xff]
  %v3964 = vld [vmem:[%s5 + $0x98] sm:$0x1]
  %v3965 = vld [vmem:[%s6 + $0x2c8] sm:$0xff]
  %v3966 = vld [vmem:[%s6 + $0x2d0] sm:$0xff]
  %v3967 = vld [vmem:[%s6 + $0x2d8] sm:$0xff]
  %v3968 = vld [vmem:[%s6 + $0x2e0] sm:$0xff]
  %v3969 = vld [vmem:[%s6 + $0x2e8] sm:$0xff]
  %v3970 = vld [vmem:[%s6 + $0x2f0] sm:$0xff]
  %v3971 = vld [vmem:[%s6 + $0x2f8] sm:$0xff]
  %v3972 = vld [vmem:[%s6 + $0x300] sm:$0xff]
  %v3973 = vld [vmem:[%s6 + $0x308] sm:$0xff]
  %v3974 = vld [vmem:[%s6 + $0x310] sm:$0xff]
  %v3975 = vld [vmem:[%s6 + $0x318] sm:$0xff]
  %v3976 = vld [vmem:[%s6 + $0x320] sm:$0xff]
  %v3977 = vld [vmem:[%s6 + $0x328] sm:$0xff]
  %v3978 = vld [vmem:[%s6 + $0x330] sm:$0xff]
  %v3979 = vld [vmem:[%s6 + $0x338] sm:$0xff]
  %v3980 = vld [vmem:[%s6 + $0x340] sm:$0xff]
  %v3981 = vld [vmem:[%s6 + $0x348] sm:$0x1]
  %v3982 = vpack.c.bf16 %v3959, %v3958
  %v3983 = vpack.c.bf16 %v3961, %v3960
  %v3984 = vpack.c.bf16 %v3963, %v3962
  %v3985 = vlaneseq
  %v3986 = vshrl.u32 %v3985, 7
  %v3987 = vsub.s32 0, %v3986
  %v3988 = vrot.slane %v3964, %v3987
  %v3990 = vsel %vm332, %v3982, 0
  %3992 = vmatprep.subr.bf16.mxu0 0
  %3993 = vmatpush1.bf16.msra.mxu0 %v3983
  %3994 = vmatprep.subr.bf16.mxu0 0
  %3995 = vmatpush1.bf16.msra.mxu0 %v3984
  %3996 = vmatprep.subr.bf16.mxu0 0
  %3997 = vmatpush1.bf16.msra.mxu0 0
  %3998 = vmatprep.subr.bf16.mxu0 0
  %3999 = vmatpush1.bf16.msra.mxu0 0
  %4000 = vmatprep.subr.bf16.mxu0 0
  %4001 = vmatpush1.bf16.msra.mxu0 0
  %4002 = vmatprep.subr.bf16.mxu0 0
  %4003 = vmatpush1.bf16.msra.mxu0 0
  %4004 = vmatprep.subr.bf16.mxu0 0
  %4005 = vmatpush1.bf16.msra.mxu0 0
  %4006 = vmatprep.subr.bf16.mxu0 0
  %4007 = vmatpush1.bf16.msra.mxu0 0
  %4008 = vmatprep.subr.bf16.mxu0 0
  %4009 = vmatpush1.bf16.msra.mxu0 0
  %4010 = vmatprep.subr.bf16.mxu0 0
  %4011 = vmatpush1.bf16.msra.mxu0 0
  %4012 = vmatprep.subr.bf16.mxu0 0
  %4013 = vmatpush1.bf16.msra.mxu0 0
  %4014 = vmatprep.subr.bf16.mxu0 0
  %4015 = vmatpush1.bf16.msra.mxu0 0
  %4016 = vmatprep.subr.bf16.mxu0 0
  %4017 = vmatpush1.bf16.msra.mxu0 0
  %4018 = vmatprep.subr.bf16.mxu0 0
  %4019 = vmatpush1.bf16.msra.mxu0 0
  %4020 = vmatprep.subr.bf16.mxu0 0
  %4021 = vmatpush1.bf16.msra.mxu0 0
  %4022 = vmatprep.subr.bf16.mxu0 0
  %4023 = vmatpush1.bf16.msra.mxu0 0
  %4024 = vmatprep.mubr.bf16.mxu0 0
  %4025 = vmatmul.mubr.bf16.gmra.mrb[0].mxu0 %v3990
  %v4026 = vpop.f32.mrb[0].mxu0
  %v4027 = vadd.f32 %v3988, %v4026
  %v4028 = vpop.f32.mrb[0].mxu0
  %v4029 = vpop.f32.mrb[0].mxu0
  %v4030 = vadd.f32 %v3988, %v4029
  %v4031 = vpop.f32.mrb[0].mxu0
  %4032 = vdwg.mxu0
  %v4033 = vmax.f32 %v4027, 0.0
  %v4034 = vmax.f32 %v4030, 0.0
  %v4035 = vpack.c.bf16 %v4034, %v4033
  %v4036 = vpack.c.bf16 %v3966, %v3965
  %v4037 = vpack.c.bf16 %v3968, %v3967
  %v4038 = vpack.c.bf16 %v3970, %v3969
  %v4039 = vpack.c.bf16 %v3972, %v3971
  %v4040 = vpack.c.bf16 %v3974, %v3973
  %v4041 = vpack.c.bf16 %v3976, %v3975
  %v4042 = vpack.c.bf16 %v3978, %v3977
  %v4043 = vpack.c.bf16 %v3980, %v3979
  %v4044 = vlaneseq
  %v4045 = vshrl.u32 %v4044, 7
  %v4046 = vsub.s32 0, %v4045
  %v4047 = vrot.slane %v3981, %v4046
  %4048 = vmatprep.subr.bf16.mxu0 0
  %4049 = vmatpush1.bf16.msra.mxu0 %v4036
  %4050 = vmatprep.subr.bf16.mxu0 0
  %4051 = vmatpush1.bf16.msra.mxu0 %v4037
  %4052 = vmatprep.subr.bf16.mxu0 0
  %4053 = vmatpush1.bf16.msra.mxu0 %v4038
  %4054 = vmatprep.subr.bf16.mxu0 0
  %4055 = vmatpush1.bf16.msra.mxu0 %v4039
  %4056 = vmatprep.subr.bf16.mxu0 0
  %4057 = vmatpush1.bf16.msra.mxu0 %v4040
  %4058 = vmatprep.subr.bf16.mxu0 0
  %4059 = vmatpush1.bf16.msra.mxu0 %v4041
  %4060 = vmatprep.subr.bf16.mxu0 0
  %4061 = vmatpush1.bf16.msra.mxu0 %v4042
  %4062 = vmatprep.subr.bf16.mxu0 0
  %4063 = vmatpush1.bf16.msra.mxu0 %v4043
  %4064 = vmatprep.subr.bf16.mxu0 0
  %4065 = vmatpush1.bf16.msra.mxu0 0
  %4066 = vmatprep.subr.bf16.mxu0 0
  %4067 = vmatpush1.bf16.msra.mxu0 0
  %4068 = vmatprep.subr.bf16.mxu0 0
  %4069 = vmatpush1.bf16.msra.mxu0 0
  %4070 = vmatprep.subr.bf16.mxu0 0
  %4071 = vmatpush1.bf16.msra.mxu0 0
  %4072 = vmatprep.subr.bf16.mxu0 0
  %4073 = vmatpush1.bf16.msra.mxu0 0
  %4074 = vmatprep.subr.bf16.mxu0 0
  %4075 = vmatpush1.bf16.msra.mxu0 0
  %4076 = vmatprep.subr.bf16.mxu0 0
  %4077 = vmatpush1.bf16.msra.mxu0 0
  %4078 = vmatprep.subr.bf16.mxu0 0
  %4079 = vmatpush1.bf16.msra.mxu0 0
  %4080 = vmatprep.mubr.bf16.mxu0 0
  %4081 = vmatmul.mubr.bf16.gmra.mrb[0].mxu0 %v4035
  %v4082 = vpop.f32.mrb[0].mxu0
  %v4083 = vadd.f32 %v4047, %v4082
  %v4084 = vpop.f32.mrb[0].mxu0
  %v4085 = vpop.f32.mrb[0].mxu0
  %v4086 = vadd.f32 %v4047, %v4085
  %v4087 = vpop.f32.mrb[0].mxu0
  %4088 = vdwg.mxu0
  %v4089 = vadd.f32 %v4083, %v3958
  %v4090 = vadd.f32 %v4086, %v3959
  %v4091 = vld [vmem:[%s5 + $0xa0] sm:$0xff]
  %v4092 = vld [vmem:[%s5 + $0xa8] sm:$0xff]
  %v4093 = vld [vmem:[%s5 + $0xb0] sm:$0xff]
  %v4094 = vld [vmem:[%s5 + $0xb8] sm:$0xff]
  %v4095 = vld [vmem:[%s5 + $0xc0] sm:$0x1]
  %v4096 = vpack.c.bf16 %v4090, %v4089
  %v4097 = vpack.c.bf16 %v4092, %v4091
  %v4098 = vpack.c.bf16 %v4094, %v4093
  %v4099 = vlaneseq
  %v4100 = vshrl.u32 %v4099, 7
  %v4101 = vsub.s32 0, %v4100
  %v4102 = vrot.slane %v4095, %v4101
  %v4104 = vsel %vm332, %v4096, 0
  %4106 = vmatprep.subr.bf16.mxu0 0
  %4107 = vmatpush1.bf16.msra.mxu0 %v4097
  %4108 = vmatprep.subr.bf16.mxu0 0
  %4109 = vmatpush1.bf16.msra.mxu0 %v4098
  %4110 = vmatprep.subr.bf16.mxu0 0
  %4111 = vmatpush1.bf16.msra.mxu0 0
  %4112 = vmatprep.subr.bf16.mxu0 0
  %4113 = vmatpush1.bf16.msra.mxu0 0
  %4114 = vmatprep.subr.bf16.mxu0 0
  %4115 = vmatpush1.bf16.msra.mxu0 0
  %4116 = vmatprep.subr.bf16.mxu0 0
  %4117 = vmatpush1.bf16.msra.mxu0 0
  %4118 = vmatprep.subr.bf16.mxu0 0
  %4119 = vmatpush1.bf16.msra.mxu0 0
  %4120 = vmatprep.subr.bf16.mxu0 0
  %4121 = vmatpush1.bf16.msra.mxu0 0
  %4122 = vmatprep.subr.bf16.mxu0 0
  %4123 = vmatpush1.bf16.msra.mxu0 0
  %4124 = vmatprep.subr.bf16.mxu0 0
  %4125 = vmatpush1.bf16.msra.mxu0 0
  %4126 = vmatprep.subr.bf16.mxu0 0
  %4127 = vmatpush1.bf16.msra.mxu0 0
  %4128 = vmatprep.subr.bf16.mxu0 0
  %4129 = vmatpush1.bf16.msra.mxu0 0
  %4130 = vmatprep.subr.bf16.mxu0 0
  %4131 = vmatpush1.bf16.msra.mxu0 0
  %4132 = vmatprep.subr.bf16.mxu0 0
  %4133 = vmatpush1.bf16.msra.mxu0 0
  %4134 = vmatprep.subr.bf16.mxu0 0
  %4135 = vmatpush1.bf16.msra.mxu0 0
  %4136 = vmatprep.subr.bf16.mxu0 0
  %4137 = vmatpush1.bf16.msra.mxu0 0
  %4138 = vmatprep.mubr.bf16.mxu0 0
  %4139 = vmatmul.mubr.bf16.gmra.mrb[0].mxu0 %v4104
  %v4140 = vpop.f32.mrb[0].mxu0
  %v4141 = vadd.f32 %v4102, %v4140
  %v4142 = vpop.f32.mrb[0].mxu0
  %v4143 = vpop.f32.mrb[0].mxu0
  %v4144 = vadd.f32 %v4102, %v4143
  %v4145 = vpop.f32.mrb[0].mxu0
  %4146 = vdwg.mxu0
  %4147 = vmax.xlane.f32.xlu0 %v4141
  %v4148 = vpop.xlane.xlu0 %4147
  %4149 = vmax.xlane.f32.xlu0 %v4144
  %v4150 = vpop.xlane.xlu0 %4149
  %v4151 = vsub.f32 %v4141, %v4148
  %v4152 = vsub.f32 %v4144, %v4150
  %v4153 = vmul.f32 %v4151, 1.442695
  %v4154 = vpow.pop %v4153
  %v4155 = vmul.f32 %v4152, 1.442695
  %v4156 = vpow.pop %v4155
  %4157 = vadd.xlane.f32.xlu0 %v4154
  %v4158 = vpop.xlane.xlu0 %4157
  %4159 = vadd.xlane.f32.xlu0 %v4156
  %v4160 = vpop.xlane.xlu0 %4159
  %v4161 = vrcp.pop %v4158
  %v4162 = vrcp.pop %v4160
  %v4163 = vmul.f32 %v4154, %v4161
  %v4164 = vmul.f32 %v4156, %v4162
  %4165 = vst [vmem:[%s7] sm:$0xff] %v4163
  %4166 = vst [vmem:[%s7 + $0x8] sm:$0xff] %v4164
  // Predicated region
  $region30: #{transformer_forward.1} parent=0 // pred_check
    _
  $region31: #{transformer_forward.1} parent=0 // pred_check_branch
    %4168 = sbr.rel (0) target = $region33
  $region32: #{transformer_forward.1} parent=0 // pred_region
    _
  $region33: #{transformer_forward.1} parent=0 // pred_fallthru
    _
  // Predicated region
  $region34: #{transformer_forward.1} parent=0 // pred_check
    _
  $region35: #{transformer_forward.1} parent=0 // pred_check_branch
    %4170 = sbr.rel (0) target = $region37
  $region36: #{transformer_forward.1} parent=0 // pred_region
    _
  $region37: #{transformer_forward.1} parent=0 // pred_fallthru
    _

</llo_original>
